<compile_context>
chip_gen: v6e
topology: v6e:2x2x1
jax: 0.10.0
libtpu: 0.0.40
codegen_flags: <defaults>
</compile_context>

<pallas_src>
import functools

import jax
import jax.numpy as jnp
from jax.experimental import pallas as pl
from jax.experimental.pallas import tpu as pltpu

LANES = 128      # lane width: every kernel output is padded to 128 channels
TK = 128         # K padding granularity (K itself is untiled)
TP_MAX = 1024    # max output-position rows per tile
VMEM_LIMIT = 32 * 1024 * 1024   # explicit scoped-VMEM budget (safe on v5e/v6e/v7x)


def _round_up(x, m):
    return ((x + m - 1) // m) * m


# ----------------------------- Pallas kernels -----------------------------

def _conv_mm_kernel(a_ref, w_ref, bmap_ref, o_ref, psum_ref, *,
                    relu, valid_rows, tp):
    """One (P-tile, batch) grid step of conv-as-im2col-matmul (K untiled).

    a_ref    : (1, TP, Kp)     bf16  im2col patch tile (full reduction depth)
    w_ref    : (Kp, LANES)     bf16  weight (Cout zero-padded to 128 lanes)
    bmap_ref : (TP, LANES) bf16 per-position bias map   -- conv1/conv2, or
               (1, LANES)  f32  per-channel bias vector -- conv3/conv4
    o_ref    : (1, TP, LANES)  bf16  conv output tile
    psum_ref : (1, 1, 1, LANES) f32  partial channel sum (for fused avg-pool)
    """
    r = jnp.dot(a_ref[0], w_ref[...], preferred_element_type=jnp.float32)
    r = r + bmap_ref[...].astype(jnp.float32)
    if relu:
        r = jnp.maximum(r, 0.0)
    o_ref[0] = r.astype(o_ref.dtype)

    # Partial channel sums for the fused adaptive-avg-pool.  Rows beyond the
    # real position count are masked out (needed for the broadcast-bias
    # layers, where padded rows would otherwise contribute relu(bias)).
    row = (jax.lax.broadcasted_iota(jnp.int32, r.shape, 0)
           + pl.program_id(0) * tp)
    r_valid = jnp.where(row < valid_rows, r, 0.0)
    psum_ref[0, 0] = jnp.sum(r_valid, axis=0, keepdims=True)


def _fc_kernel(x_ref, w_ref, b_ref, o_ref):
    """Batched FC: (Np, 128) x (128, 128) + bias, one grid step total."""
    o_ref[...] = (jnp.dot(x_ref[...], w_ref[...],
                          preferred_element_type=jnp.float32) + b_ref[...])


# ----------------------------- Pallas wrappers -----------------------------

def conv_block(x_nhwc, w_oihw, bias, *, stride, pad, relu=True):
    """Conv2d(+bias +ReLU) as a tiled Pallas matmul with fused pool partials.

    x_nhwc : [N, H, W, Cin]  activations (f32 or bf16)
    w_oihw : [Cout, Cin, kh, kw]
    bias   : [Ho*Wo, Cout] per-position bias map  OR  [Cout] per-channel bias
    returns: (out [N, Pp, 128] bf16, psum [n_pt, N, 1, 128] f32, (Ho, Wo))
             Extra rows/channels of `out` are garbage-free zeros only when the
             bias is a per-position map; they are always sliced off by callers.
    """
    N = x_nhwc.shape[0]
    Cout, Cin, kh, kw = w_oihw.shape
    patches, (Ho, Wo) = _im2col(x_nhwc, kh, kw, stride, pad)      # [N, P, K]
    P, K = patches.shape[1], patches.shape[2]
    Kp = _round_up(K, TK)

    TP = min(TP_MAX, _round_up(P, 8))
    if N == 1 and P > 8:
        # Guarantee >=2 parallel grid tiles so both v7x TensorCores get work.
        TP = min(TP, _round_up(pl.cdiv(P, 2), 8))
    Pp = _round_up(P, TP)
    n_pt = Pp // TP

    # bf16 MXU operands (casts fused by XLA into the patch producer).
    a = jnp.pad(patches, ((0, 0), (0, Pp - P), (0, Kp - K))).astype(jnp.bfloat16)
    w2d = jnp.transpose(w_oihw, (2, 3, 1, 0)).reshape(kh * kw * Cin, Cout)
    w2d = jnp.pad(w2d, ((0, Kp - kh * kw * Cin), (0, LANES - Cout)))
    w2d = w2d.astype(jnp.bfloat16)

    if bias.ndim == 2:
        # per-position bias map (conv1: folded BN + coords, conv2: coords)
        bmap = jnp.pad(bias, ((0, Pp - P), (0, LANES - Cout))).astype(jnp.bfloat16)
        bmap_spec = pl.BlockSpec((TP, LANES), lambda p, n: (p, 0))
    else:
        # per-channel bias broadcast in-kernel (conv3/conv4): 512 B operand
        bmap = jnp.pad(bias.astype(jnp.float32),
                       (0, LANES - Cout)).reshape(1, LANES)
        bmap_spec = pl.BlockSpec((1, LANES), lambda p, n: (0, 0))

    kernel = functools.partial(_conv_mm_kernel, relu=relu, valid_rows=P, tp=TP)
    out, psum = pl.pallas_call(
        kernel,
        out_shape=(jax.ShapeDtypeStruct((N, Pp, LANES), jnp.bfloat16),
                   jax.ShapeDtypeStruct((n_pt, N, 1, LANES), jnp.float32)),
        grid_spec=pltpu.PrefetchScalarGridSpec(
            num_scalar_prefetch=0,
            grid=(n_pt, N),              # P outermost: bias map resident over N
            in_specs=[
                pl.BlockSpec((1, TP, Kp), lambda p, n: (n, p, 0)),
                pl.BlockSpec((Kp, LANES), lambda p, n: (0, 0)),
                bmap_spec,
            ],
            out_specs=(
                pl.BlockSpec((1, TP, LANES), lambda p, n: (n, p, 0)),
                pl.BlockSpec((1, 1, 1, LANES), lambda p, n: (p, n, 0, 0)),
            ),
        ),
        compiler_params=pltpu.CompilerParams(
            dimension_semantics=("parallel", "parallel"),
            vmem_limit_bytes=VMEM_LIMIT),
    )(a, w2d, bmap)
    return out, psum, (Ho, Wo)


def fc_block(pooled4, fc_w, fc_b, num_classes):
    """Whole-batch FC as a single-step lane-dense Pallas matmul."""
    N, C = pooled4.shape
    Np = _round_up(max(N, 1), 8)
    x = jnp.pad(pooled4.astype(jnp.float32),
                ((0, Np - N), (0, LANES - C)))
    w = jnp.pad(fc_w.T.astype(jnp.float32),
                ((0, LANES - C), (0, LANES - num_classes)))
    b = jnp.pad(fc_b.astype(jnp.float32),
                (0, LANES - num_classes)).reshape(1, LANES)
    out = pl.pallas_call(
        _fc_kernel,
        out_shape=jax.ShapeDtypeStruct((Np, LANES), jnp.float32),
        grid_spec=pltpu.PrefetchScalarGridSpec(
            num_scalar_prefetch=0,
            grid=(1,),
            in_specs=[
                pl.BlockSpec((Np, LANES), lambda i: (0, 0)),
                pl.BlockSpec((LANES, LANES), lambda i: (0, 0)),
                pl.BlockSpec((1, LANES), lambda i: (0, 0)),
            ],
            out_specs=pl.BlockSpec((Np, LANES), lambda i: (0, 0)),
        ),
        compiler_params=pltpu.CompilerParams(
            dimension_semantics=("arbitrary",),
            vmem_limit_bytes=VMEM_LIMIT),
    )(x, w, b)
    return out[:N, :num_classes]


# ----------------------------- JAX glue (layout / constant prep only) -------

def _im2col(x_nhwc, kh, kw, stride, pad, pad_value=0.0):
    """im2col: [N, Ho*Wo, kh*kw*C], tap-major then channel (matches weights)."""
    N, H, W, C = x_nhwc.shape
    xp = jnp.pad(x_nhwc, ((0, 0), (pad, pad), (pad, pad), (0, 0)),
                 constant_values=pad_value)
    Ho = (H + 2 * pad - kh) // stride + 1
    Wo = (W + 2 * pad - kw) // stride + 1
    cols = []
    for i in range(kh):
        for j in range(kw):
            cols.append(xp[:, i:i + stride * (Ho - 1) + 1:stride,
                           j:j + stride * (Wo - 1) + 1:stride, :])
    patches = jnp.concatenate(cols, axis=-1)              # [N, Ho, Wo, kk*C]
    return patches.reshape(N, Ho * Wo, kh * kw * C), (Ho, Wo)


def _maxpool_nhwc(x, k, stride, pad):
    """MaxPool2d (PyTorch -inf padding).  Fused by XLA into conv2's patch
    loader (shifted max -> pad -> im2col -> bf16 cast).  Safe w.r.t. -inf
    because conv1's ReLU guarantees every window has a finite element."""
    N, H, W, C = x.shape
    xp = jnp.pad(x, ((0, 0), (pad, pad), (pad, pad), (0, 0)),
                 constant_values=-jnp.inf)
    Ho = (H + 2 * pad - k) // stride + 1
    Wo = (W + 2 * pad - k) // stride + 1
    out = None
    for i in range(k):
        for j in range(k):
            win = xp[:, i:i + stride * (Ho - 1) + 1:stride,
                     j:j + stride * (Wo - 1) + 1:stride, :]
            out = win if out is None else jnp.maximum(out, win)
    return out


def _coord_channels(H, W, dtype=jnp.float32):
    """Standard CoordConv AddCoords channels: x (varies along width) then y,
    both normalized to [-1, 1], appended after the image channels."""
    xx = jnp.linspace(-1.0, 1.0, W, dtype=dtype)
    yy = jnp.linspace(-1.0, 1.0, H, dtype=dtype)
    xx_ch = jnp.broadcast_to(xx[None, None, :, None], (1, H, W, 1))
    yy_ch = jnp.broadcast_to(yy[None, :, None, None], (1, H, W, 1))
    return jnp.concatenate([xx_ch, yy_ch], axis=-1)        # [1, H, W, 2]


def _xla_conv_nhwc(img, w_oihw, stride, pad):
    """Small XLA conv used only for input-independent bias-map precompute
    (and the pure-JAX reference); not on the activation hot path."""
    w_hwio = jnp.transpose(w_oihw, (2, 3, 1, 0))
    return jax.lax.conv_general_dilated(
        img, w_hwio, window_strides=(stride, stride),
        padding=((pad, pad), (pad, pad)),
        dimension_numbers=('NHWC', 'HWIO', 'NHWC'))


# ----------------------------- Parameters -----------------------------

def init_params(key, num_classes=10):
    ks = jax.random.split(key, 10)

    def conv_wb(kw_, kb_, cout, cin, kh, kwid):
        fan_in = cin * kh * kwid
        bound = 1.0 / jnp.sqrt(jnp.float32(fan_in))
        w = jax.random.uniform(kw_, (cout, cin, kh, kwid), jnp.float32, -bound, bound)
        b = jax.random.uniform(kb_, (cout,), jnp.float32, -bound, bound)
        return w, b

    p = {}
    p['bn0_gamma'] = jnp.ones((3,), jnp.float32)
    p['bn0_beta'] = jnp.zeros((3,), jnp.float32)
    p['bn0_mean'] = jnp.zeros((3,), jnp.float32)
    p['bn0_var'] = jnp.ones((3,), jnp.float32)
    # CoordConv layers have +2 input channels (x/y coordinate channels)
    p['conv1_w'], p['conv1_b'] = conv_wb(ks[0], ks[1], 32, 3 + 2, 5, 5)
    p['conv2_w'], p['conv2_b'] = conv_wb(ks[2], ks[3], 32, 32 + 2, 3, 3)
    p['conv3_w'], p['conv3_b'] = conv_wb(ks[4], ks[5], 64, 32, 3, 3)
    p['conv4_w'], p['conv4_b'] = conv_wb(ks[6], ks[7], 64, 64, 3, 3)
    bound = 1.0 / jnp.sqrt(jnp.float32(64))
    p['fc_w'] = jax.random.uniform(ks[8], (num_classes, 64), jnp.float32, -bound, bound)
    p['fc_b'] = jax.random.uniform(ks[9], (num_classes,), jnp.float32, -bound, bound)
    return p


# ----------------------------- Forward -----------------------------

def forward(params, x_nchw):
    x = jnp.transpose(x_nchw, (0, 2, 3, 1)).astype(jnp.float32)   # NCHW -> NHWC
    N, H, W, _ = x.shape
    num_classes = params['fc_w'].shape[0]

    # bn0 (eval mode) folded exactly into conv1: scale -> weights,
    # shift -> per-position bias map (zero-padding at borders handled exactly).
    eps = 1e-5
    scale = params['bn0_gamma'] / jnp.sqrt(params['bn0_var'] + eps)
    shift = params['bn0_beta'] - params['bn0_mean'] * scale

    # ---- conv1: CoordConv(3->32, k5 s1 p2) + bn0 + ReLU (one Pallas call) ----
    w1 = params['conv1_w']                                  # [32, 5, 5, 5]
    w1_data = w1[:, :3] * scale[None, :, None, None]
    const1 = jnp.concatenate(
        [jnp.broadcast_to(shift[None, None, None, :], (1, H, W, 3)),
         _coord_channels(H, W)], axis=-1)                   # [1, H, W, 5]
    b1map = (_xla_conv_nhwc(const1, w1, 1, 2)[0]
             + params['conv1_b']).reshape(H * W, 32)
    c1, _, (H1, W1o) = conv_block(x, w1_data, b1map, stride=1, pad=2)
    x1 = c1[:, :H1 * W1o, :32].reshape(N, H1, W1o, 32)

    # ---- maxpool k3 s2 p1 (fused into conv2's patch loader) ----
    xp = _maxpool_nhwc(x1, 3, 2, 1)                         # [N, H2, W2, 32]
    H2, W2 = xp.shape[1], xp.shape[2]

    # ---- conv2: CoordConv(32->32, k3 s1 p1) + ReLU (pool partials fused) ----
    w2 = params['conv2_w']                                  # [32, 34, 3, 3]
    b2map = (_xla_conv_nhwc(_coord_channels(H2, W2), w2[:, 32:], 1, 1)[0]
             + params['conv2_b']).reshape(H2 * W2, 32)
    c2, psum2, _ = conv_block(xp, w2[:, :32], b2map, stride=1, pad=1)
    hidden = c2[:, :H2 * W2, :32].reshape(N, H2, W2, 32)

    # ---- conv3 (32->64, k3 s2 p1) + ReLU, per-channel bias in-kernel ----
    c3, _, (H3, W3) = conv_block(hidden, params['conv3_w'], params['conv3_b'],
                                 stride=2, pad=1)
    x3 = c3[:, :H3 * W3, :64].reshape(N, H3, W3, 64)

    # ---- conv4 (64->64, k3 s2 p1) + ReLU, per-channel bias in-kernel ----
    c4, psum4, (H4, W4) = conv_block(x3, params['conv4_w'], params['conv4_b'],
                                     stride=2, pad=1)
    final_conv = c4[:, :H4 * W4, :64].reshape(N, H4, W4, 64)

    # ---- adaptive avg-pools from fused per-tile partial sums (tiny reduce) ----
    pooled2 = psum2.sum(axis=0)[:, 0, :32] / float(H2 * W2)
    pooled4 = psum4.sum(axis=0)[:, 0, :64] / float(H4 * W4)

    # ---- FC over the whole batch in one Pallas step ----
    logits = fc_block(pooled4, params['fc_w'], params['fc_b'], num_classes)

    return {
        'final_conv': jnp.transpose(final_conv, (0, 3, 1, 2)),   # NCHW
        'pooled2': pooled2,
        'pooled4': pooled4,
        'hidden': jnp.transpose(hidden, (0, 3, 1, 2)),           # NCHW
        'before_logits': pooled4,
        'logits': logits,
    }


# ----------------------------- Pure-XLA reference (validation only) ---------

def reference_forward(params, x_nchw):
    x = jnp.transpose(x_nchw, (0, 2, 3, 1)).astype(jnp.float32)
    eps = 1e-5
    scale = params['bn0_gamma'] / jnp.sqrt(params['bn0_var'] + eps)
    shift = params['bn0_beta'] - params['bn0_mean'] * scale
    x = x * scale + shift

    def coordconv(x, w, b, pad):
        n, h, wdt, _ = x.shape
        coords = jnp.broadcast_to(_coord_channels(h, wdt), (n, h, wdt, 2))
        return _xla_conv_nhwc(jnp.concatenate([x, coords], -1), w, 1, pad) + b

    x = jnp.maximum(coordconv(x, params['conv1_w'], params['conv1_b'], 2), 0.0)
    x = _maxpool_nhwc(x, 3, 2, 1)
    x = jnp.maximum(coordconv(x, params['conv2_w'], params['conv2_b'], 1), 0.0)
    hidden = x
    pooled2 = jnp.mean(x, axis=(1, 2))
    x = jnp.maximum(_xla_conv_nhwc(x, params['conv3_w'], 2, 1)
                    + params['conv3_b'], 0.0)
    x = jnp.maximum(_xla_conv_nhwc(x, params['conv4_w'], 2, 1)
                    + params['conv4_b'], 0.0)
    final_conv = x
    pooled4 = jnp.mean(x, axis=(1, 2))
    logits = pooled4 @ params['fc_w'].T + params['fc_b']
    return {
        'final_conv': jnp.transpose(final_conv, (0, 3, 1, 2)),
        'pooled2': pooled2,
        'pooled4': pooled4,
        'hidden': jnp.transpose(hidden, (0, 3, 1, 2)),
        'before_logits': pooled4,
        'logits': logits,
    }


# ----------------------------- main -----------------------------

if __name__ == "__main__":
    key = jax.random.PRNGKey(0)
    kp, kx = jax.random.split(key)
    params = init_params(kp, num_classes=10)
    x = jax.random.normal(kx, (2, 3, 16, 16), jnp.float32)   # NCHW like PyTorch

    out = jax.block_until_ready(jax.jit(forward)(params, x))

    # shape sanity checks matching the PyTorch module on 16x16 input
    assert out['hidden'].shape == (2, 32, 8, 8)
    assert out['pooled2'].shape == (2, 32)
    assert out['final_conv'].shape == (2, 64, 2, 2)
    assert out['pooled4'].shape == (2, 64)
    assert out['before_logits'].shape == (2, 64)
    assert out['logits'].shape == (2, 10)
    assert all(bool(jnp.isfinite(v.astype(jnp.float32)).all()) for v in out.values())

    # numerical check against a pure-XLA f32 reference (bf16 MXU tolerance)
    ref = jax.block_until_ready(jax.jit(reference_forward)(params, x))
    for name in out:
        assert bool(jnp.allclose(out[name].astype(jnp.float32), ref[name],
                                 rtol=5e-2, atol=5e-2)), name

    print("KERNEL_OK")
</pallas_src>

<mosaic_0001>
module attributes {stable_mosaic.version = 11 : i64} {
  func.func @_conv_mm_kernel(%arg0: i32, %arg1: i32, %arg2: memref<1x256x128xbf16, #tpu.memory_space<vmem>>, %arg3: memref<128x128xbf16, #tpu.memory_space<vmem>>, %arg4: memref<256x128xbf16, #tpu.memory_space<vmem>>, %arg5: memref<1x256x128xbf16, #tpu.memory_space<vmem>>, %arg6: memref<1x1x1x128xf32, #tpu.memory_space<vmem>>) attributes {dimension_semantics = [#tpu.dimension_semantics<parallel>, #tpu.dimension_semantics<parallel>], iteration_bounds = array<i64: 1, 2>, scalar_prefetch = 0 : i64, scratch_operands = 0 : i64, tpu.core_type = #tpu.core_type<tc>, window_params = [{transform_indices = @transform_0, window_bounds = array<i64: 1, 256, 128>}, {pipeline_mode = #tpu.pipeline_mode<synchronous>, transform_indices = @transform_1, window_bounds = array<i64: 128, 128>}, {transform_indices = @transform_2, window_bounds = array<i64: 256, 128>}, {transform_indices = @transform_3, window_bounds = array<i64: 1, 256, 128>}, {transform_indices = @transform_4, window_bounds = array<i64: 1, 1, 1, 128>}]} {
    %c0 = arith.constant 0 : index
    %c0_0 = arith.constant 0 : index
    %c0_1 = arith.constant 0 : index
    %0 = vector.load %arg2[%c0, %c0_0, %c0_1] : memref<1x256x128xbf16, #tpu.memory_space<vmem>>, vector<1x256x128xbf16>
    %1 = vector.shape_cast %0 : vector<1x256x128xbf16> to vector<256x128xbf16>
    %c0_2 = arith.constant 0 : index
    %c0_3 = arith.constant 0 : index
    %2 = vector.load %arg3[%c0_2, %c0_3] : memref<128x128xbf16, #tpu.memory_space<vmem>>, vector<128x128xbf16>
    %cst = arith.constant dense<0.000000e+00> : vector<256x128xf32>
    %3 = tpu.matmul %1, %2, %cst {dimension_numbers = #tpu.dot_dimension_numbers<[1], [0], [0], [1], [0, 0, 1, 1], [], []>} : vector<256x128xbf16>, vector<128x128xbf16>, vector<256x128xf32> -> vector<256x128xf32>
    %c0_4 = arith.constant 0 : index
    %c0_5 = arith.constant 0 : index
    %4 = vector.load %arg4[%c0_4, %c0_5] : memref<256x128xbf16, #tpu.memory_space<vmem>>, vector<256x128xbf16>
    %5 = arith.extf %4 : vector<256x128xbf16> to vector<256x128xf32>
    %6 = arith.addf %3, %5 : vector<256x128xf32>
    %cst_6 = arith.constant 0.000000e+00 : f32
    %7 = vector.broadcast %cst_6 : f32 to vector<256x128xf32>
    %8 = arith.maximumf %6, %7 : vector<256x128xf32>
    %9 = arith.truncf %8 : vector<256x128xf32> to vector<256x128xbf16>
    %c0_7 = arith.constant 0 : index
    %c0_8 = arith.constant 0 : index
    %c0_9 = arith.constant 0 : index
    %10 = vector.load %arg5[%c0_7, %c0_8, %c0_9] : memref<1x256x128xbf16, #tpu.memory_space<vmem>>, vector<1x256x128xbf16>
    %11 = vector.shape_cast %10 : vector<1x256x128xbf16> to vector<256x128xbf16>
    %12 = vector.shape_cast %9 : vector<256x128xbf16> to vector<1x256x128xbf16>
    tpu.vector_store %arg5[%c0_7, %c0_8, %c0_9], %12 {strides = array<i32>} : memref<1x256x128xbf16, #tpu.memory_space<vmem>>, vector<1x256x128xbf16>,
    %13 = tpu.iota {dimensions = array<i32: 0>} : vector<256x128xi32>
    %c256_i32 = arith.constant 256 : i32
    %14 = arith.muli %arg0, %c256_i32 : i32
    %15 = vector.broadcast %14 : i32 to vector<256x128xi32>
    %16 = arith.addi %13, %15 : vector<256x128xi32>
    %c256_i32_10 = arith.constant 256 : i32
    %17 = vector.broadcast %c256_i32_10 : i32 to vector<256x128xi32>
    %18 = arith.cmpi slt, %16, %17 : vector<256x128xi32>
    %cst_11 = arith.constant 0.000000e+00 : f32
    %19 = vector.broadcast %cst_11 : f32 to vector<256x128xf32>
    %20 = arith.select %18, %8, %19 : vector<256x128xi1>, vector<256x128xf32>
    %cst_12 = arith.constant dense<0.000000e+00> : vector<128xf32>
    %21 = vector.multi_reduction <add>, %20, %cst_12 [0] : vector<256x128xf32> to vector<128xf32>
    %22 = vector.shape_cast %21 : vector<128xf32> to vector<1x128xf32>
    %c0_13 = arith.constant 0 : index
    %c0_14 = arith.constant 0 : index
    %c0_15 = arith.constant 0 : index
    %c0_16 = arith.constant 0 : index
    %23 = vector.load %arg6[%c0_13, %c0_14, %c0_15, %c0_16] : memref<1x1x1x128xf32, #tpu.memory_space<vmem>>, vector<1x1x1x128xf32>
    %24 = vector.shape_cast %23 : vector<1x1x1x128xf32> to vector<1x128xf32>
    %25 = vector.shape_cast %22 : vector<1x128xf32> to vector<1x1x1x128xf32>
    tpu.vector_store %arg6[%c0_13, %c0_14, %c0_15, %c0_16], %25 {strides = array<i32>} : memref<1x1x1x128xf32, #tpu.memory_space<vmem>>, vector<1x1x1x128xf32>,
    return
  }
  func.func @transform_0(%arg0: i32, %arg1: i32) -> (i32, i32, i32) {
    %c0_i32 = arith.constant 0 : i32
    %c0_i32_0 = arith.constant 0 : i32
    return %arg1, %arg0, %c0_i32 : i32, i32, i32
  }
  func.func @transform_1(%arg0: i32, %arg1: i32) -> (i32, i32) {
    %c0_i32 = arith.constant 0 : i32
    %c0_i32_0 = arith.constant 0 : i32
    %c0_i32_1 = arith.constant 0 : i32
    return %c0_i32, %c0_i32_0 : i32, i32
  }
  func.func @transform_2(%arg0: i32, %arg1: i32) -> (i32, i32) {
    %c0_i32 = arith.constant 0 : i32
    %c0_i32_0 = arith.constant 0 : i32
    return %arg0, %c0_i32 : i32, i32
  }
  func.func @transform_3(%arg0: i32, %arg1: i32) -> (i32, i32, i32) {
    %c0_i32 = arith.constant 0 : i32
    %c0_i32_0 = arith.constant 0 : i32
    return %arg1, %arg0, %c0_i32 : i32, i32, i32
  }
  func.func @transform_4(%arg0: i32, %arg1: i32) -> (i32, i32, i32, i32) {
    %c0_i32 = arith.constant 0 : i32
    %c0_i32_0 = arith.constant 0 : i32
    %c0_i32_1 = arith.constant 0 : i32
    return %arg0, %arg1, %c0_i32, %c0_i32_0 : i32, i32, i32, i32
  }
}

module attributes {stable_mosaic.version = 11 : i64} {
  func.func @_conv_mm_kernel(%arg0: i32, %arg1: i32, %arg2: memref<1x64x384xbf16, #tpu.memory_space<vmem>>, %arg3: memref<384x128xbf16, #tpu.memory_space<vmem>>, %arg4: memref<64x128xbf16, #tpu.memory_space<vmem>>, %arg5: memref<1x64x128xbf16, #tpu.memory_space<vmem>>, %arg6: memref<1x1x1x128xf32, #tpu.memory_space<vmem>>) attributes {dimension_semantics = [#tpu.dimension_semantics<parallel>, #tpu.dimension_semantics<parallel>], iteration_bounds = array<i64: 1, 2>, scalar_prefetch = 0 : i64, scratch_operands = 0 : i64, tpu.core_type = #tpu.core_type<tc>, window_params = [{transform_indices = @transform_0, window_bounds = array<i64: 1, 64, 384>}, {pipeline_mode = #tpu.pipeline_mode<synchronous>, transform_indices = @transform_1, window_bounds = array<i64: 384, 128>}, {transform_indices = @transform_2, window_bounds = array<i64: 64, 128>}, {transform_indices = @transform_3, window_bounds = array<i64: 1, 64, 128>}, {transform_indices = @transform_4, window_bounds = array<i64: 1, 1, 1, 128>}]} {
    %c0 = arith.constant 0 : index
    %c0_0 = arith.constant 0 : index
    %c0_1 = arith.constant 0 : index
    %0 = vector.load %arg2[%c0, %c0_0, %c0_1] : memref<1x64x384xbf16, #tpu.memory_space<vmem>>, vector<1x64x384xbf16>
    %1 = vector.shape_cast %0 : vector<1x64x384xbf16> to vector<64x384xbf16>
    %c0_2 = arith.constant 0 : index
    %c0_3 = arith.constant 0 : index
    %2 = vector.load %arg3[%c0_2, %c0_3] : memref<384x128xbf16, #tpu.memory_space<vmem>>, vector<384x128xbf16>
    %cst = arith.constant dense<0.000000e+00> : vector<64x128xf32>
    %3 = tpu.matmul %1, %2, %cst {dimension_numbers = #tpu.dot_dimension_numbers<[1], [0], [0], [1], [0, 0, 1, 1], [], []>} : vector<64x384xbf16>, vector<384x128xbf16>, vector<64x128xf32> -> vector<64x128xf32>
    %c0_4 = arith.constant 0 : index
    %c0_5 = arith.constant 0 : index
    %4 = vector.load %arg4[%c0_4, %c0_5] : memref<64x128xbf16, #tpu.memory_space<vmem>>, vector<64x128xbf16>
    %5 = arith.extf %4 : vector<64x128xbf16> to vector<64x128xf32>
    %6 = arith.addf %3, %5 : vector<64x128xf32>
    %cst_6 = arith.constant 0.000000e+00 : f32
    %7 = vector.broadcast %cst_6 : f32 to vector<64x128xf32>
    %8 = arith.maximumf %6, %7 : vector<64x128xf32>
    %9 = arith.truncf %8 : vector<64x128xf32> to vector<64x128xbf16>
    %c0_7 = arith.constant 0 : index
    %c0_8 = arith.constant 0 : index
    %c0_9 = arith.constant 0 : index
    %10 = vector.load %arg5[%c0_7, %c0_8, %c0_9] : memref<1x64x128xbf16, #tpu.memory_space<vmem>>, vector<1x64x128xbf16>
    %11 = vector.shape_cast %10 : vector<1x64x128xbf16> to vector<64x128xbf16>
    %12 = vector.shape_cast %9 : vector<64x128xbf16> to vector<1x64x128xbf16>
    tpu.vector_store %arg5[%c0_7, %c0_8, %c0_9], %12 {strides = array<i32>} : memref<1x64x128xbf16, #tpu.memory_space<vmem>>, vector<1x64x128xbf16>,
    %13 = tpu.iota {dimensions = array<i32: 0>} : vector<64x128xi32>
    %c64_i32 = arith.constant 64 : i32
    %14 = arith.muli %arg0, %c64_i32 : i32
    %15 = vector.broadcast %14 : i32 to vector<64x128xi32>
    %16 = arith.addi %13, %15 : vector<64x128xi32>
    %c64_i32_10 = arith.constant 64 : i32
    %17 = vector.broadcast %c64_i32_10 : i32 to vector<64x128xi32>
    %18 = arith.cmpi slt, %16, %17 : vector<64x128xi32>
    %cst_11 = arith.constant 0.000000e+00 : f32
    %19 = vector.broadcast %cst_11 : f32 to vector<64x128xf32>
    %20 = arith.select %18, %8, %19 : vector<64x128xi1>, vector<64x128xf32>
    %cst_12 = arith.constant dense<0.000000e+00> : vector<128xf32>
    %21 = vector.multi_reduction <add>, %20, %cst_12 [0] : vector<64x128xf32> to vector<128xf32>
    %22 = vector.shape_cast %21 : vector<128xf32> to vector<1x128xf32>
    %c0_13 = arith.constant 0 : index
    %c0_14 = arith.constant 0 : index
    %c0_15 = arith.constant 0 : index
    %c0_16 = arith.constant 0 : index
    %23 = vector.load %arg6[%c0_13, %c0_14, %c0_15, %c0_16] : memref<1x1x1x128xf32, #tpu.memory_space<vmem>>, vector<1x1x1x128xf32>
    %24 = vector.shape_cast %23 : vector<1x1x1x128xf32> to vector<1x128xf32>
    %25 = vector.shape_cast %22 : vector<1x128xf32> to vector<1x1x1x128xf32>
    tpu.vector_store %arg6[%c0_13, %c0_14, %c0_15, %c0_16], %25 {strides = array<i32>} : memref<1x1x1x128xf32, #tpu.memory_space<vmem>>, vector<1x1x1x128xf32>,
    return
  }
  func.func @transform_0(%arg0: i32, %arg1: i32) -> (i32, i32, i32) {
    %c0_i32 = arith.constant 0 : i32
    %c0_i32_0 = arith.constant 0 : i32
    return %arg1, %arg0, %c0_i32 : i32, i32, i32
  }
  func.func @transform_1(%arg0: i32, %arg1: i32) -> (i32, i32) {
    %c0_i32 = arith.constant 0 : i32
    %c0_i32_0 = arith.constant 0 : i32
    %c0_i32_1 = arith.constant 0 : i32
    return %c0_i32, %c0_i32_0 : i32, i32
  }
  func.func @transform_2(%arg0: i32, %arg1: i32) -> (i32, i32) {
    %c0_i32 = arith.constant 0 : i32
    %c0_i32_0 = arith.constant 0 : i32
    return %arg0, %c0_i32 : i32, i32
  }
  func.func @transform_3(%arg0: i32, %arg1: i32) -> (i32, i32, i32) {
    %c0_i32 = arith.constant 0 : i32
    %c0_i32_0 = arith.constant 0 : i32
    return %arg1, %arg0, %c0_i32 : i32, i32, i32
  }
  func.func @transform_4(%arg0: i32, %arg1: i32) -> (i32, i32, i32, i32) {
    %c0_i32 = arith.constant 0 : i32
    %c0_i32_0 = arith.constant 0 : i32
    %c0_i32_1 = arith.constant 0 : i32
    return %arg0, %arg1, %c0_i32, %c0_i32_0 : i32, i32, i32, i32
  }
}

module attributes {stable_mosaic.version = 11 : i64} {
  func.func @_conv_mm_kernel(%arg0: i32, %arg1: i32, %arg2: memref<1x16x384xbf16, #tpu.memory_space<vmem>>, %arg3: memref<384x128xbf16, #tpu.memory_space<vmem>>, %arg4: memref<1x128xf32, #tpu.memory_space<vmem>>, %arg5: memref<1x16x128xbf16, #tpu.memory_space<vmem>>, %arg6: memref<1x1x1x128xf32, #tpu.memory_space<vmem>>) attributes {dimension_semantics = [#tpu.dimension_semantics<parallel>, #tpu.dimension_semantics<parallel>], iteration_bounds = array<i64: 1, 2>, scalar_prefetch = 0 : i64, scratch_operands = 0 : i64, tpu.core_type = #tpu.core_type<tc>, window_params = [{transform_indices = @transform_0, window_bounds = array<i64: 1, 16, 384>}, {pipeline_mode = #tpu.pipeline_mode<synchronous>, transform_indices = @transform_1, window_bounds = array<i64: 384, 128>}, {pipeline_mode = #tpu.pipeline_mode<synchronous>, transform_indices = @transform_2, window_bounds = array<i64: 1, 128>}, {transform_indices = @transform_3, window_bounds = array<i64: 1, 16, 128>}, {transform_indices = @transform_4, window_bounds = array<i64: 1, 1, 1, 128>}]} {
    %c0 = arith.constant 0 : index
    %c0_0 = arith.constant 0 : index
    %c0_1 = arith.constant 0 : index
    %0 = vector.load %arg2[%c0, %c0_0, %c0_1] : memref<1x16x384xbf16, #tpu.memory_space<vmem>>, vector<1x16x384xbf16>
    %1 = vector.shape_cast %0 : vector<1x16x384xbf16> to vector<16x384xbf16>
    %c0_2 = arith.constant 0 : index
    %c0_3 = arith.constant 0 : index
    %2 = vector.load %arg3[%c0_2, %c0_3] : memref<384x128xbf16, #tpu.memory_space<vmem>>, vector<384x128xbf16>
    %cst = arith.constant dense<0.000000e+00> : vector<16x128xf32>
    %3 = tpu.matmul %1, %2, %cst {dimension_numbers = #tpu.dot_dimension_numbers<[1], [0], [0], [1], [0, 0, 1, 1], [], []>} : vector<16x384xbf16>, vector<384x128xbf16>, vector<16x128xf32> -> vector<16x128xf32>
    %c0_4 = arith.constant 0 : index
    %c0_5 = arith.constant 0 : index
    %4 = vector.load %arg4[%c0_4, %c0_5] : memref<1x128xf32, #tpu.memory_space<vmem>>, vector<1x128xf32>
    %5 = vector.broadcast %4 : vector<1x128xf32> to vector<16x128xf32>
    %6 = arith.addf %3, %5 : vector<16x128xf32>
    %cst_6 = arith.constant 0.000000e+00 : f32
    %7 = vector.broadcast %cst_6 : f32 to vector<16x128xf32>
    %8 = arith.maximumf %6, %7 : vector<16x128xf32>
    %9 = arith.truncf %8 : vector<16x128xf32> to vector<16x128xbf16>
    %c0_7 = arith.constant 0 : index
    %c0_8 = arith.constant 0 : index
    %c0_9 = arith.constant 0 : index
    %10 = vector.load %arg5[%c0_7, %c0_8, %c0_9] : memref<1x16x128xbf16, #tpu.memory_space<vmem>>, vector<1x16x128xbf16>
    %11 = vector.shape_cast %10 : vector<1x16x128xbf16> to vector<16x128xbf16>
    %12 = vector.shape_cast %9 : vector<16x128xbf16> to vector<1x16x128xbf16>
    tpu.vector_store %arg5[%c0_7, %c0_8, %c0_9], %12 {strides = array<i32>} : memref<1x16x128xbf16, #tpu.memory_space<vmem>>, vector<1x16x128xbf16>,
    %13 = tpu.iota {dimensions = array<i32: 0>} : vector<16x128xi32>
    %c16_i32 = arith.constant 16 : i32
    %14 = arith.muli %arg0, %c16_i32 : i32
    %15 = vector.broadcast %14 : i32 to vector<16x128xi32>
    %16 = arith.addi %13, %15 : vector<16x128xi32>
    %c16_i32_10 = arith.constant 16 : i32
    %17 = vector.broadcast %c16_i32_10 : i32 to vector<16x128xi32>
    %18 = arith.cmpi slt, %16, %17 : vector<16x128xi32>
    %cst_11 = arith.constant 0.000000e+00 : f32
    %19 = vector.broadcast %cst_11 : f32 to vector<16x128xf32>
    %20 = arith.select %18, %8, %19 : vector<16x128xi1>, vector<16x128xf32>
    %cst_12 = arith.constant dense<0.000000e+00> : vector<128xf32>
    %21 = vector.multi_reduction <add>, %20, %cst_12 [0] : vector<16x128xf32> to vector<128xf32>
    %22 = vector.shape_cast %21 : vector<128xf32> to vector<1x128xf32>
    %c0_13 = arith.constant 0 : index
    %c0_14 = arith.constant 0 : index
    %c0_15 = arith.constant 0 : index
    %c0_16 = arith.constant 0 : index
    %23 = vector.load %arg6[%c0_13, %c0_14, %c0_15, %c0_16] : memref<1x1x1x128xf32, #tpu.memory_space<vmem>>, vector<1x1x1x128xf32>
    %24 = vector.shape_cast %23 : vector<1x1x1x128xf32> to vector<1x128xf32>
    %25 = vector.shape_cast %22 : vector<1x128xf32> to vector<1x1x1x128xf32>
    tpu.vector_store %arg6[%c0_13, %c0_14, %c0_15, %c0_16], %25 {strides = array<i32>} : memref<1x1x1x128xf32, #tpu.memory_space<vmem>>, vector<1x1x1x128xf32>,
    return
  }
  func.func @transform_0(%arg0: i32, %arg1: i32) -> (i32, i32, i32) {
    %c0_i32 = arith.constant 0 : i32
    %c0_i32_0 = arith.constant 0 : i32
    return %arg1, %arg0, %c0_i32 : i32, i32, i32
  }
  func.func @transform_1(%arg0: i32, %arg1: i32) -> (i32, i32) {
    %c0_i32 = arith.constant 0 : i32
    %c0_i32_0 = arith.constant 0 : i32
    %c0_i32_1 = arith.constant 0 : i32
    return %c0_i32, %c0_i32_0 : i32, i32
  }
  func.func @transform_2(%arg0: i32, %arg1: i32) -> (i32, i32) {
    %c0_i32 = arith.constant 0 : i32
    %c0_i32_0 = arith.constant 0 : i32
    %c0_i32_1 = arith.constant 0 : i32
    return %c0_i32, %c0_i32_0 : i32, i32
  }
  func.func @transform_3(%arg0: i32, %arg1: i32) -> (i32, i32, i32) {
    %c0_i32 = arith.constant 0 : i32
    %c0_i32_0 = arith.constant 0 : i32
    return %arg1, %arg0, %c0_i32 : i32, i32, i32
  }
  func.func @transform_4(%arg0: i32, %arg1: i32) -> (i32, i32, i32, i32) {
    %c0_i32 = arith.constant 0 : i32
    %c0_i32_0 = arith.constant 0 : i32
    %c0_i32_1 = arith.constant 0 : i32
    return %arg0, %arg1, %c0_i32, %c0_i32_0 : i32, i32, i32, i32
  }
}

module attributes {stable_mosaic.version = 11 : i64} {
  func.func @_fc_kernel(%arg0: i32, %arg1: memref<8x128xf32, #tpu.memory_space<vmem>>, %arg2: memref<128x128xf32, #tpu.memory_space<vmem>>, %arg3: memref<1x128xf32, #tpu.memory_space<vmem>>, %arg4: memref<8x128xf32, #tpu.memory_space<vmem>>) attributes {dimension_semantics = [#tpu.dimension_semantics<arbitrary>], iteration_bounds = array<i64: 1>, scalar_prefetch = 0 : i64, scratch_operands = 0 : i64, tpu.core_type = #tpu.core_type<tc>, window_params = [{pipeline_mode = #tpu.pipeline_mode<synchronous>, transform_indices = @transform_0, window_bounds = array<i64: 8, 128>}, {pipeline_mode = #tpu.pipeline_mode<synchronous>, transform_indices = @transform_1, window_bounds = array<i64: 128, 128>}, {pipeline_mode = #tpu.pipeline_mode<synchronous>, transform_indices = @transform_2, window_bounds = array<i64: 1, 128>}, {pipeline_mode = #tpu.pipeline_mode<synchronous>, transform_indices = @transform_3, window_bounds = array<i64: 8, 128>}]} {
    %c0 = arith.constant 0 : index
    %c0_0 = arith.constant 0 : index
    %0 = vector.load %arg1[%c0, %c0_0] : memref<8x128xf32, #tpu.memory_space<vmem>>, vector<8x128xf32>
    %c0_1 = arith.constant 0 : index
    %c0_2 = arith.constant 0 : index
    %1 = vector.load %arg2[%c0_1, %c0_2] : memref<128x128xf32, #tpu.memory_space<vmem>>, vector<128x128xf32>
    %cst = arith.constant dense<0.000000e+00> : vector<8x128xf32>
    %2 = tpu.matmul %0, %1, %cst {dimension_numbers = #tpu.dot_dimension_numbers<[1], [0], [0], [1], [0, 0, 1, 1], [], []>} : vector<8x128xf32>, vector<128x128xf32>, vector<8x128xf32> -> vector<8x128xf32>
    %c0_3 = arith.constant 0 : index
    %c0_4 = arith.constant 0 : index
    %3 = vector.load %arg3[%c0_3, %c0_4] : memref<1x128xf32, #tpu.memory_space<vmem>>, vector<1x128xf32>
    %4 = vector.broadcast %3 : vector<1x128xf32> to vector<8x128xf32>
    %5 = arith.addf %2, %4 : vector<8x128xf32>
    %c0_5 = arith.constant 0 : index
    %c0_6 = arith.constant 0 : index
    %6 = vector.load %arg4[%c0_5, %c0_6] : memref<8x128xf32, #tpu.memory_space<vmem>>, vector<8x128xf32>
    tpu.vector_store %arg4[%c0_5, %c0_6], %5 {strides = array<i32>} : memref<8x128xf32, #tpu.memory_space<vmem>>, vector<8x128xf32>,
    return
  }
  func.func @transform_0(%arg0: i32) -> (i32, i32) {
    %c0_i32 = arith.constant 0 : i32
    %c0_i32_0 = arith.constant 0 : i32
    %c0_i32_1 = arith.constant 0 : i32
    return %c0_i32, %c0_i32_0 : i32, i32
  }
  func.func @transform_1(%arg0: i32) -> (i32, i32) {
    %c0_i32 = arith.constant 0 : i32
    %c0_i32_0 = arith.constant 0 : i32
    %c0_i32_1 = arith.constant 0 : i32
    return %c0_i32, %c0_i32_0 : i32, i32
  }
  func.func @transform_2(%arg0: i32) -> (i32, i32) {
    %c0_i32 = arith.constant 0 : i32
    %c0_i32_0 = arith.constant 0 : i32
    %c0_i32_1 = arith.constant 0 : i32
    return %c0_i32, %c0_i32_0 : i32, i32
  }
  func.func @transform_3(%arg0: i32) -> (i32, i32) {
    %c0_i32 = arith.constant 0 : i32
    %c0_i32_0 = arith.constant 0 : i32
    %c0_i32_1 = arith.constant 0 : i32
    return %c0_i32, %c0_i32_0 : i32, i32
  }
}

module attributes {stable_mosaic.version = 11 : i64} {
  func.func @_conv_mm_kernel(%arg0: i32, %arg1: i32, %arg2: memref<1x8x640xbf16, #tpu.memory_space<vmem>>, %arg3: memref<640x128xbf16, #tpu.memory_space<vmem>>, %arg4: memref<1x128xf32, #tpu.memory_space<vmem>>, %arg5: memref<1x8x128xbf16, #tpu.memory_space<vmem>>, %arg6: memref<1x1x1x128xf32, #tpu.memory_space<vmem>>) attributes {dimension_semantics = [#tpu.dimension_semantics<parallel>, #tpu.dimension_semantics<parallel>], iteration_bounds = array<i64: 1, 2>, scalar_prefetch = 0 : i64, scratch_operands = 0 : i64, tpu.core_type = #tpu.core_type<tc>, window_params = [{transform_indices = @transform_0, window_bounds = array<i64: 1, 8, 640>}, {pipeline_mode = #tpu.pipeline_mode<synchronous>, transform_indices = @transform_1, window_bounds = array<i64: 640, 128>}, {pipeline_mode = #tpu.pipeline_mode<synchronous>, transform_indices = @transform_2, window_bounds = array<i64: 1, 128>}, {transform_indices = @transform_3, window_bounds = array<i64: 1, 8, 128>}, {transform_indices = @transform_4, window_bounds = array<i64: 1, 1, 1, 128>}]} {
    %c0 = arith.constant 0 : index
    %c0_0 = arith.constant 0 : index
    %c0_1 = arith.constant 0 : index
    %0 = vector.load %arg2[%c0, %c0_0, %c0_1] : memref<1x8x640xbf16, #tpu.memory_space<vmem>>, vector<1x8x640xbf16>
    %1 = vector.shape_cast %0 : vector<1x8x640xbf16> to vector<8x640xbf16>
    %c0_2 = arith.constant 0 : index
    %c0_3 = arith.constant 0 : index
    %2 = vector.load %arg3[%c0_2, %c0_3] : memref<640x128xbf16, #tpu.memory_space<vmem>>, vector<640x128xbf16>
    %cst = arith.constant dense<0.000000e+00> : vector<8x128xf32>
    %3 = tpu.matmul %1, %2, %cst {dimension_numbers = #tpu.dot_dimension_numbers<[1], [0], [0], [1], [0, 0, 1, 1], [], []>} : vector<8x640xbf16>, vector<640x128xbf16>, vector<8x128xf32> -> vector<8x128xf32>
    %c0_4 = arith.constant 0 : index
    %c0_5 = arith.constant 0 : index
    %4 = vector.load %arg4[%c0_4, %c0_5] : memref<1x128xf32, #tpu.memory_space<vmem>>, vector<1x128xf32>
    %5 = vector.broadcast %4 : vector<1x128xf32> to vector<8x128xf32>
    %6 = arith.addf %3, %5 : vector<8x128xf32>
    %cst_6 = arith.constant 0.000000e+00 : f32
    %7 = vector.broadcast %cst_6 : f32 to vector<8x128xf32>
    %8 = arith.maximumf %6, %7 : vector<8x128xf32>
    %9 = arith.truncf %8 : vector<8x128xf32> to vector<8x128xbf16>
    %c0_7 = arith.constant 0 : index
    %c0_8 = arith.constant 0 : index
    %c0_9 = arith.constant 0 : index
    %10 = vector.load %arg5[%c0_7, %c0_8, %c0_9] : memref<1x8x128xbf16, #tpu.memory_space<vmem>>, vector<1x8x128xbf16>
    %11 = vector.shape_cast %10 : vector<1x8x128xbf16> to vector<8x128xbf16>
    %12 = vector.shape_cast %9 : vector<8x128xbf16> to vector<1x8x128xbf16>
    tpu.vector_store %arg5[%c0_7, %c0_8, %c0_9], %12 {strides = array<i32>} : memref<1x8x128xbf16, #tpu.memory_space<vmem>>, vector<1x8x128xbf16>,
    %13 = tpu.iota {dimensions = array<i32: 0>} : vector<8x128xi32>
    %c8_i32 = arith.constant 8 : i32
    %14 = arith.muli %arg0, %c8_i32 : i32
    %15 = vector.broadcast %14 : i32 to vector<8x128xi32>
    %16 = arith.addi %13, %15 : vector<8x128xi32>
    %c4_i32 = arith.constant 4 : i32
    %17 = vector.broadcast %c4_i32 : i32 to vector<8x128xi32>
    %18 = arith.cmpi slt, %16, %17 : vector<8x128xi32>
    %cst_10 = arith.constant 0.000000e+00 : f32
    %19 = vector.broadcast %cst_10 : f32 to vector<8x128xf32>
    %20 = arith.select %18, %8, %19 : vector<8x128xi1>, vector<8x128xf32>
    %cst_11 = arith.constant dense<0.000000e+00> : vector<128xf32>
    %21 = vector.multi_reduction <add>, %20, %cst_11 [0] : vector<8x128xf32> to vector<128xf32>
    %22 = vector.shape_cast %21 : vector<128xf32> to vector<1x128xf32>
    %c0_12 = arith.constant 0 : index
    %c0_13 = arith.constant 0 : index
    %c0_14 = arith.constant 0 : index
    %c0_15 = arith.constant 0 : index
    %23 = vector.load %arg6[%c0_12, %c0_13, %c0_14, %c0_15] : memref<1x1x1x128xf32, #tpu.memory_space<vmem>>, vector<1x1x1x128xf32>
    %24 = vector.shape_cast %23 : vector<1x1x1x128xf32> to vector<1x128xf32>
    %25 = vector.shape_cast %22 : vector<1x128xf32> to vector<1x1x1x128xf32>
    tpu.vector_store %arg6[%c0_12, %c0_13, %c0_14, %c0_15], %25 {strides = array<i32>} : memref<1x1x1x128xf32, #tpu.memory_space<vmem>>, vector<1x1x1x128xf32>,
    return
  }
  func.func @transform_0(%arg0: i32, %arg1: i32) -> (i32, i32, i32) {
    %c0_i32 = arith.constant 0 : i32
    %c0_i32_0 = arith.constant 0 : i32
    return %arg1, %arg0, %c0_i32 : i32, i32, i32
  }
  func.func @transform_1(%arg0: i32, %arg1: i32) -> (i32, i32) {
    %c0_i32 = arith.constant 0 : i32
    %c0_i32_0 = arith.constant 0 : i32
    %c0_i32_1 = arith.constant 0 : i32
    return %c0_i32, %c0_i32_0 : i32, i32
  }
  func.func @transform_2(%arg0: i32, %arg1: i32) -> (i32, i32) {
    %c0_i32 = arith.constant 0 : i32
    %c0_i32_0 = arith.constant 0 : i32
    %c0_i32_1 = arith.constant 0 : i32
    return %c0_i32, %c0_i32_0 : i32, i32
  }
  func.func @transform_3(%arg0: i32, %arg1: i32) -> (i32, i32, i32) {
    %c0_i32 = arith.constant 0 : i32
    %c0_i32_0 = arith.constant 0 : i32
    return %arg1, %arg0, %c0_i32 : i32, i32, i32
  }
  func.func @transform_4(%arg0: i32, %arg1: i32) -> (i32, i32, i32, i32) {
    %c0_i32 = arith.constant 0 : i32
    %c0_i32_0 = arith.constant 0 : i32
    %c0_i32_1 = arith.constant 0 : i32
    return %arg0, %arg1, %c0_i32, %c0_i32_0 : i32, i32, i32, i32
  }
}

</mosaic_0001>

<llo_original>
// kernel: forward.5
$region0: #{forward.5}
  #allocation0 [shape = 'u32[]', space=smem, size = 0x4, offset = 0x4, fixed_abs, tag = 'smem constant byte address 0x4 - core index']
  #allocation1 [shape = 'u32[144,128]{1,0:T(1,128)}', space=vmem, size = 0x12000, scoped, tag = 'internal scratch']
  %s0 = inlined_call_operand.vmem [shape: bf16[2,256,128], index: 0, kind: input, shape index: {}]
  %s1 = inlined_call_operand.vmem [shape: bf16[128,128], index: 1, kind: input, shape index: {}]
  %s2 = inlined_call_operand.vmem [shape: bf16[256,128], index: 2, kind: input, shape index: {}]
  %s3 = inlined_call_operand.vmem [shape: bf16[2,256,128], index: 3, kind: output, shape index: {0}]
  %s4 = inlined_call_operand.hbm [shape: f32[1,2,1,128], index: 4, kind: output, shape index: {1}]
  %5 = xla_tuple %s3, %s4
  %s6 = sld [smem:[#allocation0]]
  $region53: #{forward.5} parent=0
    _
  %s8 = ssub.s32 1, %s6
  %s9 = scalar_select 0, %s8, %s6
  $region1: #{forward.5} parent=0
    #allocation2 [shape = 'u8[1024]{0}', space=vmem, size = 0x400, scoped, tag = 'output window, operand 1']
    #allocation3 [shape = 's32[2]{0}', space=sflag, size = 0x8, scoped, tag = 'scoped memory for forward.5']
    %10 = vsyncpa [#allocation3], 0
    %s11 = scalar_lea.sflag [#allocation3], 1
    %12 = vsyncpa %s11, 0
    loop: start=0, step=1, limit=4
    $region2: #{forward.5} parent=1 // loop_pre_header
      _
    $region3: #{forward.5} parent=1 // loop_header
      %s14 = sphi 0, %s18
      %p15 = scmp.ge.s32.totalorder %s14, 4
      %s21 = sphi 0, %s33
      %s22 = sphi 0, %s29
      %s23 = sphi 0, %s21
      %s24 = sphi 0, %s22
      %s25 = sphi 0, %s23
      %s26 = sphi 0, %s24
      %s38 = sphi 0, %s40
      %s41 = sphi 0, %s38
      %s42 = sphi 0, %s41
      %s58 = sphi 0, %s42
      %s62 = sphi 0, %s62
      %s64 = sphi 0, %s62
      %s65 = sphi 0, %s64
      %s79 = sphi 0, %s65
      %s85 = sphi 0, %s87
      %s88 = sphi 0, %s85
      %s89 = sphi 0, %s88
      %s105 = sphi 0, %s89
      %s113 = sphi 0, %s115
      %s116 = sphi 0, %s113
      %s117 = sphi 0, %s116
      %s133 = sphi 0, %s117
      %s141 = sphi 0, %s143
      %s144 = sphi 0, %s141
      %s145 = sphi 0, %s144
      %s161 = sphi 0, %s145
    $region4: #{forward.5} parent=1 // loop_header_branch
      %17 = sbr.rel (%p15) target = $region8
    $region5: #{forward.5} parent=1 // loop_body
      %s19 = ssub.s32 %s14, 1
      %s20 = ssub.s32 %s14, 2
      %s27 = sadd.s32 1, %s22
      %p28 = scmp.ge.s32.totalorder %s27, 2
      %s29 = scalar_select %p28, 0, %s27
      %s30 = sadd.s32 1, %s21
      %s31 = scalar_select %p28, %s30, %s21
      %p32 = scmp.ge.s32.totalorder %s31, 1
      %s33 = scalar_select %p32, 0, %s31
      %s34 = ssub.s32 %s22, %s29
      %s35 = ssub.s32 %s21, %s33
      %s36 = sor.u32 %s34, %s35
      %p37 = scmp.eq.s32.totalorder %s36, 0
      %s39 = sadd.s32 %s38, 1
      %s40 = scalar_select %p37, %s38, %s39
      %p43 = pneg %p37
      %p44 = scmp.eq.s32.totalorder %s14, 1
      %p45 = por %p43, %p44
      %p46 = scmp.ne.s32.totalorder %s38, %s41
      %p47 = scmp.eq.s32.totalorder %s14, 0
      %p48 = por %p46, %p47
      %p49 = scmp.ne.s32.totalorder %s38, %s41
      %p50 = scmp.eq.s32.totalorder %s19, 1
      %p51 = por %p49, %p50
      %p52 = scmp.ne.s32.totalorder %s41, %s42
      %p53 = scmp.eq.s32.totalorder %s19, 0
      %p54 = por %p52, %p53
      %p55 = scmp.ne.s32.totalorder %s41, %s42
      %p56 = scmp.eq.s32.totalorder %s20, 1
      %p57 = por %p55, %p56
      %p59 = scmp.ne.s32.totalorder %s42, %s58
      %p60 = scmp.eq.s32.totalorder %s20, 0
      %p61 = por %p59, %p60
      %s63 = sadd.s32 %s62, 1
      %p66 = scmp.eq.s32.totalorder %s14, 1
      %p67 = scmp.ne.s32.totalorder %s62, %s64
      %p68 = scmp.eq.s32.totalorder %s14, 0
      %p69 = por %p67, %p68
      %p70 = scmp.ne.s32.totalorder %s62, %s64
      %p71 = scmp.eq.s32.totalorder %s19, 1
      %p72 = por %p70, %p71
      %p73 = scmp.ne.s32.totalorder %s64, %s65
      %p74 = scmp.eq.s32.totalorder %s19, 0
      %p75 = por %p73, %p74
      %p76 = scmp.ne.s32.totalorder %s64, %s65
      %p77 = scmp.eq.s32.totalorder %s20, 1
      %p78 = por %p76, %p77
      %p80 = scmp.ne.s32.totalorder %s65, %s79
      %p81 = scmp.eq.s32.totalorder %s20, 0
      %p82 = por %p80, %p81
      %s83 = ssub.s32 %s21, %s33
      %p84 = scmp.eq.s32.totalorder %s83, 0
      %s86 = sadd.s32 %s85, 1
      %s87 = scalar_select %p84, %s85, %s86
      %p90 = pneg %p84
      %p91 = scmp.eq.s32.totalorder %s14, 1
      %p92 = por %p90, %p91
      %p93 = scmp.ne.s32.totalorder %s85, %s88
      %p94 = scmp.eq.s32.totalorder %s14, 0
      %p95 = por %p93, %p94
      %p96 = scmp.ne.s32.totalorder %s85, %s88
      %p97 = scmp.eq.s32.totalorder %s19, 1
      %p98 = por %p96, %p97
      %p99 = scmp.ne.s32.totalorder %s88, %s89
      %p100 = scmp.eq.s32.totalorder %s19, 0
      %p101 = por %p99, %p100
      %p102 = scmp.ne.s32.totalorder %s88, %s89
      %p103 = scmp.eq.s32.totalorder %s20, 1
      %p104 = por %p102, %p103
      %p106 = scmp.ne.s32.totalorder %s89, %s105
      %p107 = scmp.eq.s32.totalorder %s20, 0
      %p108 = por %p106, %p107
      %s109 = ssub.s32 %s22, %s29
      %s110 = ssub.s32 %s21, %s33
      %s111 = sor.u32 %s109, %s110
      %p112 = scmp.eq.s32.totalorder %s111, 0
      %s114 = sadd.s32 %s113, 1
      %s115 = scalar_select %p112, %s113, %s114
      %p118 = pneg %p112
      %p119 = scmp.eq.s32.totalorder %s14, 1
      %p120 = por %p118, %p119
      %p121 = scmp.ne.s32.totalorder %s113, %s116
      %p122 = scmp.eq.s32.totalorder %s14, 0
      %p123 = por %p121, %p122
      %p124 = scmp.ne.s32.totalorder %s113, %s116
      %p125 = scmp.eq.s32.totalorder %s19, 1
      %p126 = por %p124, %p125
      %p127 = scmp.ne.s32.totalorder %s116, %s117
      %p128 = scmp.eq.s32.totalorder %s19, 0
      %p129 = por %p127, %p128
      %p130 = scmp.ne.s32.totalorder %s116, %s117
      %p131 = scmp.eq.s32.totalorder %s20, 1
      %p132 = por %p130, %p131
      %p134 = scmp.ne.s32.totalorder %s117, %s133
      %p135 = scmp.eq.s32.totalorder %s20, 0
      %p136 = por %p134, %p135
      %s137 = ssub.s32 %s21, %s33
      %s138 = ssub.s32 %s22, %s29
      %s139 = sor.u32 %s137, %s138
      %p140 = scmp.eq.s32.totalorder %s139, 0
      %s142 = sadd.s32 %s141, 1
      %s143 = scalar_select %p140, %s141, %s142
      %p146 = pneg %p140
      %p147 = scmp.eq.s32.totalorder %s14, 1
      %p148 = por %p146, %p147
      %p149 = scmp.ne.s32.totalorder %s141, %s144
      %p150 = scmp.eq.s32.totalorder %s14, 0
      %p151 = por %p149, %p150
      %p152 = scmp.ne.s32.totalorder %s141, %s144
      %p153 = scmp.eq.s32.totalorder %s19, 1
      %p154 = por %p152, %p153
      %p155 = scmp.ne.s32.totalorder %s144, %s145
      %p156 = scmp.eq.s32.totalorder %s19, 0
      %p157 = por %p155, %p156
      %p158 = scmp.ne.s32.totalorder %s144, %s145
      %p159 = scmp.eq.s32.totalorder %s20, 1
      %p160 = por %p158, %p159
      %p162 = scmp.ne.s32.totalorder %s145, %s161
      %p163 = scmp.eq.s32.totalorder %s20, 0
      %p164 = por %p162, %p163
      %p165 = scmp.le.s32.totalorder 1, %s14
      %p166 = scmp.lt.s32.totalorder %s14, 3
      %p167 = pnand %p165, %p166
      %p168 = pneg %p167
      // Predicated region
      $region9: #{forward.5} parent=5 // pred_check
        _
      $region10: #{forward.5} parent=5 // pred_check_branch
        %170 = sbr.rel (%p167) target = $region12
      $region11: #{forward.5} parent=5 // pred_region
        %s171 = ssub.s32 %s14, 1
        // Predicated region
        $region13: #{forward.5} parent=11 // pred_check
          %p172 = pneg %p75
        $region14: #{forward.5} parent=11 // pred_check_branch
          %174 = sbr.rel (%p172) target = $region16
        $region15: #{forward.5} parent=11 // pred_region
          _
        $region16: #{forward.5} parent=11 // pred_fallthru
          _
        // Predicated region
        $region17: #{forward.5} parent=11 // pred_check
          %p175 = pneg %p101
        $region18: #{forward.5} parent=11 // pred_check_branch
          %177 = sbr.rel (%p175) target = $region20
        $region19: #{forward.5} parent=11 // pred_region
          %s178 = smul.u32 32, %s23
          %p179 = scmp.lt.s32.totalorder %s178, 31
          %s180 = scalar_select %p179, %s178, 31
          %s181 = smul.addr %s180, 4
          %s182 = scalar_lea.vmem %s2, %s181
          %s183 = smul.u32 32, %s23
        $region20: #{forward.5} parent=11 // pred_fallthru
          _
      $region12: #{forward.5} parent=5 // pred_fallthru
        _
      %p184 = scmp.lt.s32.totalorder %s14, 2
      // Predicated region
      $region21: #{forward.5} parent=5 // pred_check
        %p185 = pneg %p184
      $region22: #{forward.5} parent=5 // pred_check_branch
        %187 = sbr.rel (%p185) target = $region24
      $region23: #{forward.5} parent=5 // pred_region
        // Predicated region
        $region25: #{forward.5} parent=23 // pred_check
          %p188 = pneg %p48
        $region26: #{forward.5} parent=23 // pred_check_branch
          %190 = sbr.rel (%p188) target = $region28
        $region27: #{forward.5} parent=23 // pred_region
          %s191 = smul.u32 32, %s21
          %p192 = scmp.lt.s32.totalorder %s22, 1
          %s193 = scalar_select %p192, %s22, 1
          %p194 = scmp.lt.s32.totalorder %s191, 31
          %s195 = scalar_select %p194, %s191, 31
          %s196 = smul.addr %s193, 32
          %s197 = sadd.s32 %s195, %s196
          %s198 = smul.addr %s197, 4
          %s199 = scalar_lea.vmem %s0, %s198
          %s200 = smul.u32 32, %s21
        $region28: #{forward.5} parent=23 // pred_fallthru
          _
      $region24: #{forward.5} parent=5 // pred_fallthru
        _
      %p201 = scmp.le.s32.totalorder 1, %s14
      %p202 = scmp.lt.s32.totalorder %s14, 3
      %p203 = pnand %p201, %p202
      %p204 = pneg %p203
      // Predicated region
      $region29: #{forward.5} parent=5 // pred_check
        _
      $region30: #{forward.5} parent=5 // pred_check_branch
        %206 = sbr.rel (%p203) target = $region32
      $region31: #{forward.5} parent=5 // pred_region
        %s207 = ssub.s32 %s14, 1
        %s208 = smul.u32 32, %s23
        %p209 = scmp.lt.s32.totalorder %s24, 1
        %s210 = scalar_select %p209, %s24, 1
        %p211 = scmp.lt.s32.totalorder %s208, 31
        %s212 = scalar_select %p211, %s208, 31
        %s213 = smul.addr %s210, 32
        %s214 = sadd.s32 %s212, %s213
        %s215 = smul.addr %s214, 4
        %s216 = scalar_lea.vmem %s0, %s215
        %p217 = pneg %p54
        %p218 = pneg %p51
        %p219 = pneg %p75
        %p220 = pneg %p72
        %s221 = smul.u32 32, %s23
        %p222 = scmp.lt.s32.totalorder %s221, 31
        %s223 = scalar_select %p222, %s221, 31
        %s224 = smul.addr %s223, 4
        %s225 = scalar_lea.vmem %s2, %s224
        %p226 = pneg %p101
        %p227 = pneg %p98
        %p228 = pneg %p129
        %p229 = pneg %p126
        %s230 = smul.u32 32, %s23
        %p231 = scmp.lt.s32.totalorder %s24, 1
        %s232 = scalar_select %p231, %s24, 1
        %p233 = scmp.lt.s32.totalorder %s230, 31
        %s234 = scalar_select %p233, %s230, 31
        %s235 = smul.addr %s232, 32
        %s236 = sadd.s32 %s234, %s235
        %s237 = smul.addr %s236, 4
        %s238 = scalar_lea.vmem %s3, %s237
        %p239 = pneg %p157
        %p240 = pneg %p154
        %s241 = sand.u32 %s144, 1
        %s242 = scalar_lea.sflag [#allocation3], %s241
        %s243 = sand.u32 %s144, 1
        %s244 = scalar_lea.vmem [#allocation2], %s243
        %s245 = smul.u32 32, %s23
        %p246 = scmp.lt.s32.totalorder %s24, 1
        %s247 = scalar_select %p246, %s24, 1
        %p248 = scmp.lt.s32.totalorder %s245, 31
        %s249 = scalar_select %p248, %s245, 31
        %s250 = smul.addr %s247, 32
        %s251 = sadd.s32 %s249, %s250
        %s252 = smul.addr %s251, 4
        %s253 = scalar_lea.vmem %s0, %s252
        %s254 = smul.u32 32, %s23
        %s255 = smul.u32 32, %s23
        %p256 = scmp.lt.s32.totalorder %s255, 31
        %s257 = scalar_select %p256, %s255, 31
        %s258 = smul.addr %s257, 4
        %s259 = scalar_lea.vmem %s2, %s258
        %s260 = smul.u32 32, %s23
        %s261 = smul.u32 32, %s23
        %p262 = scmp.lt.s32.totalorder %s24, 1
        %s263 = scalar_select %p262, %s24, 1
        %p264 = scmp.lt.s32.totalorder %s261, 31
        %s265 = scalar_select %p264, %s261, 31
        %s266 = smul.addr %s263, 32
        %s267 = sadd.s32 %s265, %s266
        %s268 = smul.addr %s267, 4
        %s269 = scalar_lea.vmem %s3, %s268
        %s270 = smul.u32 32, %s23
        %v272 = vld [vmem:[%s253] sm:$0xf]
        %v273 = vld [vmem:[%s253 + $0x4] sm:$0xf]
        %v274 = vld [vmem:[%s253 + $0x8] sm:$0xf]
        %v275 = vld [vmem:[%s253 + $0xc] sm:$0xf]
        %v276 = vld [vmem:[%s253 + $0x10] sm:$0xf]
        %v277 = vld [vmem:[%s253 + $0x14] sm:$0xf]
        %v278 = vld [vmem:[%s253 + $0x18] sm:$0xf]
        %v279 = vld [vmem:[%s253 + $0x1c] sm:$0xf]
        %v280 = vld [vmem:[%s253 + $0x20] sm:$0xf]
        %v281 = vld [vmem:[%s253 + $0x24] sm:$0xf]
        %v282 = vld [vmem:[%s253 + $0x28] sm:$0xf]
        %v283 = vld [vmem:[%s253 + $0x2c] sm:$0xf]
        %v284 = vld [vmem:[%s253 + $0x30] sm:$0xf]
        %v285 = vld [vmem:[%s253 + $0x34] sm:$0xf]
        %v286 = vld [vmem:[%s253 + $0x38] sm:$0xf]
        %v287 = vld [vmem:[%s253 + $0x3c] sm:$0xf]
        %v288 = vld [vmem:[%s253 + $0x40] sm:$0xf]
        %v289 = vld [vmem:[%s253 + $0x44] sm:$0xf]
        %v290 = vld [vmem:[%s253 + $0x48] sm:$0xf]
        %v291 = vld [vmem:[%s253 + $0x4c] sm:$0xf]
        %v292 = vld [vmem:[%s253 + $0x50] sm:$0xf]
        %v293 = vld [vmem:[%s253 + $0x54] sm:$0xf]
        %v294 = vld [vmem:[%s253 + $0x58] sm:$0xf]
        %v295 = vld [vmem:[%s253 + $0x5c] sm:$0xf]
        %v296 = vld [vmem:[%s253 + $0x60] sm:$0xf]
        %v297 = vld [vmem:[%s253 + $0x64] sm:$0xf]
        %v298 = vld [vmem:[%s253 + $0x68] sm:$0xf]
        %v299 = vld [vmem:[%s253 + $0x6c] sm:$0xf]
        %v300 = vld [vmem:[%s253 + $0x70] sm:$0xf]
        %v301 = vld [vmem:[%s253 + $0x74] sm:$0xf]
        %v302 = vld [vmem:[%s253 + $0x78] sm:$0xf]
        %v303 = vld [vmem:[%s253 + $0x7c] sm:$0xf]
        %v304 = vld [vmem:[%s1] sm:$0xf]
        %v305 = vld [vmem:[%s1 + $0x4] sm:$0xf]
        %v306 = vld [vmem:[%s1 + $0x8] sm:$0xf]
        %v307 = vld [vmem:[%s1 + $0xc] sm:$0xf]
        %v308 = vld [vmem:[%s1 + $0x10] sm:$0xf]
        %v309 = vld [vmem:[%s1 + $0x14] sm:$0xf]
        %v310 = vld [vmem:[%s1 + $0x18] sm:$0xf]
        %v311 = vld [vmem:[%s1 + $0x1c] sm:$0xf]
        %v312 = vld [vmem:[%s1 + $0x20] sm:$0xf]
        %v313 = vld [vmem:[%s1 + $0x24] sm:$0xf]
        %v314 = vld [vmem:[%s1 + $0x28] sm:$0xf]
        %v315 = vld [vmem:[%s1 + $0x2c] sm:$0xf]
        %v316 = vld [vmem:[%s1 + $0x30] sm:$0xf]
        %v317 = vld [vmem:[%s1 + $0x34] sm:$0xf]
        %v318 = vld [vmem:[%s1 + $0x38] sm:$0xf]
        %v319 = vld [vmem:[%s1 + $0x3c] sm:$0xf]
        %v320 = vld [vmem:[%s259] sm:$0xf]
        %v321 = vld [vmem:[%s259 + $0x4] sm:$0xf]
        %v322 = vld [vmem:[%s259 + $0x8] sm:$0xf]
        %v323 = vld [vmem:[%s259 + $0xc] sm:$0xf]
        %v324 = vld [vmem:[%s259 + $0x10] sm:$0xf]
        %v325 = vld [vmem:[%s259 + $0x14] sm:$0xf]
        %v326 = vld [vmem:[%s259 + $0x18] sm:$0xf]
        %v327 = vld [vmem:[%s259 + $0x1c] sm:$0xf]
        %v328 = vld [vmem:[%s259 + $0x20] sm:$0xf]
        %v329 = vld [vmem:[%s259 + $0x24] sm:$0xf]
        %v330 = vld [vmem:[%s259 + $0x28] sm:$0xf]
        %v331 = vld [vmem:[%s259 + $0x2c] sm:$0xf]
        %v332 = vld [vmem:[%s259 + $0x30] sm:$0xf]
        %v333 = vld [vmem:[%s259 + $0x34] sm:$0xf]
        %v334 = vld [vmem:[%s259 + $0x38] sm:$0xf]
        %v335 = vld [vmem:[%s259 + $0x3c] sm:$0xf]
        %v336 = vld [vmem:[%s259 + $0x40] sm:$0xf]
        %v337 = vld [vmem:[%s259 + $0x44] sm:$0xf]
        %v338 = vld [vmem:[%s259 + $0x48] sm:$0xf]
        %v339 = vld [vmem:[%s259 + $0x4c] sm:$0xf]
        %v340 = vld [vmem:[%s259 + $0x50] sm:$0xf]
        %v341 = vld [vmem:[%s259 + $0x54] sm:$0xf]
        %v342 = vld [vmem:[%s259 + $0x58] sm:$0xf]
        %v343 = vld [vmem:[%s259 + $0x5c] sm:$0xf]
        %v344 = vld [vmem:[%s259 + $0x60] sm:$0xf]
        %v345 = vld [vmem:[%s259 + $0x64] sm:$0xf]
        %v346 = vld [vmem:[%s259 + $0x68] sm:$0xf]
        %v347 = vld [vmem:[%s259 + $0x6c] sm:$0xf]
        %v348 = vld [vmem:[%s259 + $0x70] sm:$0xf]
        %v349 = vld [vmem:[%s259 + $0x74] sm:$0xf]
        %v350 = vld [vmem:[%s259 + $0x78] sm:$0xf]
        %v351 = vld [vmem:[%s259 + $0x7c] sm:$0xf]
        %v352 = vunpack.c.l.bf16 %v320
        %v353 = vunpack.c.l.bf16 %v321
        %v354 = vunpack.c.l.bf16 %v322
        %v355 = vunpack.c.l.bf16 %v323
        %v356 = vunpack.c.l.bf16 %v324
        %v357 = vunpack.c.l.bf16 %v325
        %v358 = vunpack.c.l.bf16 %v326
        %v359 = vunpack.c.l.bf16 %v327
        %v360 = vunpack.c.l.bf16 %v328
        %v361 = vunpack.c.l.bf16 %v329
        %v362 = vunpack.c.l.bf16 %v330
        %v363 = vunpack.c.l.bf16 %v331
        %v364 = vunpack.c.l.bf16 %v332
        %v365 = vunpack.c.l.bf16 %v333
        %v366 = vunpack.c.l.bf16 %v334
        %v367 = vunpack.c.l.bf16 %v335
        %v368 = vunpack.c.l.bf16 %v336
        %v369 = vunpack.c.l.bf16 %v337
        %v370 = vunpack.c.l.bf16 %v338
        %v371 = vunpack.c.l.bf16 %v339
        %v372 = vunpack.c.l.bf16 %v340
        %v373 = vunpack.c.l.bf16 %v341
        %v374 = vunpack.c.l.bf16 %v342
        %v375 = vunpack.c.l.bf16 %v343
        %v376 = vunpack.c.l.bf16 %v344
        %v377 = vunpack.c.l.bf16 %v345
        %v378 = vunpack.c.l.bf16 %v346
        %v379 = vunpack.c.l.bf16 %v347
        %v380 = vunpack.c.l.bf16 %v348
        %v381 = vunpack.c.l.bf16 %v349
        %v382 = vunpack.c.l.bf16 %v350
        %v383 = vunpack.c.l.bf16 %v351
        %v416 = vunpack.c.l.b16 %v272
        %v417 = vunpack.c.l.b16 %v273
        %v418 = vunpack.c.l.b16 %v274
        %v419 = vunpack.c.l.b16 %v275
        %v420 = vunpack.c.l.b16 %v276
        %v421 = vunpack.c.l.b16 %v277
        %v422 = vunpack.c.l.b16 %v278
        %v423 = vunpack.c.l.b16 %v279
        %v424 = vunpack.c.l.b16 %v280
        %v425 = vunpack.c.l.b16 %v281
        %v426 = vunpack.c.l.b16 %v282
        %v427 = vunpack.c.l.b16 %v283
        %v428 = vunpack.c.l.b16 %v284
        %v429 = vunpack.c.l.b16 %v285
        %v430 = vunpack.c.l.b16 %v286
        %v431 = vunpack.c.l.b16 %v287
        %v432 = vunpack.c.l.b16 %v288
        %v433 = vunpack.c.l.b16 %v289
        %v434 = vunpack.c.l.b16 %v290
        %v435 = vunpack.c.l.b16 %v291
        %v436 = vunpack.c.l.b16 %v292
        %v437 = vunpack.c.l.b16 %v293
        %v438 = vunpack.c.l.b16 %v294
        %v439 = vunpack.c.l.b16 %v295
        %v440 = vunpack.c.l.b16 %v296
        %v441 = vunpack.c.l.b16 %v297
        %v442 = vunpack.c.l.b16 %v298
        %v443 = vunpack.c.l.b16 %v299
        %v444 = vunpack.c.l.b16 %v300
        %v445 = vunpack.c.l.b16 %v301
        %v446 = vunpack.c.l.b16 %v302
        %v447 = vunpack.c.l.b16 %v303
        %v448 = vpack.c.b16 %v417, %v416
        %v449 = vpack.c.b16 %v419, %v418
        %v450 = vpack.c.b16 %v421, %v420
        %v451 = vpack.c.b16 %v423, %v422
        %v452 = vpack.c.b16 %v425, %v424
        %v453 = vpack.c.b16 %v427, %v426
        %v454 = vpack.c.b16 %v429, %v428
        %v455 = vpack.c.b16 %v431, %v430
        %v456 = vpack.c.b16 %v433, %v432
        %v457 = vpack.c.b16 %v435, %v434
        %v458 = vpack.c.b16 %v437, %v436
        %v459 = vpack.c.b16 %v439, %v438
        %v460 = vpack.c.b16 %v441, %v440
        %v461 = vpack.c.b16 %v443, %v442
        %v462 = vpack.c.b16 %v445, %v444
        %v463 = vpack.c.b16 %v447, %v446
        %v496 = vunpack.c.l.b16 %v304
        %v497 = vunpack.c.l.b16 %v305
        %v498 = vunpack.c.l.b16 %v306
        %v499 = vunpack.c.l.b16 %v307
        %v500 = vunpack.c.l.b16 %v308
        %v501 = vunpack.c.l.b16 %v309
        %v502 = vunpack.c.l.b16 %v310
        %v503 = vunpack.c.l.b16 %v311
        %v504 = vunpack.c.l.b16 %v312
        %v505 = vunpack.c.l.b16 %v313
        %v506 = vunpack.c.l.b16 %v314
        %v507 = vunpack.c.l.b16 %v315
        %v508 = vunpack.c.l.b16 %v316
        %v509 = vunpack.c.l.b16 %v317
        %v510 = vunpack.c.l.b16 %v318
        %v511 = vunpack.c.l.b16 %v319
        %v512 = vpack.c.b16 %v497, %v496
        %v513 = vpack.c.b16 %v499, %v498
        %v514 = vpack.c.b16 %v501, %v500
        %v515 = vpack.c.b16 %v503, %v502
        %v516 = vpack.c.b16 %v505, %v504
        %v517 = vpack.c.b16 %v507, %v506
        %v518 = vpack.c.b16 %v509, %v508
        %v519 = vpack.c.b16 %v511, %v510
        %528 = vmatprep.subr.bf16.mxu0 0
        %529 = vmatpush1.bf16.msra.mxu0 %v519
        %530 = vmatprep.subr.bf16.mxu0 0
        %531 = vmatpush1.bf16.msra.mxu0 %v518
        %532 = vmatprep.subr.bf16.mxu0 0
        %533 = vmatpush1.bf16.msra.mxu0 %v517
        %534 = vmatprep.subr.bf16.mxu0 0
        %535 = vmatpush1.bf16.msra.mxu0 %v516
        %536 = vmatprep.subr.bf16.mxu0 0
        %537 = vmatpush1.bf16.msra.mxu0 %v515
        %538 = vmatprep.subr.bf16.mxu0 0
        %539 = vmatpush1.bf16.msra.mxu0 %v514
        %540 = vmatprep.subr.bf16.mxu0 0
        %541 = vmatpush1.bf16.msra.mxu0 %v513
        %542 = vmatprep.subr.bf16.mxu0 0
        %543 = vmatpush1.bf16.msra.mxu0 %v512
        %544 = vmatprep.subr.bf16.mxu0 0
        %545 = vmatpush2.bf16.msra.mxu0 0
        %546 = vmatprep.subr.bf16.mxu0 0
        %547 = vmatpush2.bf16.msra.mxu0 0
        %548 = vmatprep.subr.bf16.mxu0 0
        %549 = vmatpush2.bf16.msra.mxu0 0
        %550 = vmatprep.subr.bf16.mxu0 0
        %551 = vmatpush2.bf16.msra.mxu0 0
        %552 = vmatprep.subr.bf16.mxu0 0
        %553 = vmatpush2.bf16.msra.mxu0 0
        %554 = vmatprep.subr.bf16.mxu0 0
        %555 = vmatpush2.bf16.msra.mxu0 0
        %556 = vmatprep.subr.bf16.mxu0 0
        %557 = vmatpush2.bf16.msra.mxu0 0
        %558 = vmatprep.subr.bf16.mxu0 0
        %559 = vmatpush2.bf16.msra.mxu0 0
        %560 = vmatprep.mubr.bf16.mxu0 0
        %561 = vmatmul.mubr.bf16.gmra.mxu0 %v448
        %v562 = vpop.f32.mrf.mxu0
        %v563 = vadd.f32 %v352, %v562
        %v564 = vpop.f32.mrf.mxu0
        %v565 = vpop.f32.mrf.mxu0
        %v566 = vadd.f32 %v353, %v565
        %v567 = vpop.f32.mrf.mxu0
        %568 = vmatprep.mubr.bf16.mxu0 0
        %569 = vmatmul.mubr.bf16.gmra.mxu0 %v449
        %v570 = vpop.f32.mrf.mxu0
        %v571 = vadd.f32 %v354, %v570
        %v572 = vpop.f32.mrf.mxu0
        %v573 = vpop.f32.mrf.mxu0
        %v574 = vadd.f32 %v355, %v573
        %v575 = vpop.f32.mrf.mxu0
        %576 = vmatprep.mubr.bf16.mxu0 0
        %577 = vmatmul.mubr.bf16.gmra.mxu0 %v450
        %v578 = vpop.f32.mrf.mxu0
        %v579 = vadd.f32 %v356, %v578
        %v580 = vpop.f32.mrf.mxu0
        %v581 = vpop.f32.mrf.mxu0
        %v582 = vadd.f32 %v357, %v581
        %v583 = vpop.f32.mrf.mxu0
        %584 = vmatprep.mubr.bf16.mxu0 0
        %585 = vmatmul.mubr.bf16.gmra.mxu0 %v451
        %v586 = vpop.f32.mrf.mxu0
        %v587 = vadd.f32 %v358, %v586
        %v588 = vpop.f32.mrf.mxu0
        %v589 = vpop.f32.mrf.mxu0
        %v590 = vadd.f32 %v359, %v589
        %v591 = vpop.f32.mrf.mxu0
        %592 = vmatprep.mubr.bf16.mxu0 0
        %593 = vmatmul.mubr.bf16.gmra.mxu0 %v452
        %v594 = vpop.f32.mrf.mxu0
        %v595 = vadd.f32 %v360, %v594
        %v596 = vpop.f32.mrf.mxu0
        %v597 = vpop.f32.mrf.mxu0
        %v598 = vadd.f32 %v361, %v597
        %v599 = vpop.f32.mrf.mxu0
        %600 = vmatprep.mubr.bf16.mxu0 0
        %601 = vmatmul.mubr.bf16.gmra.mxu0 %v453
        %v602 = vpop.f32.mrf.mxu0
        %v603 = vadd.f32 %v362, %v602
        %v604 = vpop.f32.mrf.mxu0
        %v605 = vpop.f32.mrf.mxu0
        %v606 = vadd.f32 %v363, %v605
        %v607 = vpop.f32.mrf.mxu0
        %608 = vmatprep.mubr.bf16.mxu0 0
        %609 = vmatmul.mubr.bf16.gmra.mxu0 %v454
        %v610 = vpop.f32.mrf.mxu0
        %v611 = vadd.f32 %v364, %v610
        %v612 = vpop.f32.mrf.mxu0
        %v613 = vpop.f32.mrf.mxu0
        %v614 = vadd.f32 %v365, %v613
        %v615 = vpop.f32.mrf.mxu0
        %616 = vmatprep.mubr.bf16.mxu0 0
        %617 = vmatmul.mubr.bf16.gmra.mxu0 %v455
        %v618 = vpop.f32.mrf.mxu0
        %v619 = vadd.f32 %v366, %v618
        %v620 = vpop.f32.mrf.mxu0
        %v621 = vpop.f32.mrf.mxu0
        %v622 = vadd.f32 %v367, %v621
        %v623 = vpop.f32.mrf.mxu0
        %624 = vmatprep.mubr.bf16.mxu0 0
        %625 = vmatmul.mubr.bf16.gmra.mxu0 %v456
        %v626 = vpop.f32.mrf.mxu0
        %v627 = vadd.f32 %v368, %v626
        %v628 = vpop.f32.mrf.mxu0
        %v629 = vpop.f32.mrf.mxu0
        %v630 = vadd.f32 %v369, %v629
        %v631 = vpop.f32.mrf.mxu0
        %632 = vmatprep.mubr.bf16.mxu0 0
        %633 = vmatmul.mubr.bf16.gmra.mxu0 %v457
        %v634 = vpop.f32.mrf.mxu0
        %v635 = vadd.f32 %v370, %v634
        %v636 = vpop.f32.mrf.mxu0
        %v637 = vpop.f32.mrf.mxu0
        %v638 = vadd.f32 %v371, %v637
        %v639 = vpop.f32.mrf.mxu0
        %640 = vmatprep.mubr.bf16.mxu0 0
        %641 = vmatmul.mubr.bf16.gmra.mxu0 %v458
        %v642 = vpop.f32.mrf.mxu0
        %v643 = vadd.f32 %v372, %v642
        %v644 = vpop.f32.mrf.mxu0
        %v645 = vpop.f32.mrf.mxu0
        %v646 = vadd.f32 %v373, %v645
        %v647 = vpop.f32.mrf.mxu0
        %648 = vmatprep.mubr.bf16.mxu0 0
        %649 = vmatmul.mubr.bf16.gmra.mxu0 %v459
        %v650 = vpop.f32.mrf.mxu0
        %v651 = vadd.f32 %v374, %v650
        %v652 = vpop.f32.mrf.mxu0
        %v653 = vpop.f32.mrf.mxu0
        %v654 = vadd.f32 %v375, %v653
        %v655 = vpop.f32.mrf.mxu0
        %656 = vmatprep.mubr.bf16.mxu0 0
        %657 = vmatmul.mubr.bf16.gmra.mxu0 %v460
        %v658 = vpop.f32.mrf.mxu0
        %v659 = vadd.f32 %v376, %v658
        %v660 = vpop.f32.mrf.mxu0
        %v661 = vpop.f32.mrf.mxu0
        %v662 = vadd.f32 %v377, %v661
        %v663 = vpop.f32.mrf.mxu0
        %664 = vmatprep.mubr.bf16.mxu0 0
        %665 = vmatmul.mubr.bf16.gmra.mxu0 %v461
        %v666 = vpop.f32.mrf.mxu0
        %v667 = vadd.f32 %v378, %v666
        %v668 = vpop.f32.mrf.mxu0
        %v669 = vpop.f32.mrf.mxu0
        %v670 = vadd.f32 %v379, %v669
        %v671 = vpop.f32.mrf.mxu0
        %672 = vmatprep.mubr.bf16.mxu0 0
        %673 = vmatmul.mubr.bf16.gmra.mxu0 %v462
        %v674 = vpop.f32.mrf.mxu0
        %v675 = vadd.f32 %v380, %v674
        %v676 = vpop.f32.mrf.mxu0
        %v677 = vpop.f32.mrf.mxu0
        %v678 = vadd.f32 %v381, %v677
        %v679 = vpop.f32.mrf.mxu0
        %680 = vmatprep.mubr.bf16.mxu0 0
        %681 = vmatmul.mubr.bf16.gmra.mxu0 %v463
        %v682 = vpop.f32.mrf.mxu0
        %v683 = vadd.f32 %v382, %v682
        %v684 = vpop.f32.mrf.mxu0
        %v685 = vpop.f32.mrf.mxu0
        %v686 = vadd.f32 %v383, %v685
        %v687 = vpop.f32.mrf.mxu0
        %688 = vdwg.mxu0
        %v689 = vmax.f32 %v563, 0.0
        %v690 = vmax.f32 %v566, 0.0
        %v691 = vmax.f32 %v571, 0.0
        %v692 = vmax.f32 %v574, 0.0
        %v693 = vmax.f32 %v579, 0.0
        %v694 = vmax.f32 %v582, 0.0
        %v695 = vmax.f32 %v587, 0.0
        %v696 = vmax.f32 %v590, 0.0
        %v697 = vmax.f32 %v595, 0.0
        %v698 = vmax.f32 %v598, 0.0
        %v699 = vmax.f32 %v603, 0.0
        %v700 = vmax.f32 %v606, 0.0
        %v701 = vmax.f32 %v611, 0.0
        %v702 = vmax.f32 %v614, 0.0
        %v703 = vmax.f32 %v619, 0.0
        %v704 = vmax.f32 %v622, 0.0
        %v705 = vmax.f32 %v627, 0.0
        %v706 = vmax.f32 %v630, 0.0
        %v707 = vmax.f32 %v635, 0.0
        %v708 = vmax.f32 %v638, 0.0
        %v709 = vmax.f32 %v643, 0.0
        %v710 = vmax.f32 %v646, 0.0
        %v711 = vmax.f32 %v651, 0.0
        %v712 = vmax.f32 %v654, 0.0
        %v713 = vmax.f32 %v659, 0.0
        %v714 = vmax.f32 %v662, 0.0
        %v715 = vmax.f32 %v667, 0.0
        %v716 = vmax.f32 %v670, 0.0
        %v717 = vmax.f32 %v675, 0.0
        %v718 = vmax.f32 %v678, 0.0
        %v719 = vmax.f32 %v683, 0.0
        %v720 = vmax.f32 %v686, 0.0
        %v721 = vpack.c.bf16 %v690, %v689
        %v722 = vpack.c.bf16 %v692, %v691
        %v723 = vpack.c.bf16 %v694, %v693
        %v724 = vpack.c.bf16 %v696, %v695
        %v725 = vpack.c.bf16 %v698, %v697
        %v726 = vpack.c.bf16 %v700, %v699
        %v727 = vpack.c.bf16 %v702, %v701
        %v728 = vpack.c.bf16 %v704, %v703
        %v729 = vpack.c.bf16 %v706, %v705
        %v730 = vpack.c.bf16 %v708, %v707
        %v731 = vpack.c.bf16 %v710, %v709
        %v732 = vpack.c.bf16 %v712, %v711
        %v733 = vpack.c.bf16 %v714, %v713
        %v734 = vpack.c.bf16 %v716, %v715
        %v735 = vpack.c.bf16 %v718, %v717
        %v736 = vpack.c.bf16 %v720, %v719
        %v753 = vunpack.c.l.b16 %v721
        %v754 = vunpack.c.h.b16 %v721
        %v755 = vunpack.c.l.b16 %v722
        %v756 = vunpack.c.h.b16 %v722
        %v757 = vunpack.c.l.b16 %v723
        %v758 = vunpack.c.h.b16 %v723
        %v759 = vunpack.c.l.b16 %v724
        %v760 = vunpack.c.h.b16 %v724
        %v761 = vunpack.c.l.b16 %v725
        %v762 = vunpack.c.h.b16 %v725
        %v763 = vunpack.c.l.b16 %v726
        %v764 = vunpack.c.h.b16 %v726
        %v765 = vunpack.c.l.b16 %v727
        %v766 = vunpack.c.h.b16 %v727
        %v767 = vunpack.c.l.b16 %v728
        %v768 = vunpack.c.h.b16 %v728
        %v769 = vunpack.c.l.b16 %v729
        %v770 = vunpack.c.h.b16 %v729
        %v771 = vunpack.c.l.b16 %v730
        %v772 = vunpack.c.h.b16 %v730
        %v773 = vunpack.c.l.b16 %v731
        %v774 = vunpack.c.h.b16 %v731
        %v775 = vunpack.c.l.b16 %v732
        %v776 = vunpack.c.h.b16 %v732
        %v777 = vunpack.c.l.b16 %v733
        %v778 = vunpack.c.h.b16 %v733
        %v779 = vunpack.c.l.b16 %v734
        %v780 = vunpack.c.h.b16 %v734
        %v781 = vunpack.c.l.b16 %v735
        %v782 = vunpack.c.h.b16 %v735
        %v783 = vunpack.c.l.b16 %v736
        %v784 = vunpack.c.h.b16 %v736
        %v785 = vpack.c.b16 %v753, %v753
        %v786 = vpack.c.b16 %v754, %v754
        %v787 = vpack.c.b16 %v755, %v755
        %v788 = vpack.c.b16 %v756, %v756
        %v789 = vpack.c.b16 %v757, %v757
        %v790 = vpack.c.b16 %v758, %v758
        %v791 = vpack.c.b16 %v759, %v759
        %v792 = vpack.c.b16 %v760, %v760
        %v793 = vpack.c.b16 %v761, %v761
        %v794 = vpack.c.b16 %v762, %v762
        %v795 = vpack.c.b16 %v763, %v763
        %v796 = vpack.c.b16 %v764, %v764
        %v797 = vpack.c.b16 %v765, %v765
        %v798 = vpack.c.b16 %v766, %v766
        %v799 = vpack.c.b16 %v767, %v767
        %v800 = vpack.c.b16 %v768, %v768
        %v801 = vpack.c.b16 %v769, %v769
        %v802 = vpack.c.b16 %v770, %v770
        %v803 = vpack.c.b16 %v771, %v771
        %v804 = vpack.c.b16 %v772, %v772
        %v805 = vpack.c.b16 %v773, %v773
        %v806 = vpack.c.b16 %v774, %v774
        %v807 = vpack.c.b16 %v775, %v775
        %v808 = vpack.c.b16 %v776, %v776
        %v809 = vpack.c.b16 %v777, %v777
        %v810 = vpack.c.b16 %v778, %v778
        %v811 = vpack.c.b16 %v779, %v779
        %v812 = vpack.c.b16 %v780, %v780
        %v813 = vpack.c.b16 %v781, %v781
        %v814 = vpack.c.b16 %v782, %v782
        %v815 = vpack.c.b16 %v783, %v783
        %v816 = vpack.c.b16 %v784, %v784
        %849 = vst [vmem:[%s269] sm:$0xf] %v785
        %850 = vst [vmem:[%s269 + $0x4] sm:$0xf] %v786
        %851 = vst [vmem:[%s269 + $0x8] sm:$0xf] %v787
        %852 = vst [vmem:[%s269 + $0xc] sm:$0xf] %v788
        %853 = vst [vmem:[%s269 + $0x10] sm:$0xf] %v789
        %854 = vst [vmem:[%s269 + $0x14] sm:$0xf] %v790
        %855 = vst [vmem:[%s269 + $0x18] sm:$0xf] %v791
        %856 = vst [vmem:[%s269 + $0x1c] sm:$0xf] %v792
        %857 = vst [vmem:[%s269 + $0x20] sm:$0xf] %v793
        %858 = vst [vmem:[%s269 + $0x24] sm:$0xf] %v794
        %859 = vst [vmem:[%s269 + $0x28] sm:$0xf] %v795
        %860 = vst [vmem:[%s269 + $0x2c] sm:$0xf] %v796
        %861 = vst [vmem:[%s269 + $0x30] sm:$0xf] %v797
        %862 = vst [vmem:[%s269 + $0x34] sm:$0xf] %v798
        %863 = vst [vmem:[%s269 + $0x38] sm:$0xf] %v799
        %864 = vst [vmem:[%s269 + $0x3c] sm:$0xf] %v800
        %865 = vst [vmem:[%s269 + $0x40] sm:$0xf] %v801
        %866 = vst [vmem:[%s269 + $0x44] sm:$0xf] %v802
        %867 = vst [vmem:[%s269 + $0x48] sm:$0xf] %v803
        %868 = vst [vmem:[%s269 + $0x4c] sm:$0xf] %v804
        %869 = vst [vmem:[%s269 + $0x50] sm:$0xf] %v805
        %870 = vst [vmem:[%s269 + $0x54] sm:$0xf] %v806
        %871 = vst [vmem:[%s269 + $0x58] sm:$0xf] %v807
        %872 = vst [vmem:[%s269 + $0x5c] sm:$0xf] %v808
        %873 = vst [vmem:[%s269 + $0x60] sm:$0xf] %v809
        %874 = vst [vmem:[%s269 + $0x64] sm:$0xf] %v810
        %875 = vst [vmem:[%s269 + $0x68] sm:$0xf] %v811
        %876 = vst [vmem:[%s269 + $0x6c] sm:$0xf] %v812
        %877 = vst [vmem:[%s269 + $0x70] sm:$0xf] %v813
        %878 = vst [vmem:[%s269 + $0x74] sm:$0xf] %v814
        %879 = vst [vmem:[%s269 + $0x78] sm:$0xf] %v815
        %880 = vst [vmem:[%s269 + $0x7c] sm:$0xf] %v816
        %v881 = vlaneseq
        %v882 = vshrl.u32 %v881, 7
        %v883 = vadd.s32 %v882, 8
        %v884 = vadd.s32 %v882, 16
        %v885 = vadd.s32 %v882, 24
        %v886 = vadd.s32 %v882, 32
        %v887 = vadd.s32 %v882, 40
        %v888 = vadd.s32 %v882, 48
        %v889 = vadd.s32 %v882, 56
        %v890 = vadd.s32 %v882, 64
        %v891 = vadd.s32 %v882, 72
        %v892 = vadd.s32 %v882, 80
        %v893 = vadd.s32 %v882, 88
        %v894 = vadd.s32 %v882, 96
        %v895 = vadd.s32 %v882, 104
        %v896 = vadd.s32 %v882, 112
        %v897 = vadd.s32 %v882, 120
        %v898 = vadd.s32 %v882, 128
        %v899 = vadd.s32 %v882, 136
        %v900 = vadd.s32 %v882, 144
        %v901 = vadd.s32 %v882, 152
        %v902 = vadd.s32 %v882, 160
        %v903 = vadd.s32 %v882, 168
        %v904 = vadd.s32 %v882, 176
        %v905 = vadd.s32 %v882, 184
        %v906 = vadd.s32 %v882, 192
        %v907 = vadd.s32 %v882, 200
        %v908 = vadd.s32 %v882, 208
        %v909 = vadd.s32 %v882, 216
        %v910 = vadd.s32 %v882, 224
        %v911 = vadd.s32 %v882, 232
        %v912 = vadd.s32 %v882, 240
        %v913 = vadd.s32 %v882, 248
        %s914 = smul.u32 %s23, 256
        %v915 = vstv %s914
        %v916 = vadd.s32 %v882, %v915
        %v917 = vadd.s32 %v883, %v915
        %v918 = vadd.s32 %v884, %v915
        %v919 = vadd.s32 %v885, %v915
        %v920 = vadd.s32 %v886, %v915
        %v921 = vadd.s32 %v887, %v915
        %v922 = vadd.s32 %v888, %v915
        %v923 = vadd.s32 %v889, %v915
        %v924 = vadd.s32 %v890, %v915
        %v925 = vadd.s32 %v891, %v915
        %v926 = vadd.s32 %v892, %v915
        %v927 = vadd.s32 %v893, %v915
        %v928 = vadd.s32 %v894, %v915
        %v929 = vadd.s32 %v895, %v915
        %v930 = vadd.s32 %v896, %v915
        %v931 = vadd.s32 %v897, %v915
        %v932 = vadd.s32 %v898, %v915
        %v933 = vadd.s32 %v899, %v915
        %v934 = vadd.s32 %v900, %v915
        %v935 = vadd.s32 %v901, %v915
        %v936 = vadd.s32 %v902, %v915
        %v937 = vadd.s32 %v903, %v915
        %v938 = vadd.s32 %v904, %v915
        %v939 = vadd.s32 %v905, %v915
        %v940 = vadd.s32 %v906, %v915
        %v941 = vadd.s32 %v907, %v915
        %v942 = vadd.s32 %v908, %v915
        %v943 = vadd.s32 %v909, %v915
        %v944 = vadd.s32 %v910, %v915
        %v945 = vadd.s32 %v911, %v915
        %v946 = vadd.s32 %v912, %v915
        %v947 = vadd.s32 %v913, %v915
        %vm948 = vcmp.lt.s32.totalorder %v916, 256
        %vm949 = vcmp.lt.s32.totalorder %v917, 256
        %vm950 = vcmp.lt.s32.totalorder %v918, 256
        %vm951 = vcmp.lt.s32.totalorder %v919, 256
        %vm952 = vcmp.lt.s32.totalorder %v920, 256
        %vm953 = vcmp.lt.s32.totalorder %v921, 256
        %vm954 = vcmp.lt.s32.totalorder %v922, 256
        %vm955 = vcmp.lt.s32.totalorder %v923, 256
        %vm956 = vcmp.lt.s32.totalorder %v924, 256
        %vm957 = vcmp.lt.s32.totalorder %v925, 256
        %vm958 = vcmp.lt.s32.totalorder %v926, 256
        %vm959 = vcmp.lt.s32.totalorder %v927, 256
        %vm960 = vcmp.lt.s32.totalorder %v928, 256
        %vm961 = vcmp.lt.s32.totalorder %v929, 256
        %vm962 = vcmp.lt.s32.totalorder %v930, 256
        %vm963 = vcmp.lt.s32.totalorder %v931, 256
        %vm964 = vcmp.lt.s32.totalorder %v932, 256
        %vm965 = vcmp.lt.s32.totalorder %v933, 256
        %vm966 = vcmp.lt.s32.totalorder %v934, 256
        %vm967 = vcmp.lt.s32.totalorder %v935, 256
        %vm968 = vcmp.lt.s32.totalorder %v936, 256
        %vm969 = vcmp.lt.s32.totalorder %v937, 256
        %vm970 = vcmp.lt.s32.totalorder %v938, 256
        %vm971 = vcmp.lt.s32.totalorder %v939, 256
        %vm972 = vcmp.lt.s32.totalorder %v940, 256
        %vm973 = vcmp.lt.s32.totalorder %v941, 256
        %vm974 = vcmp.lt.s32.totalorder %v942, 256
        %vm975 = vcmp.lt.s32.totalorder %v943, 256
        %vm976 = vcmp.lt.s32.totalorder %v944, 256
        %vm977 = vcmp.lt.s32.totalorder %v945, 256
        %vm978 = vcmp.lt.s32.totalorder %v946, 256
        %vm979 = vcmp.lt.s32.totalorder %v947, 256
        %v980 = vsel %vm948, %v689, 0.0
        %v981 = vsel %vm949, %v690, 0.0
        %v982 = vsel %vm950, %v691, 0.0
        %v983 = vsel %vm951, %v692, 0.0
        %v984 = vsel %vm952, %v693, 0.0
        %v985 = vsel %vm953, %v694, 0.0
        %v986 = vsel %vm954, %v695, 0.0
        %v987 = vsel %vm955, %v696, 0.0
        %v988 = vsel %vm956, %v697, 0.0
        %v989 = vsel %vm957, %v698, 0.0
        %v990 = vsel %vm958, %v699, 0.0
        %v991 = vsel %vm959, %v700, 0.0
        %v992 = vsel %vm960, %v701, 0.0
        %v993 = vsel %vm961, %v702, 0.0
        %v994 = vsel %vm962, %v703, 0.0
        %v995 = vsel %vm963, %v704, 0.0
        %v996 = vsel %vm964, %v705, 0.0
        %v997 = vsel %vm965, %v706, 0.0
        %v998 = vsel %vm966, %v707, 0.0
        %v999 = vsel %vm967, %v708, 0.0
        %v1000 = vsel %vm968, %v709, 0.0
        %v1001 = vsel %vm969, %v710, 0.0
        %v1002 = vsel %vm970, %v711, 0.0
        %v1003 = vsel %vm971, %v712, 0.0
        %v1004 = vsel %vm972, %v713, 0.0
        %v1005 = vsel %vm973, %v714, 0.0
        %v1006 = vsel %vm974, %v715, 0.0
        %v1007 = vsel %vm975, %v716, 0.0
        %v1008 = vsel %vm976, %v717, 0.0
        %v1009 = vsel %vm977, %v718, 0.0
        %v1010 = vsel %vm978, %v719, 0.0
        %v1011 = vsel %vm979, %v720, 0.0
        %v1012 = vadd.f32 %v980, %v981
        %v1013 = vadd.f32 %v1012, %v982
        %v1014 = vadd.f32 %v1013, %v983
        %v1015 = vadd.f32 %v1014, %v984
        %v1016 = vadd.f32 %v1015, %v985
        %v1017 = vadd.f32 %v1016, %v986
        %v1018 = vadd.f32 %v1017, %v987
        %v1019 = vadd.f32 %v1018, %v988
        %v1020 = vadd.f32 %v1019, %v989
        %v1021 = vadd.f32 %v1020, %v990
        %v1022 = vadd.f32 %v1021, %v991
        %v1023 = vadd.f32 %v1022, %v992
        %v1024 = vadd.f32 %v1023, %v993
        %v1025 = vadd.f32 %v1024, %v994
        %v1026 = vadd.f32 %v1025, %v995
        %v1027 = vadd.f32 %v1026, %v996
        %v1028 = vadd.f32 %v1027, %v997
        %v1029 = vadd.f32 %v1028, %v998
        %v1030 = vadd.f32 %v1029, %v999
        %v1031 = vadd.f32 %v1030, %v1000
        %v1032 = vadd.f32 %v1031, %v1001
        %v1033 = vadd.f32 %v1032, %v1002
        %v1034 = vadd.f32 %v1033, %v1003
        %v1035 = vadd.f32 %v1034, %v1004
        %v1036 = vadd.f32 %v1035, %v1005
        %v1037 = vadd.f32 %v1036, %v1006
        %v1038 = vadd.f32 %v1037, %v1007
        %v1039 = vadd.f32 %v1038, %v1008
        %v1040 = vadd.f32 %v1039, %v1009
        %v1041 = vadd.f32 %v1040, %v1010
        %v1042 = vadd.f32 %v1041, %v1011
        %v1043 = vrot.slane %v1042, 4
        %v1044 = vadd.f32 %v1042, %v1043
        %v1045 = vrot.slane %v1044, 2
        %v1046 = vadd.f32 %v1044, %v1045
        %v1047 = vrot.slane %v1046, 1
        %v1048 = vadd.f32 %v1046, %v1047
        %1049 = vst [vmem:[%s244] sm:$0x1] %v1048
        %s1050 = smul.u32 32, %s23
        %p1051 = scmp.lt.s32.totalorder %s24, 1
        %s1052 = scalar_select %p1051, %s24, 1
        %p1053 = scmp.lt.s32.totalorder %s1050, 31
        %s1054 = scalar_select %p1053, %s1050, 31
        %s1055 = smul.addr %s1052, 32
        %s1056 = sadd.s32 %s1054, %s1055
        %s1057 = smul.addr %s1056, 4
        %s1058 = scalar_lea.vmem %s3, %s1057
        %s1059 = sand.u32 %s144, 1
        %s1060 = scalar_lea.sflag [#allocation3], %s1059
        %s1061 = sand.u32 %s144, 1
        %s1062 = scalar_lea.vmem [#allocation2], %s1061
        // Predicated region
        $region33: #{forward.5} parent=31 // pred_check
          %p1063 = pneg %p126
        $region34: #{forward.5} parent=31 // pred_check_branch
          %1065 = sbr.rel (%p1063) target = $region36
        $region35: #{forward.5} parent=31 // pred_region
          %s1066 = smul.u32 32, %s23
        $region36: #{forward.5} parent=31 // pred_fallthru
          _
        // Predicated region
        $region37: #{forward.5} parent=31 // pred_check
          %p1067 = pneg %p154
        $region38: #{forward.5} parent=31 // pred_check_branch
          %1069 = sbr.rel (%p1067) target = $region40
        $region39: #{forward.5} parent=31 // pred_region
          %s1071 = ssub.s32 16, 16
          %1072 = vsyncadd %s1060, %s1071
          %s1073 = smul.addr %s23, 2
          %s1074 = sadd.s32 %s24, %s1073
          %s1075 = smul.addr %s1074, 16
          %s1076 = scalar_lea.hbm %s4, %s1075
          %s1078 = sshll.u32 %s1062, 4
          %s1079 = int_to_ptr.vmem [resolvable:$true] %s1078
          %1081 = dma.vmem_to_hbm [thread:$0]  %s1079, 16, %s1076, %s1060
        $region40: #{forward.5} parent=31 // pred_fallthru
          _
      $region32: #{forward.5} parent=5 // pred_fallthru
        _
      %p1082 = scmp.le.s32.totalorder 2, %s14
      // Predicated region
      $region41: #{forward.5} parent=5 // pred_check
        %p1083 = pneg %p1082
      $region42: #{forward.5} parent=5 // pred_check_branch
        %1085 = sbr.rel (%p1083) target = $region44
      $region43: #{forward.5} parent=5 // pred_region
        %s1086 = ssub.s32 %s14, 2
        // Predicated region
        $region45: #{forward.5} parent=43 // pred_check
          %p1087 = pneg %p132
        $region46: #{forward.5} parent=43 // pred_check_branch
          %1089 = sbr.rel (%p1087) target = $region48
        $region47: #{forward.5} parent=43 // pred_region
          %s1090 = smul.u32 32, %s25
          %p1091 = scmp.lt.s32.totalorder %s26, 1
          %s1092 = scalar_select %p1091, %s26, 1
          %p1093 = scmp.lt.s32.totalorder %s1090, 31
          %s1094 = scalar_select %p1093, %s1090, 31
          %s1095 = smul.addr %s1092, 32
          %s1096 = sadd.s32 %s1094, %s1095
          %s1097 = smul.addr %s1096, 4
          %s1098 = scalar_lea.vmem %s3, %s1097
        $region48: #{forward.5} parent=43 // pred_fallthru
          _
        // Predicated region
        $region49: #{forward.5} parent=43 // pred_check
          %p1099 = pneg %p160
        $region50: #{forward.5} parent=43 // pred_check_branch
          %1101 = sbr.rel (%p1099) target = $region52
        $region51: #{forward.5} parent=43 // pred_region
          %s1102 = sand.u32 %s145, 1
          %s1103 = scalar_lea.sflag [#allocation3], %s1102
          %s1104 = sand.u32 %s145, 1
          %s1105 = scalar_lea.vmem [#allocation2], %s1104
          %1106 = dma.done %s1103, 16
        $region52: #{forward.5} parent=43 // pred_fallthru
          _
      $region44: #{forward.5} parent=5 // pred_fallthru
        _
    $region6: #{forward.5} parent=1 // loop_footer
      %s18 = sadd.s32 1, %s14
    $region7: #{forward.5} parent=1 // loop_footer_branch
      %13 = sbr.rel target = $region3
    $region8: #{forward.5} parent=1 // loop_exit
      _
    %1107 = vsyncpa [#allocation3], 1
    %s1108 = scalar_lea.sflag [#allocation3], 1
    %1109 = vsyncpa %s1108, 1

// kernel: forward.6
$region0: #{forward.6}
  #allocation0 [shape = 'u32[]', space=smem, size = 0x4, offset = 0x4, fixed_abs, tag = 'smem constant byte address 0x4 - core index']
  #allocation1 [shape = 'u32[144,128]{1,0:T(1,128)}', space=vmem, size = 0x12000, scoped, tag = 'internal scratch']
  %s0 = inlined_call_operand.vmem [shape: bf16[2,64,384], index: 0, kind: input, shape index: {}]
  %s1 = inlined_call_operand.vmem [shape: bf16[384,128], index: 1, kind: input, shape index: {}]
  %s2 = inlined_call_operand.vmem [shape: bf16[64,128], index: 2, kind: input, shape index: {}]
  %s3 = inlined_call_operand.vmem [shape: bf16[2,64,128], index: 3, kind: output, shape index: {0}]
  %s4 = inlined_call_operand.vmem [shape: f32[1,2,1,128], index: 4, kind: output, shape index: {1}]
  %5 = xla_tuple %s3, %s4
  %s6 = sld [smem:[#allocation0]]
  $region53: #{forward.6} parent=0
    _
  %s8 = ssub.s32 1, %s6
  %s9 = scalar_select 0, %s8, %s6
  loop: start=0, step=1, limit=4
  $region2: #{forward.6} parent=0 // loop_pre_header
    _
  $region3: #{forward.6} parent=0 // loop_header
    %s11 = sphi 0, %s15
    %p12 = scmp.ge.s32.totalorder %s11, 4
    %s18 = sphi 0, %s30
    %s19 = sphi 0, %s26
    %s20 = sphi 0, %s18
    %s21 = sphi 0, %s19
    %s22 = sphi 0, %s20
    %s23 = sphi 0, %s21
    %s35 = sphi 0, %s37
    %s38 = sphi 0, %s35
    %s39 = sphi 0, %s38
    %s55 = sphi 0, %s39
    %s59 = sphi 0, %s59
    %s61 = sphi 0, %s59
    %s62 = sphi 0, %s61
    %s76 = sphi 0, %s62
    %s82 = sphi 0, %s84
    %s85 = sphi 0, %s82
    %s86 = sphi 0, %s85
    %s102 = sphi 0, %s86
    %s110 = sphi 0, %s112
    %s113 = sphi 0, %s110
    %s114 = sphi 0, %s113
    %s130 = sphi 0, %s114
    %s138 = sphi 0, %s140
    %s141 = sphi 0, %s138
    %s142 = sphi 0, %s141
    %s158 = sphi 0, %s142
  $region4: #{forward.6} parent=0 // loop_header_branch
    %14 = sbr.rel (%p12) target = $region8
  $region5: #{forward.6} parent=0 // loop_body
    %s16 = ssub.s32 %s11, 1
    %s17 = ssub.s32 %s11, 2
    %s24 = sadd.s32 1, %s19
    %p25 = scmp.ge.s32.totalorder %s24, 2
    %s26 = scalar_select %p25, 0, %s24
    %s27 = sadd.s32 1, %s18
    %s28 = scalar_select %p25, %s27, %s18
    %p29 = scmp.ge.s32.totalorder %s28, 1
    %s30 = scalar_select %p29, 0, %s28
    %s31 = ssub.s32 %s19, %s26
    %s32 = ssub.s32 %s18, %s30
    %s33 = sor.u32 %s31, %s32
    %p34 = scmp.eq.s32.totalorder %s33, 0
    %s36 = sadd.s32 %s35, 1
    %s37 = scalar_select %p34, %s35, %s36
    %p40 = pneg %p34
    %p41 = scmp.eq.s32.totalorder %s11, 1
    %p42 = por %p40, %p41
    %p43 = scmp.ne.s32.totalorder %s35, %s38
    %p44 = scmp.eq.s32.totalorder %s11, 0
    %p45 = por %p43, %p44
    %p46 = scmp.ne.s32.totalorder %s35, %s38
    %p47 = scmp.eq.s32.totalorder %s16, 1
    %p48 = por %p46, %p47
    %p49 = scmp.ne.s32.totalorder %s38, %s39
    %p50 = scmp.eq.s32.totalorder %s16, 0
    %p51 = por %p49, %p50
    %p52 = scmp.ne.s32.totalorder %s38, %s39
    %p53 = scmp.eq.s32.totalorder %s17, 1
    %p54 = por %p52, %p53
    %p56 = scmp.ne.s32.totalorder %s39, %s55
    %p57 = scmp.eq.s32.totalorder %s17, 0
    %p58 = por %p56, %p57
    %s60 = sadd.s32 %s59, 1
    %p63 = scmp.eq.s32.totalorder %s11, 1
    %p64 = scmp.ne.s32.totalorder %s59, %s61
    %p65 = scmp.eq.s32.totalorder %s11, 0
    %p66 = por %p64, %p65
    %p67 = scmp.ne.s32.totalorder %s59, %s61
    %p68 = scmp.eq.s32.totalorder %s16, 1
    %p69 = por %p67, %p68
    %p70 = scmp.ne.s32.totalorder %s61, %s62
    %p71 = scmp.eq.s32.totalorder %s16, 0
    %p72 = por %p70, %p71
    %p73 = scmp.ne.s32.totalorder %s61, %s62
    %p74 = scmp.eq.s32.totalorder %s17, 1
    %p75 = por %p73, %p74
    %p77 = scmp.ne.s32.totalorder %s62, %s76
    %p78 = scmp.eq.s32.totalorder %s17, 0
    %p79 = por %p77, %p78
    %s80 = ssub.s32 %s18, %s30
    %p81 = scmp.eq.s32.totalorder %s80, 0
    %s83 = sadd.s32 %s82, 1
    %s84 = scalar_select %p81, %s82, %s83
    %p87 = pneg %p81
    %p88 = scmp.eq.s32.totalorder %s11, 1
    %p89 = por %p87, %p88
    %p90 = scmp.ne.s32.totalorder %s82, %s85
    %p91 = scmp.eq.s32.totalorder %s11, 0
    %p92 = por %p90, %p91
    %p93 = scmp.ne.s32.totalorder %s82, %s85
    %p94 = scmp.eq.s32.totalorder %s16, 1
    %p95 = por %p93, %p94
    %p96 = scmp.ne.s32.totalorder %s85, %s86
    %p97 = scmp.eq.s32.totalorder %s16, 0
    %p98 = por %p96, %p97
    %p99 = scmp.ne.s32.totalorder %s85, %s86
    %p100 = scmp.eq.s32.totalorder %s17, 1
    %p101 = por %p99, %p100
    %p103 = scmp.ne.s32.totalorder %s86, %s102
    %p104 = scmp.eq.s32.totalorder %s17, 0
    %p105 = por %p103, %p104
    %s106 = ssub.s32 %s19, %s26
    %s107 = ssub.s32 %s18, %s30
    %s108 = sor.u32 %s106, %s107
    %p109 = scmp.eq.s32.totalorder %s108, 0
    %s111 = sadd.s32 %s110, 1
    %s112 = scalar_select %p109, %s110, %s111
    %p115 = pneg %p109
    %p116 = scmp.eq.s32.totalorder %s11, 1
    %p117 = por %p115, %p116
    %p118 = scmp.ne.s32.totalorder %s110, %s113
    %p119 = scmp.eq.s32.totalorder %s11, 0
    %p120 = por %p118, %p119
    %p121 = scmp.ne.s32.totalorder %s110, %s113
    %p122 = scmp.eq.s32.totalorder %s16, 1
    %p123 = por %p121, %p122
    %p124 = scmp.ne.s32.totalorder %s113, %s114
    %p125 = scmp.eq.s32.totalorder %s16, 0
    %p126 = por %p124, %p125
    %p127 = scmp.ne.s32.totalorder %s113, %s114
    %p128 = scmp.eq.s32.totalorder %s17, 1
    %p129 = por %p127, %p128
    %p131 = scmp.ne.s32.totalorder %s114, %s130
    %p132 = scmp.eq.s32.totalorder %s17, 0
    %p133 = por %p131, %p132
    %s134 = ssub.s32 %s18, %s30
    %s135 = ssub.s32 %s19, %s26
    %s136 = sor.u32 %s134, %s135
    %p137 = scmp.eq.s32.totalorder %s136, 0
    %s139 = sadd.s32 %s138, 1
    %s140 = scalar_select %p137, %s138, %s139
    %p143 = pneg %p137
    %p144 = scmp.eq.s32.totalorder %s11, 1
    %p145 = por %p143, %p144
    %p146 = scmp.ne.s32.totalorder %s138, %s141
    %p147 = scmp.eq.s32.totalorder %s11, 0
    %p148 = por %p146, %p147
    %p149 = scmp.ne.s32.totalorder %s138, %s141
    %p150 = scmp.eq.s32.totalorder %s16, 1
    %p151 = por %p149, %p150
    %p152 = scmp.ne.s32.totalorder %s141, %s142
    %p153 = scmp.eq.s32.totalorder %s16, 0
    %p154 = por %p152, %p153
    %p155 = scmp.ne.s32.totalorder %s141, %s142
    %p156 = scmp.eq.s32.totalorder %s17, 1
    %p157 = por %p155, %p156
    %p159 = scmp.ne.s32.totalorder %s142, %s158
    %p160 = scmp.eq.s32.totalorder %s17, 0
    %p161 = por %p159, %p160
    %p162 = scmp.le.s32.totalorder 1, %s11
    %p163 = scmp.lt.s32.totalorder %s11, 3
    %p164 = pnand %p162, %p163
    %p165 = pneg %p164
    // Predicated region
    $region9: #{forward.6} parent=5 // pred_check
      _
    $region10: #{forward.6} parent=5 // pred_check_branch
      %167 = sbr.rel (%p164) target = $region12
    $region11: #{forward.6} parent=5 // pred_region
      %s168 = ssub.s32 %s11, 1
      // Predicated region
      $region13: #{forward.6} parent=11 // pred_check
        %p169 = pneg %p72
      $region14: #{forward.6} parent=11 // pred_check_branch
        %171 = sbr.rel (%p169) target = $region16
      $region15: #{forward.6} parent=11 // pred_region
        _
      $region16: #{forward.6} parent=11 // pred_fallthru
        _
      // Predicated region
      $region17: #{forward.6} parent=11 // pred_check
        %p172 = pneg %p98
      $region18: #{forward.6} parent=11 // pred_check_branch
        %174 = sbr.rel (%p172) target = $region20
      $region19: #{forward.6} parent=11 // pred_region
        %s175 = smul.u32 8, %s20
        %p176 = scmp.lt.s32.totalorder %s175, 7
        %s177 = scalar_select %p176, %s175, 7
        %s178 = smul.addr %s177, 4
        %s179 = scalar_lea.vmem %s2, %s178
        %s180 = smul.u32 8, %s20
      $region20: #{forward.6} parent=11 // pred_fallthru
        _
    $region12: #{forward.6} parent=5 // pred_fallthru
      _
    %p181 = scmp.lt.s32.totalorder %s11, 2
    // Predicated region
    $region21: #{forward.6} parent=5 // pred_check
      %p182 = pneg %p181
    $region22: #{forward.6} parent=5 // pred_check_branch
      %184 = sbr.rel (%p182) target = $region24
    $region23: #{forward.6} parent=5 // pred_region
      // Predicated region
      $region25: #{forward.6} parent=23 // pred_check
        %p185 = pneg %p45
      $region26: #{forward.6} parent=23 // pred_check_branch
        %187 = sbr.rel (%p185) target = $region28
      $region27: #{forward.6} parent=23 // pred_region
        %s188 = smul.u32 8, %s18
        %p189 = scmp.lt.s32.totalorder %s19, 1
        %s190 = scalar_select %p189, %s19, 1
        %p191 = scmp.lt.s32.totalorder %s188, 7
        %s192 = scalar_select %p191, %s188, 7
        %s193 = smul.addr %s192, 3
        %s194 = smul.addr %s190, 24
        %s195 = sadd.s32 %s193, %s194
        %s196 = smul.addr %s195, 4
        %s197 = scalar_lea.vmem %s0, %s196
        %s198 = smul.u32 8, %s18
      $region28: #{forward.6} parent=23 // pred_fallthru
        _
    $region24: #{forward.6} parent=5 // pred_fallthru
      _
    %p199 = scmp.le.s32.totalorder 1, %s11
    %p200 = scmp.lt.s32.totalorder %s11, 3
    %p201 = pnand %p199, %p200
    %p202 = pneg %p201
    // Predicated region
    $region29: #{forward.6} parent=5 // pred_check
      _
    $region30: #{forward.6} parent=5 // pred_check_branch
      %204 = sbr.rel (%p201) target = $region32
    $region31: #{forward.6} parent=5 // pred_region
      %s205 = ssub.s32 %s11, 1
      %s206 = smul.u32 8, %s20
      %p207 = scmp.lt.s32.totalorder %s21, 1
      %s208 = scalar_select %p207, %s21, 1
      %p209 = scmp.lt.s32.totalorder %s206, 7
      %s210 = scalar_select %p209, %s206, 7
      %s211 = smul.addr %s210, 3
      %s212 = smul.addr %s208, 24
      %s213 = sadd.s32 %s211, %s212
      %s214 = smul.addr %s213, 4
      %s215 = scalar_lea.vmem %s0, %s214
      %p216 = pneg %p51
      %p217 = pneg %p48
      %p218 = pneg %p72
      %p219 = pneg %p69
      %s220 = smul.u32 8, %s20
      %p221 = scmp.lt.s32.totalorder %s220, 7
      %s222 = scalar_select %p221, %s220, 7
      %s223 = smul.addr %s222, 4
      %s224 = scalar_lea.vmem %s2, %s223
      %p225 = pneg %p98
      %p226 = pneg %p95
      %p227 = pneg %p126
      %p228 = pneg %p123
      %s229 = smul.u32 8, %s20
      %p230 = scmp.lt.s32.totalorder %s21, 1
      %s231 = scalar_select %p230, %s21, 1
      %p232 = scmp.lt.s32.totalorder %s229, 7
      %s233 = scalar_select %p232, %s229, 7
      %s234 = smul.addr %s231, 8
      %s235 = sadd.s32 %s233, %s234
      %s236 = smul.addr %s235, 4
      %s237 = scalar_lea.vmem %s3, %s236
      %p238 = pneg %p154
      %p239 = pneg %p151
      %p240 = scmp.lt.s32.totalorder %s20, 0
      %s241 = scalar_select %p240, %s20, 0
      %p242 = scmp.lt.s32.totalorder %s21, 1
      %s243 = scalar_select %p242, %s21, 1
      %s244 = smul.addr %s241, 2
      %s245 = sadd.s32 %s243, %s244
      %s246 = scalar_lea.vmem %s4, %s245
      %s247 = smul.u32 8, %s20
      %p248 = scmp.lt.s32.totalorder %s21, 1
      %s249 = scalar_select %p248, %s21, 1
      %p250 = scmp.lt.s32.totalorder %s247, 7
      %s251 = scalar_select %p250, %s247, 7
      %s252 = smul.addr %s251, 3
      %s253 = smul.addr %s249, 24
      %s254 = sadd.s32 %s252, %s253
      %s255 = smul.addr %s254, 4
      %s256 = scalar_lea.vmem %s0, %s255
      %s257 = smul.u32 8, %s20
      %s258 = smul.u32 8, %s20
      %p259 = scmp.lt.s32.totalorder %s258, 7
      %s260 = scalar_select %p259, %s258, 7
      %s261 = smul.addr %s260, 4
      %s262 = scalar_lea.vmem %s2, %s261
      %s263 = smul.u32 8, %s20
      %s264 = smul.u32 8, %s20
      %p265 = scmp.lt.s32.totalorder %s21, 1
      %s266 = scalar_select %p265, %s21, 1
      %p267 = scmp.lt.s32.totalorder %s264, 7
      %s268 = scalar_select %p267, %s264, 7
      %s269 = smul.addr %s266, 8
      %s270 = sadd.s32 %s268, %s269
      %s271 = smul.addr %s270, 4
      %s272 = scalar_lea.vmem %s3, %s271
      %s273 = smul.u32 8, %s20
      %p274 = scmp.lt.s32.totalorder %s20, 0
      %s275 = scalar_select %p274, %s20, 0
      %p276 = scmp.lt.s32.totalorder %s21, 1
      %s277 = scalar_select %p276, %s21, 1
      %s278 = smul.addr %s275, 2
      %s279 = sadd.s32 %s277, %s278
      %s280 = scalar_lea.vmem %s4, %s279
      %v282 = vld [vmem:[%s256] sm:$0xff]
      %v283 = vld [vmem:[%s256 + $0x8] sm:$0xf]
      %v284 = vld [vmem:[%s256 + $0xc] sm:$0xff]
      %v285 = vld [vmem:[%s256 + $0x14] sm:$0xf]
      %v286 = vld [vmem:[%s256 + $0x18] sm:$0xff]
      %v287 = vld [vmem:[%s256 + $0x20] sm:$0xf]
      %v288 = vld [vmem:[%s256 + $0x24] sm:$0xff]
      %v289 = vld [vmem:[%s256 + $0x2c] sm:$0xf]
      %v290 = vld [vmem:[%s256 + $0x30] sm:$0xff]
      %v291 = vld [vmem:[%s256 + $0x38] sm:$0xf]
      %v292 = vld [vmem:[%s256 + $0x3c] sm:$0xff]
      %v293 = vld [vmem:[%s256 + $0x44] sm:$0xf]
      %v294 = vld [vmem:[%s256 + $0x48] sm:$0xff]
      %v295 = vld [vmem:[%s256 + $0x50] sm:$0xf]
      %v296 = vld [vmem:[%s256 + $0x54] sm:$0xff]
      %v297 = vld [vmem:[%s256 + $0x5c] sm:$0xf]
      %v298 = vld [vmem:[%s1] sm:$0xf]
      %v299 = vld [vmem:[%s1 + $0x4] sm:$0xf]
      %v300 = vld [vmem:[%s1 + $0x8] sm:$0xf]
      %v301 = vld [vmem:[%s1 + $0xc] sm:$0xf]
      %v302 = vld [vmem:[%s1 + $0x10] sm:$0xf]
      %v303 = vld [vmem:[%s1 + $0x14] sm:$0xf]
      %v304 = vld [vmem:[%s1 + $0x18] sm:$0xf]
      %v305 = vld [vmem:[%s1 + $0x1c] sm:$0xf]
      %v306 = vld [vmem:[%s1 + $0x20] sm:$0xf]
      %v307 = vld [vmem:[%s1 + $0x24] sm:$0xf]
      %v308 = vld [vmem:[%s1 + $0x28] sm:$0xf]
      %v309 = vld [vmem:[%s1 + $0x2c] sm:$0xf]
      %v310 = vld [vmem:[%s1 + $0x30] sm:$0xf]
      %v311 = vld [vmem:[%s1 + $0x34] sm:$0xf]
      %v312 = vld [vmem:[%s1 + $0x38] sm:$0xf]
      %v313 = vld [vmem:[%s1 + $0x3c] sm:$0xf]
      %v314 = vld [vmem:[%s1 + $0x40] sm:$0xf]
      %v315 = vld [vmem:[%s1 + $0x44] sm:$0xf]
      %v316 = vld [vmem:[%s1 + $0x48] sm:$0xf]
      %v317 = vld [vmem:[%s1 + $0x4c] sm:$0xf]
      %v318 = vld [vmem:[%s1 + $0x50] sm:$0xf]
      %v319 = vld [vmem:[%s1 + $0x54] sm:$0xf]
      %v320 = vld [vmem:[%s1 + $0x58] sm:$0xf]
      %v321 = vld [vmem:[%s1 + $0x5c] sm:$0xf]
      %v322 = vld [vmem:[%s1 + $0x60] sm:$0xf]
      %v323 = vld [vmem:[%s1 + $0x64] sm:$0xf]
      %v324 = vld [vmem:[%s1 + $0x68] sm:$0xf]
      %v325 = vld [vmem:[%s1 + $0x6c] sm:$0xf]
      %v326 = vld [vmem:[%s1 + $0x70] sm:$0xf]
      %v327 = vld [vmem:[%s1 + $0x74] sm:$0xf]
      %v328 = vld [vmem:[%s1 + $0x78] sm:$0xf]
      %v329 = vld [vmem:[%s1 + $0x7c] sm:$0xf]
      %v330 = vld [vmem:[%s1 + $0x80] sm:$0xf]
      %v331 = vld [vmem:[%s1 + $0x84] sm:$0xf]
      %v332 = vld [vmem:[%s1 + $0x88] sm:$0xf]
      %v333 = vld [vmem:[%s1 + $0x8c] sm:$0xf]
      %v334 = vld [vmem:[%s1 + $0x90] sm:$0xf]
      %v335 = vld [vmem:[%s1 + $0x94] sm:$0xf]
      %v336 = vld [vmem:[%s1 + $0x98] sm:$0xf]
      %v337 = vld [vmem:[%s1 + $0x9c] sm:$0xf]
      %v338 = vld [vmem:[%s1 + $0xa0] sm:$0xf]
      %v339 = vld [vmem:[%s1 + $0xa4] sm:$0xf]
      %v340 = vld [vmem:[%s1 + $0xa8] sm:$0xf]
      %v341 = vld [vmem:[%s1 + $0xac] sm:$0xf]
      %v342 = vld [vmem:[%s1 + $0xb0] sm:$0xf]
      %v343 = vld [vmem:[%s1 + $0xb4] sm:$0xf]
      %v344 = vld [vmem:[%s1 + $0xb8] sm:$0xf]
      %v345 = vld [vmem:[%s1 + $0xbc] sm:$0xf]
      %v346 = vld [vmem:[%s262] sm:$0xf]
      %v347 = vld [vmem:[%s262 + $0x4] sm:$0xf]
      %v348 = vld [vmem:[%s262 + $0x8] sm:$0xf]
      %v349 = vld [vmem:[%s262 + $0xc] sm:$0xf]
      %v350 = vld [vmem:[%s262 + $0x10] sm:$0xf]
      %v351 = vld [vmem:[%s262 + $0x14] sm:$0xf]
      %v352 = vld [vmem:[%s262 + $0x18] sm:$0xf]
      %v353 = vld [vmem:[%s262 + $0x1c] sm:$0xf]
      %v354 = vunpack.c.l.bf16 %v346
      %v355 = vunpack.c.l.bf16 %v347
      %v356 = vunpack.c.l.bf16 %v348
      %v357 = vunpack.c.l.bf16 %v349
      %v358 = vunpack.c.l.bf16 %v350
      %v359 = vunpack.c.l.bf16 %v351
      %v360 = vunpack.c.l.bf16 %v352
      %v361 = vunpack.c.l.bf16 %v353
      %v378 = vunpack.c.l.b16 %v282
      %v379 = vunpack.c.h.b16 %v282
      %v380 = vunpack.c.l.b16 %v283
      %v381 = vunpack.c.l.b16 %v284
      %v382 = vunpack.c.h.b16 %v284
      %v383 = vunpack.c.l.b16 %v285
      %v384 = vunpack.c.l.b16 %v286
      %v385 = vunpack.c.h.b16 %v286
      %v386 = vunpack.c.l.b16 %v287
      %v387 = vunpack.c.l.b16 %v288
      %v388 = vunpack.c.h.b16 %v288
      %v389 = vunpack.c.l.b16 %v289
      %v390 = vunpack.c.l.b16 %v290
      %v391 = vunpack.c.h.b16 %v290
      %v392 = vunpack.c.l.b16 %v291
      %v393 = vunpack.c.l.b16 %v292
      %v394 = vunpack.c.h.b16 %v292
      %v395 = vunpack.c.l.b16 %v293
      %v396 = vunpack.c.l.b16 %v294
      %v397 = vunpack.c.h.b16 %v294
      %v398 = vunpack.c.l.b16 %v295
      %v399 = vunpack.c.l.b16 %v296
      %v400 = vunpack.c.h.b16 %v296
      %v401 = vunpack.c.l.b16 %v297
      %v402 = vpack.c.b16 %v381, %v378
      %v403 = vpack.c.b16 %v382, %v379
      %v404 = vpack.c.b16 %v383, %v380
      %v405 = vpack.c.b16 %v387, %v384
      %v406 = vpack.c.b16 %v388, %v385
      %v407 = vpack.c.b16 %v389, %v386
      %v408 = vpack.c.b16 %v393, %v390
      %v409 = vpack.c.b16 %v394, %v391
      %v410 = vpack.c.b16 %v395, %v392
      %v411 = vpack.c.b16 %v399, %v396
      %v412 = vpack.c.b16 %v400, %v397
      %v413 = vpack.c.b16 %v401, %v398
      %v474 = vunpack.c.l.b16 %v298
      %v475 = vunpack.c.l.b16 %v299
      %v476 = vunpack.c.l.b16 %v300
      %v477 = vunpack.c.l.b16 %v301
      %v478 = vunpack.c.l.b16 %v302
      %v479 = vunpack.c.l.b16 %v303
      %v480 = vunpack.c.l.b16 %v304
      %v481 = vunpack.c.l.b16 %v305
      %v482 = vunpack.c.l.b16 %v306
      %v483 = vunpack.c.l.b16 %v307
      %v484 = vunpack.c.l.b16 %v308
      %v485 = vunpack.c.l.b16 %v309
      %v486 = vunpack.c.l.b16 %v310
      %v487 = vunpack.c.l.b16 %v311
      %v488 = vunpack.c.l.b16 %v312
      %v489 = vunpack.c.l.b16 %v313
      %v490 = vunpack.c.l.b16 %v314
      %v491 = vunpack.c.l.b16 %v315
      %v492 = vunpack.c.l.b16 %v316
      %v493 = vunpack.c.l.b16 %v317
      %v494 = vunpack.c.l.b16 %v318
      %v495 = vunpack.c.l.b16 %v319
      %v496 = vunpack.c.l.b16 %v320
      %v497 = vunpack.c.l.b16 %v321
      %v498 = vunpack.c.l.b16 %v322
      %v499 = vunpack.c.l.b16 %v323
      %v500 = vunpack.c.l.b16 %v324
      %v501 = vunpack.c.l.b16 %v325
      %v502 = vunpack.c.l.b16 %v326
      %v503 = vunpack.c.l.b16 %v327
      %v504 = vunpack.c.l.b16 %v328
      %v505 = vunpack.c.l.b16 %v329
      %v506 = vunpack.c.l.b16 %v330
      %v507 = vunpack.c.l.b16 %v331
      %v508 = vunpack.c.l.b16 %v332
      %v509 = vunpack.c.l.b16 %v333
      %v510 = vunpack.c.l.b16 %v334
      %v511 = vunpack.c.l.b16 %v335
      %v512 = vunpack.c.l.b16 %v336
      %v513 = vunpack.c.l.b16 %v337
      %v514 = vunpack.c.l.b16 %v338
      %v515 = vunpack.c.l.b16 %v339
      %v516 = vunpack.c.l.b16 %v340
      %v517 = vunpack.c.l.b16 %v341
      %v518 = vunpack.c.l.b16 %v342
      %v519 = vunpack.c.l.b16 %v343
      %v520 = vunpack.c.l.b16 %v344
      %v521 = vunpack.c.l.b16 %v345
      %v522 = vpack.c.b16 %v475, %v474
      %v523 = vpack.c.b16 %v477, %v476
      %v524 = vpack.c.b16 %v479, %v478
      %v525 = vpack.c.b16 %v481, %v480
      %v526 = vpack.c.b16 %v483, %v482
      %v527 = vpack.c.b16 %v485, %v484
      %v528 = vpack.c.b16 %v487, %v486
      %v529 = vpack.c.b16 %v489, %v488
      %v530 = vpack.c.b16 %v491, %v490
      %v531 = vpack.c.b16 %v493, %v492
      %v532 = vpack.c.b16 %v495, %v494
      %v533 = vpack.c.b16 %v497, %v496
      %v534 = vpack.c.b16 %v499, %v498
      %v535 = vpack.c.b16 %v501, %v500
      %v536 = vpack.c.b16 %v503, %v502
      %v537 = vpack.c.b16 %v505, %v504
      %v538 = vpack.c.b16 %v507, %v506
      %v539 = vpack.c.b16 %v509, %v508
      %v540 = vpack.c.b16 %v511, %v510
      %v541 = vpack.c.b16 %v513, %v512
      %v542 = vpack.c.b16 %v515, %v514
      %v543 = vpack.c.b16 %v517, %v516
      %v544 = vpack.c.b16 %v519, %v518
      %v545 = vpack.c.b16 %v521, %v520
      %570 = vmatprep.subr.bf16.mxu0 0
      %571 = vmatpush1.bf16.msra.mxu0 %v529
      %572 = vmatprep.subr.bf16.mxu0 0
      %573 = vmatpush1.bf16.msra.mxu0 %v528
      %574 = vmatprep.subr.bf16.mxu0 0
      %575 = vmatpush1.bf16.msra.mxu0 %v527
      %576 = vmatprep.subr.bf16.mxu0 0
      %577 = vmatpush1.bf16.msra.mxu0 %v526
      %578 = vmatprep.subr.bf16.mxu0 0
      %579 = vmatpush1.bf16.msra.mxu0 %v525
      %580 = vmatprep.subr.bf16.mxu0 0
      %581 = vmatpush1.bf16.msra.mxu0 %v524
      %582 = vmatprep.subr.bf16.mxu0 0
      %583 = vmatpush1.bf16.msra.mxu0 %v523
      %584 = vmatprep.subr.bf16.mxu0 0
      %585 = vmatpush1.bf16.msra.mxu0 %v522
      %586 = vmatprep.subr.bf16.mxu0 0
      %587 = vmatpush2.bf16.msra.mxu0 %v537
      %588 = vmatprep.subr.bf16.mxu0 0
      %589 = vmatpush2.bf16.msra.mxu0 %v536
      %590 = vmatprep.subr.bf16.mxu0 0
      %591 = vmatpush2.bf16.msra.mxu0 %v535
      %592 = vmatprep.subr.bf16.mxu0 0
      %593 = vmatpush2.bf16.msra.mxu0 %v534
      %594 = vmatprep.subr.bf16.mxu0 0
      %595 = vmatpush2.bf16.msra.mxu0 %v533
      %596 = vmatprep.subr.bf16.mxu0 0
      %597 = vmatpush2.bf16.msra.mxu0 %v532
      %598 = vmatprep.subr.bf16.mxu0 0
      %599 = vmatpush2.bf16.msra.mxu0 %v531
      %600 = vmatprep.subr.bf16.mxu0 0
      %601 = vmatpush2.bf16.msra.mxu0 %v530
      %602 = vmatprep.mubr.bf16.mxu0 %v403
      %603 = vmatmul.mubr.bf16.gmra.mxu0 %v402
      %v604 = vpop.f32.mrf.mxu0
      %v605 = vadd.f32 %v354, %v604
      %v606 = vpop.f32.mrf.mxu0
      %v607 = vpop.f32.mrf.mxu0
      %v608 = vadd.f32 %v355, %v607
      %v609 = vpop.f32.mrf.mxu0
      %610 = vmatprep.mubr.bf16.mxu0 %v406
      %611 = vmatmul.mubr.bf16.gmra.mxu0 %v405
      %v612 = vpop.f32.mrf.mxu0
      %v613 = vadd.f32 %v356, %v612
      %v614 = vpop.f32.mrf.mxu0
      %v615 = vpop.f32.mrf.mxu0
      %v616 = vadd.f32 %v357, %v615
      %v617 = vpop.f32.mrf.mxu0
      %618 = vmatprep.mubr.bf16.mxu0 %v409
      %619 = vmatmul.mubr.bf16.gmra.mxu0 %v408
      %v620 = vpop.f32.mrf.mxu0
      %v621 = vadd.f32 %v358, %v620
      %v622 = vpop.f32.mrf.mxu0
      %v623 = vpop.f32.mrf.mxu0
      %v624 = vadd.f32 %v359, %v623
      %v625 = vpop.f32.mrf.mxu0
      %626 = vmatprep.mubr.bf16.mxu0 %v412
      %627 = vmatmul.mubr.bf16.gmra.mxu0 %v411
      %v628 = vpop.f32.mrf.mxu0
      %v629 = vadd.f32 %v360, %v628
      %v630 = vpop.f32.mrf.mxu0
      %v631 = vpop.f32.mrf.mxu0
      %v632 = vadd.f32 %v361, %v631
      %v633 = vpop.f32.mrf.mxu0
      %634 = vdwg.mxu0
      %635 = vmatprep.subr.bf16.mxu0 0
      %636 = vmatpush1.bf16.msra.mxu0 %v545
      %637 = vmatprep.subr.bf16.mxu0 0
      %638 = vmatpush1.bf16.msra.mxu0 %v544
      %639 = vmatprep.subr.bf16.mxu0 0
      %640 = vmatpush1.bf16.msra.mxu0 %v543
      %641 = vmatprep.subr.bf16.mxu0 0
      %642 = vmatpush1.bf16.msra.mxu0 %v542
      %643 = vmatprep.subr.bf16.mxu0 0
      %644 = vmatpush1.bf16.msra.mxu0 %v541
      %645 = vmatprep.subr.bf16.mxu0 0
      %646 = vmatpush1.bf16.msra.mxu0 %v540
      %647 = vmatprep.subr.bf16.mxu0 0
      %648 = vmatpush1.bf16.msra.mxu0 %v539
      %649 = vmatprep.subr.bf16.mxu0 0
      %650 = vmatpush1.bf16.msra.mxu0 %v538
      %651 = vmatprep.subr.bf16.mxu0 0
      %652 = vmatpush2.bf16.msra.mxu0 0
      %653 = vmatprep.subr.bf16.mxu0 0
      %654 = vmatpush2.bf16.msra.mxu0 0
      %655 = vmatprep.subr.bf16.mxu0 0
      %656 = vmatpush2.bf16.msra.mxu0 0
      %657 = vmatprep.subr.bf16.mxu0 0
      %658 = vmatpush2.bf16.msra.mxu0 0
      %659 = vmatprep.subr.bf16.mxu0 0
      %660 = vmatpush2.bf16.msra.mxu0 0
      %661 = vmatprep.subr.bf16.mxu0 0
      %662 = vmatpush2.bf16.msra.mxu0 0
      %663 = vmatprep.subr.bf16.mxu0 0
      %664 = vmatpush2.bf16.msra.mxu0 0
      %665 = vmatprep.subr.bf16.mxu0 0
      %666 = vmatpush2.bf16.msra.mxu0 0
      %667 = vmatprep.mubr.bf16.mxu0 0
      %668 = vmatmul.mubr.bf16.gmra.mxu0 %v404
      %v669 = vpop.f32.mrf.mxu0
      %v670 = vadd.f32 %v605, %v669
      %v671 = vpop.f32.mrf.mxu0
      %v672 = vpop.f32.mrf.mxu0
      %v673 = vadd.f32 %v608, %v672
      %v674 = vpop.f32.mrf.mxu0
      %675 = vmatprep.mubr.bf16.mxu0 0
      %676 = vmatmul.mubr.bf16.gmra.mxu0 %v407
      %v677 = vpop.f32.mrf.mxu0
      %v678 = vadd.f32 %v613, %v677
      %v679 = vpop.f32.mrf.mxu0
      %v680 = vpop.f32.mrf.mxu0
      %v681 = vadd.f32 %v616, %v680
      %v682 = vpop.f32.mrf.mxu0
      %683 = vmatprep.mubr.bf16.mxu0 0
      %684 = vmatmul.mubr.bf16.gmra.mxu0 %v410
      %v685 = vpop.f32.mrf.mxu0
      %v686 = vadd.f32 %v621, %v685
      %v687 = vpop.f32.mrf.mxu0
      %v688 = vpop.f32.mrf.mxu0
      %v689 = vadd.f32 %v624, %v688
      %v690 = vpop.f32.mrf.mxu0
      %691 = vmatprep.mubr.bf16.mxu0 0
      %692 = vmatmul.mubr.bf16.gmra.mxu0 %v413
      %v693 = vpop.f32.mrf.mxu0
      %v694 = vadd.f32 %v629, %v693
      %v695 = vpop.f32.mrf.mxu0
      %v696 = vpop.f32.mrf.mxu0
      %v697 = vadd.f32 %v632, %v696
      %v698 = vpop.f32.mrf.mxu0
      %699 = vdwg.mxu0
      %v700 = vmax.f32 %v670, 0.0
      %v701 = vmax.f32 %v673, 0.0
      %v702 = vmax.f32 %v678, 0.0
      %v703 = vmax.f32 %v681, 0.0
      %v704 = vmax.f32 %v686, 0.0
      %v705 = vmax.f32 %v689, 0.0
      %v706 = vmax.f32 %v694, 0.0
      %v707 = vmax.f32 %v697, 0.0
      %v708 = vpack.c.bf16 %v701, %v700
      %v709 = vpack.c.bf16 %v703, %v702
      %v710 = vpack.c.bf16 %v705, %v704
      %v711 = vpack.c.bf16 %v707, %v706
      %v716 = vunpack.c.l.b16 %v708
      %v717 = vunpack.c.h.b16 %v708
      %v718 = vunpack.c.l.b16 %v709
      %v719 = vunpack.c.h.b16 %v709
      %v720 = vunpack.c.l.b16 %v710
      %v721 = vunpack.c.h.b16 %v710
      %v722 = vunpack.c.l.b16 %v711
      %v723 = vunpack.c.h.b16 %v711
      %v724 = vpack.c.b16 %v716, %v716
      %v725 = vpack.c.b16 %v717, %v717
      %v726 = vpack.c.b16 %v718, %v718
      %v727 = vpack.c.b16 %v719, %v719
      %v728 = vpack.c.b16 %v720, %v720
      %v729 = vpack.c.b16 %v721, %v721
      %v730 = vpack.c.b16 %v722, %v722
      %v731 = vpack.c.b16 %v723, %v723
      %740 = vst [vmem:[%s272] sm:$0xf] %v724
      %741 = vst [vmem:[%s272 + $0x4] sm:$0xf] %v725
      %742 = vst [vmem:[%s272 + $0x8] sm:$0xf] %v726
      %743 = vst [vmem:[%s272 + $0xc] sm:$0xf] %v727
      %744 = vst [vmem:[%s272 + $0x10] sm:$0xf] %v728
      %745 = vst [vmem:[%s272 + $0x14] sm:$0xf] %v729
      %746 = vst [vmem:[%s272 + $0x18] sm:$0xf] %v730
      %747 = vst [vmem:[%s272 + $0x1c] sm:$0xf] %v731
      %v748 = vlaneseq
      %v749 = vshrl.u32 %v748, 7
      %v750 = vadd.s32 %v749, 8
      %v751 = vadd.s32 %v749, 16
      %v752 = vadd.s32 %v749, 24
      %v753 = vadd.s32 %v749, 32
      %v754 = vadd.s32 %v749, 40
      %v755 = vadd.s32 %v749, 48
      %v756 = vadd.s32 %v749, 56
      %s757 = smul.u32 %s20, 64
      %v758 = vstv %s757
      %v759 = vadd.s32 %v749, %v758
      %v760 = vadd.s32 %v750, %v758
      %v761 = vadd.s32 %v751, %v758
      %v762 = vadd.s32 %v752, %v758
      %v763 = vadd.s32 %v753, %v758
      %v764 = vadd.s32 %v754, %v758
      %v765 = vadd.s32 %v755, %v758
      %v766 = vadd.s32 %v756, %v758
      %vm767 = vcmp.lt.s32.totalorder %v759, 64
      %vm768 = vcmp.lt.s32.totalorder %v760, 64
      %vm769 = vcmp.lt.s32.totalorder %v761, 64
      %vm770 = vcmp.lt.s32.totalorder %v762, 64
      %vm771 = vcmp.lt.s32.totalorder %v763, 64
      %vm772 = vcmp.lt.s32.totalorder %v764, 64
      %vm773 = vcmp.lt.s32.totalorder %v765, 64
      %vm774 = vcmp.lt.s32.totalorder %v766, 64
      %v775 = vsel %vm767, %v700, 0.0
      %v776 = vsel %vm768, %v701, 0.0
      %v777 = vsel %vm769, %v702, 0.0
      %v778 = vsel %vm770, %v703, 0.0
      %v779 = vsel %vm771, %v704, 0.0
      %v780 = vsel %vm772, %v705, 0.0
      %v781 = vsel %vm773, %v706, 0.0
      %v782 = vsel %vm774, %v707, 0.0
      %v783 = vadd.f32 %v775, %v776
      %v784 = vadd.f32 %v783, %v777
      %v785 = vadd.f32 %v784, %v778
      %v786 = vadd.f32 %v785, %v779
      %v787 = vadd.f32 %v786, %v780
      %v788 = vadd.f32 %v787, %v781
      %v789 = vadd.f32 %v788, %v782
      %v790 = vrot.slane %v789, 4
      %v791 = vadd.f32 %v789, %v790
      %v792 = vrot.slane %v791, 2
      %v793 = vadd.f32 %v791, %v792
      %v794 = vrot.slane %v793, 1
      %v795 = vadd.f32 %v793, %v794
      %796 = vst [vmem:[%s280] sm:$0x1] %v795
      %s797 = smul.u32 8, %s20
      %p798 = scmp.lt.s32.totalorder %s21, 1
      %s799 = scalar_select %p798, %s21, 1
      %p800 = scmp.lt.s32.totalorder %s797, 7
      %s801 = scalar_select %p800, %s797, 7
      %s802 = smul.addr %s799, 8
      %s803 = sadd.s32 %s801, %s802
      %s804 = smul.addr %s803, 4
      %s805 = scalar_lea.vmem %s3, %s804
      %p806 = scmp.lt.s32.totalorder %s20, 0
      %s807 = scalar_select %p806, %s20, 0
      %p808 = scmp.lt.s32.totalorder %s21, 1
      %s809 = scalar_select %p808, %s21, 1
      %s810 = smul.addr %s807, 2
      %s811 = sadd.s32 %s809, %s810
      %s812 = scalar_lea.vmem %s4, %s811
      // Predicated region
      $region33: #{forward.6} parent=31 // pred_check
        %p813 = pneg %p123
      $region34: #{forward.6} parent=31 // pred_check_branch
        %815 = sbr.rel (%p813) target = $region36
      $region35: #{forward.6} parent=31 // pred_region
        %s816 = smul.u32 8, %s20
      $region36: #{forward.6} parent=31 // pred_fallthru
        _
      // Predicated region
      $region37: #{forward.6} parent=31 // pred_check
        %p817 = pneg %p151
      $region38: #{forward.6} parent=31 // pred_check_branch
        %819 = sbr.rel (%p817) target = $region40
      $region39: #{forward.6} parent=31 // pred_region
        _
      $region40: #{forward.6} parent=31 // pred_fallthru
        _
    $region32: #{forward.6} parent=5 // pred_fallthru
      _
    %p820 = scmp.le.s32.totalorder 2, %s11
    // Predicated region
    $region41: #{forward.6} parent=5 // pred_check
      %p821 = pneg %p820
    $region42: #{forward.6} parent=5 // pred_check_branch
      %823 = sbr.rel (%p821) target = $region44
    $region43: #{forward.6} parent=5 // pred_region
      %s824 = ssub.s32 %s11, 2
      // Predicated region
      $region45: #{forward.6} parent=43 // pred_check
        %p825 = pneg %p129
      $region46: #{forward.6} parent=43 // pred_check_branch
        %827 = sbr.rel (%p825) target = $region48
      $region47: #{forward.6} parent=43 // pred_region
        %s828 = smul.u32 8, %s22
        %p829 = scmp.lt.s32.totalorder %s23, 1
        %s830 = scalar_select %p829, %s23, 1
        %p831 = scmp.lt.s32.totalorder %s828, 7
        %s832 = scalar_select %p831, %s828, 7
        %s833 = smul.addr %s830, 8
        %s834 = sadd.s32 %s832, %s833
        %s835 = smul.addr %s834, 4
        %s836 = scalar_lea.vmem %s3, %s835
      $region48: #{forward.6} parent=43 // pred_fallthru
        _
      // Predicated region
      $region49: #{forward.6} parent=43 // pred_check
        %p837 = pneg %p157
      $region50: #{forward.6} parent=43 // pred_check_branch
        %839 = sbr.rel (%p837) target = $region52
      $region51: #{forward.6} parent=43 // pred_region
        %p840 = scmp.lt.s32.totalorder %s22, 0
        %s841 = scalar_select %p840, %s22, 0
        %p842 = scmp.lt.s32.totalorder %s23, 1
        %s843 = scalar_select %p842, %s23, 1
        %s844 = smul.addr %s841, 2
        %s845 = sadd.s32 %s843, %s844
        %s846 = scalar_lea.vmem %s4, %s845
      $region52: #{forward.6} parent=43 // pred_fallthru
        _
    $region44: #{forward.6} parent=5 // pred_fallthru
      _
  $region6: #{forward.6} parent=0 // loop_footer
    %s15 = sadd.s32 1, %s11
  $region7: #{forward.6} parent=0 // loop_footer_branch
    %10 = sbr.rel target = $region3
  $region8: #{forward.6} parent=0 // loop_exit
    _

// kernel: forward.7
$region0: #{forward.7}
  #allocation0 [shape = 'u32[]', space=smem, size = 0x4, offset = 0x4, fixed_abs, tag = 'smem constant byte address 0x4 - core index']
  #allocation1 [shape = 'u32[144,128]{1,0:T(1,128)}', space=vmem, size = 0x12000, scoped, tag = 'internal scratch']
  %s0 = inlined_call_operand.vmem [shape: bf16[2,16,384], index: 0, kind: input, shape index: {}]
  %s1 = inlined_call_operand.vmem [shape: bf16[384,128], index: 1, kind: input, shape index: {}]
  %s2 = inlined_call_operand.vmem [shape: f32[1,128], index: 2, kind: input, shape index: {}]
  %s3 = inlined_call_operand.vmem [shape: bf16[2,16,128], index: 3, kind: output, shape index: {0}]
  %s4 = inlined_call_operand.hbm [shape: f32[1,2,1,128], index: 4, kind: output, shape index: {1}]
  %5 = xla_tuple %s3, %s4
  %s6 = sld [smem:[#allocation0]]
  $region53: #{forward.7} parent=0
    _
  %s8 = ssub.s32 1, %s6
  %s9 = scalar_select 0, %s8, %s6
  $region1: #{forward.7} parent=0
    #allocation2 [shape = 'u8[1024]{0}', space=vmem, size = 0x400, scoped, tag = 'output window, operand 1']
    #allocation3 [shape = 's32[2]{0}', space=sflag, size = 0x8, scoped, tag = 'scoped memory for forward.7']
    %10 = vsyncpa [#allocation3], 0
    %s11 = scalar_lea.sflag [#allocation3], 1
    %12 = vsyncpa %s11, 0
    loop: start=0, step=1, limit=4
    $region2: #{forward.7} parent=1 // loop_pre_header
      _
    $region3: #{forward.7} parent=1 // loop_header
      %s14 = sphi 0, %s18
      %p15 = scmp.ge.s32.totalorder %s14, 4
      %s21 = sphi 0, %s33
      %s22 = sphi 0, %s29
      %s23 = sphi 0, %s21
      %s24 = sphi 0, %s22
      %s25 = sphi 0, %s23
      %s26 = sphi 0, %s24
      %s38 = sphi 0, %s40
      %s41 = sphi 0, %s38
      %s42 = sphi 0, %s41
      %s58 = sphi 0, %s42
      %s62 = sphi 0, %s62
      %s64 = sphi 0, %s62
      %s65 = sphi 0, %s64
      %s79 = sphi 0, %s65
      %s83 = sphi 0, %s83
      %s85 = sphi 0, %s83
      %s86 = sphi 0, %s85
      %s100 = sphi 0, %s86
      %s108 = sphi 0, %s110
      %s111 = sphi 0, %s108
      %s112 = sphi 0, %s111
      %s128 = sphi 0, %s112
      %s136 = sphi 0, %s138
      %s139 = sphi 0, %s136
      %s140 = sphi 0, %s139
      %s156 = sphi 0, %s140
    $region4: #{forward.7} parent=1 // loop_header_branch
      %17 = sbr.rel (%p15) target = $region8
    $region5: #{forward.7} parent=1 // loop_body
      %s19 = ssub.s32 %s14, 1
      %s20 = ssub.s32 %s14, 2
      %s27 = sadd.s32 1, %s22
      %p28 = scmp.ge.s32.totalorder %s27, 2
      %s29 = scalar_select %p28, 0, %s27
      %s30 = sadd.s32 1, %s21
      %s31 = scalar_select %p28, %s30, %s21
      %p32 = scmp.ge.s32.totalorder %s31, 1
      %s33 = scalar_select %p32, 0, %s31
      %s34 = ssub.s32 %s22, %s29
      %s35 = ssub.s32 %s21, %s33
      %s36 = sor.u32 %s34, %s35
      %p37 = scmp.eq.s32.totalorder %s36, 0
      %s39 = sadd.s32 %s38, 1
      %s40 = scalar_select %p37, %s38, %s39
      %p43 = pneg %p37
      %p44 = scmp.eq.s32.totalorder %s14, 1
      %p45 = por %p43, %p44
      %p46 = scmp.ne.s32.totalorder %s38, %s41
      %p47 = scmp.eq.s32.totalorder %s14, 0
      %p48 = por %p46, %p47
      %p49 = scmp.ne.s32.totalorder %s38, %s41
      %p50 = scmp.eq.s32.totalorder %s19, 1
      %p51 = por %p49, %p50
      %p52 = scmp.ne.s32.totalorder %s41, %s42
      %p53 = scmp.eq.s32.totalorder %s19, 0
      %p54 = por %p52, %p53
      %p55 = scmp.ne.s32.totalorder %s41, %s42
      %p56 = scmp.eq.s32.totalorder %s20, 1
      %p57 = por %p55, %p56
      %p59 = scmp.ne.s32.totalorder %s42, %s58
      %p60 = scmp.eq.s32.totalorder %s20, 0
      %p61 = por %p59, %p60
      %s63 = sadd.s32 %s62, 1
      %p66 = scmp.eq.s32.totalorder %s14, 1
      %p67 = scmp.ne.s32.totalorder %s62, %s64
      %p68 = scmp.eq.s32.totalorder %s14, 0
      %p69 = por %p67, %p68
      %p70 = scmp.ne.s32.totalorder %s62, %s64
      %p71 = scmp.eq.s32.totalorder %s19, 1
      %p72 = por %p70, %p71
      %p73 = scmp.ne.s32.totalorder %s64, %s65
      %p74 = scmp.eq.s32.totalorder %s19, 0
      %p75 = por %p73, %p74
      %p76 = scmp.ne.s32.totalorder %s64, %s65
      %p77 = scmp.eq.s32.totalorder %s20, 1
      %p78 = por %p76, %p77
      %p80 = scmp.ne.s32.totalorder %s65, %s79
      %p81 = scmp.eq.s32.totalorder %s20, 0
      %p82 = por %p80, %p81
      %s84 = sadd.s32 %s83, 1
      %p87 = scmp.eq.s32.totalorder %s14, 1
      %p88 = scmp.ne.s32.totalorder %s83, %s85
      %p89 = scmp.eq.s32.totalorder %s14, 0
      %p90 = por %p88, %p89
      %p91 = scmp.ne.s32.totalorder %s83, %s85
      %p92 = scmp.eq.s32.totalorder %s19, 1
      %p93 = por %p91, %p92
      %p94 = scmp.ne.s32.totalorder %s85, %s86
      %p95 = scmp.eq.s32.totalorder %s19, 0
      %p96 = por %p94, %p95
      %p97 = scmp.ne.s32.totalorder %s85, %s86
      %p98 = scmp.eq.s32.totalorder %s20, 1
      %p99 = por %p97, %p98
      %p101 = scmp.ne.s32.totalorder %s86, %s100
      %p102 = scmp.eq.s32.totalorder %s20, 0
      %p103 = por %p101, %p102
      %s104 = ssub.s32 %s22, %s29
      %s105 = ssub.s32 %s21, %s33
      %s106 = sor.u32 %s104, %s105
      %p107 = scmp.eq.s32.totalorder %s106, 0
      %s109 = sadd.s32 %s108, 1
      %s110 = scalar_select %p107, %s108, %s109
      %p113 = pneg %p107
      %p114 = scmp.eq.s32.totalorder %s14, 1
      %p115 = por %p113, %p114
      %p116 = scmp.ne.s32.totalorder %s108, %s111
      %p117 = scmp.eq.s32.totalorder %s14, 0
      %p118 = por %p116, %p117
      %p119 = scmp.ne.s32.totalorder %s108, %s111
      %p120 = scmp.eq.s32.totalorder %s19, 1
      %p121 = por %p119, %p120
      %p122 = scmp.ne.s32.totalorder %s111, %s112
      %p123 = scmp.eq.s32.totalorder %s19, 0
      %p124 = por %p122, %p123
      %p125 = scmp.ne.s32.totalorder %s111, %s112
      %p126 = scmp.eq.s32.totalorder %s20, 1
      %p127 = por %p125, %p126
      %p129 = scmp.ne.s32.totalorder %s112, %s128
      %p130 = scmp.eq.s32.totalorder %s20, 0
      %p131 = por %p129, %p130
      %s132 = ssub.s32 %s21, %s33
      %s133 = ssub.s32 %s22, %s29
      %s134 = sor.u32 %s132, %s133
      %p135 = scmp.eq.s32.totalorder %s134, 0
      %s137 = sadd.s32 %s136, 1
      %s138 = scalar_select %p135, %s136, %s137
      %p141 = pneg %p135
      %p142 = scmp.eq.s32.totalorder %s14, 1
      %p143 = por %p141, %p142
      %p144 = scmp.ne.s32.totalorder %s136, %s139
      %p145 = scmp.eq.s32.totalorder %s14, 0
      %p146 = por %p144, %p145
      %p147 = scmp.ne.s32.totalorder %s136, %s139
      %p148 = scmp.eq.s32.totalorder %s19, 1
      %p149 = por %p147, %p148
      %p150 = scmp.ne.s32.totalorder %s139, %s140
      %p151 = scmp.eq.s32.totalorder %s19, 0
      %p152 = por %p150, %p151
      %p153 = scmp.ne.s32.totalorder %s139, %s140
      %p154 = scmp.eq.s32.totalorder %s20, 1
      %p155 = por %p153, %p154
      %p157 = scmp.ne.s32.totalorder %s140, %s156
      %p158 = scmp.eq.s32.totalorder %s20, 0
      %p159 = por %p157, %p158
      %p160 = scmp.le.s32.totalorder 1, %s14
      %p161 = scmp.lt.s32.totalorder %s14, 3
      %p162 = pnand %p160, %p161
      %p163 = pneg %p162
      // Predicated region
      $region9: #{forward.7} parent=5 // pred_check
        _
      $region10: #{forward.7} parent=5 // pred_check_branch
        %165 = sbr.rel (%p162) target = $region12
      $region11: #{forward.7} parent=5 // pred_region
        %s166 = ssub.s32 %s14, 1
        // Predicated region
        $region13: #{forward.7} parent=11 // pred_check
          %p167 = pneg %p75
        $region14: #{forward.7} parent=11 // pred_check_branch
          %169 = sbr.rel (%p167) target = $region16
        $region15: #{forward.7} parent=11 // pred_region
          _
        $region16: #{forward.7} parent=11 // pred_fallthru
          _
        // Predicated region
        $region17: #{forward.7} parent=11 // pred_check
          %p170 = pneg %p96
        $region18: #{forward.7} parent=11 // pred_check_branch
          %172 = sbr.rel (%p170) target = $region20
        $region19: #{forward.7} parent=11 // pred_region
          _
        $region20: #{forward.7} parent=11 // pred_fallthru
          _
      $region12: #{forward.7} parent=5 // pred_fallthru
        _
      %p173 = scmp.lt.s32.totalorder %s14, 2
      // Predicated region
      $region21: #{forward.7} parent=5 // pred_check
        %p174 = pneg %p173
      $region22: #{forward.7} parent=5 // pred_check_branch
        %176 = sbr.rel (%p174) target = $region24
      $region23: #{forward.7} parent=5 // pred_region
        // Predicated region
        $region25: #{forward.7} parent=23 // pred_check
          %p177 = pneg %p48
        $region26: #{forward.7} parent=23 // pred_check_branch
          %179 = sbr.rel (%p177) target = $region28
        $region27: #{forward.7} parent=23 // pred_region
          %s180 = smul.u32 2, %s21
          %p181 = scmp.lt.s32.totalorder %s22, 1
          %s182 = scalar_select %p181, %s22, 1
          %p183 = scmp.lt.s32.totalorder %s180, 1
          %s184 = scalar_select %p183, %s180, 1
          %s185 = smul.addr %s184, 3
          %s186 = smul.addr %s182, 6
          %s187 = sadd.s32 %s185, %s186
          %s188 = smul.addr %s187, 4
          %s189 = scalar_lea.vmem %s0, %s188
          %s190 = smul.u32 2, %s21
        $region28: #{forward.7} parent=23 // pred_fallthru
          _
      $region24: #{forward.7} parent=5 // pred_fallthru
        _
      %p191 = scmp.le.s32.totalorder 1, %s14
      %p192 = scmp.lt.s32.totalorder %s14, 3
      %p193 = pnand %p191, %p192
      %p194 = pneg %p193
      // Predicated region
      $region29: #{forward.7} parent=5 // pred_check
        _
      $region30: #{forward.7} parent=5 // pred_check_branch
        %196 = sbr.rel (%p193) target = $region32
      $region31: #{forward.7} parent=5 // pred_region
        %s197 = ssub.s32 %s14, 1
        %s198 = smul.u32 2, %s23
        %p199 = scmp.lt.s32.totalorder %s24, 1
        %s200 = scalar_select %p199, %s24, 1
        %p201 = scmp.lt.s32.totalorder %s198, 1
        %s202 = scalar_select %p201, %s198, 1
        %s203 = smul.addr %s202, 3
        %s204 = smul.addr %s200, 6
        %s205 = sadd.s32 %s203, %s204
        %s206 = smul.addr %s205, 4
        %s207 = scalar_lea.vmem %s0, %s206
        %p208 = pneg %p54
        %p209 = pneg %p51
        %p210 = pneg %p75
        %p211 = pneg %p72
        %p212 = pneg %p96
        %p213 = pneg %p93
        %p214 = pneg %p124
        %p215 = pneg %p121
        %s216 = smul.u32 2, %s23
        %p217 = scmp.lt.s32.totalorder %s24, 1
        %s218 = scalar_select %p217, %s24, 1
        %p219 = scmp.lt.s32.totalorder %s216, 1
        %s220 = scalar_select %p219, %s216, 1
        %s221 = smul.addr %s218, 2
        %s222 = sadd.s32 %s220, %s221
        %s223 = smul.addr %s222, 4
        %s224 = scalar_lea.vmem %s3, %s223
        %p225 = pneg %p152
        %p226 = pneg %p149
        %s227 = sand.u32 %s139, 1
        %s228 = scalar_lea.sflag [#allocation3], %s227
        %s229 = sand.u32 %s139, 1
        %s230 = scalar_lea.vmem [#allocation2], %s229
        %s231 = smul.u32 2, %s23
        %p232 = scmp.lt.s32.totalorder %s24, 1
        %s233 = scalar_select %p232, %s24, 1
        %p234 = scmp.lt.s32.totalorder %s231, 1
        %s235 = scalar_select %p234, %s231, 1
        %s236 = smul.addr %s235, 3
        %s237 = smul.addr %s233, 6
        %s238 = sadd.s32 %s236, %s237
        %s239 = smul.addr %s238, 4
        %s240 = scalar_lea.vmem %s0, %s239
        %s241 = smul.u32 2, %s23
        %s242 = smul.u32 2, %s23
        %p243 = scmp.lt.s32.totalorder %s24, 1
        %s244 = scalar_select %p243, %s24, 1
        %p245 = scmp.lt.s32.totalorder %s242, 1
        %s246 = scalar_select %p245, %s242, 1
        %s247 = smul.addr %s244, 2
        %s248 = sadd.s32 %s246, %s247
        %s249 = smul.addr %s248, 4
        %s250 = scalar_lea.vmem %s3, %s249
        %s251 = smul.u32 2, %s23
        %v253 = vld [vmem:[%s240] sm:$0xff]
        %v254 = vld [vmem:[%s240 + $0x8] sm:$0xf]
        %v255 = vld [vmem:[%s240 + $0xc] sm:$0xff]
        %v256 = vld [vmem:[%s240 + $0x14] sm:$0xf]
        %v257 = vld [vmem:[%s1] sm:$0xf]
        %v258 = vld [vmem:[%s1 + $0x4] sm:$0xf]
        %v259 = vld [vmem:[%s1 + $0x8] sm:$0xf]
        %v260 = vld [vmem:[%s1 + $0xc] sm:$0xf]
        %v261 = vld [vmem:[%s1 + $0x10] sm:$0xf]
        %v262 = vld [vmem:[%s1 + $0x14] sm:$0xf]
        %v263 = vld [vmem:[%s1 + $0x18] sm:$0xf]
        %v264 = vld [vmem:[%s1 + $0x1c] sm:$0xf]
        %v265 = vld [vmem:[%s1 + $0x20] sm:$0xf]
        %v266 = vld [vmem:[%s1 + $0x24] sm:$0xf]
        %v267 = vld [vmem:[%s1 + $0x28] sm:$0xf]
        %v268 = vld [vmem:[%s1 + $0x2c] sm:$0xf]
        %v269 = vld [vmem:[%s1 + $0x30] sm:$0xf]
        %v270 = vld [vmem:[%s1 + $0x34] sm:$0xf]
        %v271 = vld [vmem:[%s1 + $0x38] sm:$0xf]
        %v272 = vld [vmem:[%s1 + $0x3c] sm:$0xf]
        %v273 = vld [vmem:[%s1 + $0x40] sm:$0xf]
        %v274 = vld [vmem:[%s1 + $0x44] sm:$0xf]
        %v275 = vld [vmem:[%s1 + $0x48] sm:$0xf]
        %v276 = vld [vmem:[%s1 + $0x4c] sm:$0xf]
        %v277 = vld [vmem:[%s1 + $0x50] sm:$0xf]
        %v278 = vld [vmem:[%s1 + $0x54] sm:$0xf]
        %v279 = vld [vmem:[%s1 + $0x58] sm:$0xf]
        %v280 = vld [vmem:[%s1 + $0x5c] sm:$0xf]
        %v281 = vld [vmem:[%s1 + $0x60] sm:$0xf]
        %v282 = vld [vmem:[%s1 + $0x64] sm:$0xf]
        %v283 = vld [vmem:[%s1 + $0x68] sm:$0xf]
        %v284 = vld [vmem:[%s1 + $0x6c] sm:$0xf]
        %v285 = vld [vmem:[%s1 + $0x70] sm:$0xf]
        %v286 = vld [vmem:[%s1 + $0x74] sm:$0xf]
        %v287 = vld [vmem:[%s1 + $0x78] sm:$0xf]
        %v288 = vld [vmem:[%s1 + $0x7c] sm:$0xf]
        %v289 = vld [vmem:[%s1 + $0x80] sm:$0xf]
        %v290 = vld [vmem:[%s1 + $0x84] sm:$0xf]
        %v291 = vld [vmem:[%s1 + $0x88] sm:$0xf]
        %v292 = vld [vmem:[%s1 + $0x8c] sm:$0xf]
        %v293 = vld [vmem:[%s1 + $0x90] sm:$0xf]
        %v294 = vld [vmem:[%s1 + $0x94] sm:$0xf]
        %v295 = vld [vmem:[%s1 + $0x98] sm:$0xf]
        %v296 = vld [vmem:[%s1 + $0x9c] sm:$0xf]
        %v297 = vld [vmem:[%s1 + $0xa0] sm:$0xf]
        %v298 = vld [vmem:[%s1 + $0xa4] sm:$0xf]
        %v299 = vld [vmem:[%s1 + $0xa8] sm:$0xf]
        %v300 = vld [vmem:[%s1 + $0xac] sm:$0xf]
        %v301 = vld [vmem:[%s1 + $0xb0] sm:$0xf]
        %v302 = vld [vmem:[%s1 + $0xb4] sm:$0xf]
        %v303 = vld [vmem:[%s1 + $0xb8] sm:$0xf]
        %v304 = vld [vmem:[%s1 + $0xbc] sm:$0xf]
        %v305 = vld [vmem:[%s2] sm:$0x1]
        %v307 = vlaneseq
        %v308 = vshrl.u32 %v307, 7
        %v309 = vsub.s32 0, %v308
        %v310 = vrot.slane %v305, %v309
        %v316 = vunpack.c.l.b16 %v253
        %v317 = vunpack.c.h.b16 %v253
        %v318 = vunpack.c.l.b16 %v254
        %v319 = vunpack.c.l.b16 %v255
        %v320 = vunpack.c.h.b16 %v255
        %v321 = vunpack.c.l.b16 %v256
        %v322 = vpack.c.b16 %v319, %v316
        %v323 = vpack.c.b16 %v320, %v317
        %v324 = vpack.c.b16 %v321, %v318
        %v376 = vunpack.c.l.b16 %v257
        %v377 = vunpack.c.l.b16 %v258
        %v378 = vunpack.c.l.b16 %v259
        %v379 = vunpack.c.l.b16 %v260
        %v380 = vunpack.c.l.b16 %v261
        %v381 = vunpack.c.l.b16 %v262
        %v382 = vunpack.c.l.b16 %v263
        %v383 = vunpack.c.l.b16 %v264
        %v384 = vunpack.c.l.b16 %v265
        %v385 = vunpack.c.l.b16 %v266
        %v386 = vunpack.c.l.b16 %v267
        %v387 = vunpack.c.l.b16 %v268
        %v388 = vunpack.c.l.b16 %v269
        %v389 = vunpack.c.l.b16 %v270
        %v390 = vunpack.c.l.b16 %v271
        %v391 = vunpack.c.l.b16 %v272
        %v392 = vunpack.c.l.b16 %v273
        %v393 = vunpack.c.l.b16 %v274
        %v394 = vunpack.c.l.b16 %v275
        %v395 = vunpack.c.l.b16 %v276
        %v396 = vunpack.c.l.b16 %v277
        %v397 = vunpack.c.l.b16 %v278
        %v398 = vunpack.c.l.b16 %v279
        %v399 = vunpack.c.l.b16 %v280
        %v400 = vunpack.c.l.b16 %v281
        %v401 = vunpack.c.l.b16 %v282
        %v402 = vunpack.c.l.b16 %v283
        %v403 = vunpack.c.l.b16 %v284
        %v404 = vunpack.c.l.b16 %v285
        %v405 = vunpack.c.l.b16 %v286
        %v406 = vunpack.c.l.b16 %v287
        %v407 = vunpack.c.l.b16 %v288
        %v408 = vunpack.c.l.b16 %v289
        %v409 = vunpack.c.l.b16 %v290
        %v410 = vunpack.c.l.b16 %v291
        %v411 = vunpack.c.l.b16 %v292
        %v412 = vunpack.c.l.b16 %v293
        %v413 = vunpack.c.l.b16 %v294
        %v414 = vunpack.c.l.b16 %v295
        %v415 = vunpack.c.l.b16 %v296
        %v416 = vunpack.c.l.b16 %v297
        %v417 = vunpack.c.l.b16 %v298
        %v418 = vunpack.c.l.b16 %v299
        %v419 = vunpack.c.l.b16 %v300
        %v420 = vunpack.c.l.b16 %v301
        %v421 = vunpack.c.l.b16 %v302
        %v422 = vunpack.c.l.b16 %v303
        %v423 = vunpack.c.l.b16 %v304
        %v424 = vpack.c.b16 %v377, %v376
        %v425 = vpack.c.b16 %v379, %v378
        %v426 = vpack.c.b16 %v381, %v380
        %v427 = vpack.c.b16 %v383, %v382
        %v428 = vpack.c.b16 %v385, %v384
        %v429 = vpack.c.b16 %v387, %v386
        %v430 = vpack.c.b16 %v389, %v388
        %v431 = vpack.c.b16 %v391, %v390
        %v432 = vpack.c.b16 %v393, %v392
        %v433 = vpack.c.b16 %v395, %v394
        %v434 = vpack.c.b16 %v397, %v396
        %v435 = vpack.c.b16 %v399, %v398
        %v436 = vpack.c.b16 %v401, %v400
        %v437 = vpack.c.b16 %v403, %v402
        %v438 = vpack.c.b16 %v405, %v404
        %v439 = vpack.c.b16 %v407, %v406
        %v440 = vpack.c.b16 %v409, %v408
        %v441 = vpack.c.b16 %v411, %v410
        %v442 = vpack.c.b16 %v413, %v412
        %v443 = vpack.c.b16 %v415, %v414
        %v444 = vpack.c.b16 %v417, %v416
        %v445 = vpack.c.b16 %v419, %v418
        %v446 = vpack.c.b16 %v421, %v420
        %v447 = vpack.c.b16 %v423, %v422
        %472 = vmatprep.subr.bf16.mxu0 0
        %473 = vmatpush1.bf16.msra.mxu0 %v431
        %474 = vmatprep.subr.bf16.mxu0 0
        %475 = vmatpush1.bf16.msra.mxu0 %v430
        %476 = vmatprep.subr.bf16.mxu0 0
        %477 = vmatpush1.bf16.msra.mxu0 %v429
        %478 = vmatprep.subr.bf16.mxu0 0
        %479 = vmatpush1.bf16.msra.mxu0 %v428
        %480 = vmatprep.subr.bf16.mxu0 0
        %481 = vmatpush1.bf16.msra.mxu0 %v427
        %482 = vmatprep.subr.bf16.mxu0 0
        %483 = vmatpush1.bf16.msra.mxu0 %v426
        %484 = vmatprep.subr.bf16.mxu0 0
        %485 = vmatpush1.bf16.msra.mxu0 %v425
        %486 = vmatprep.subr.bf16.mxu0 0
        %487 = vmatpush1.bf16.msra.mxu0 %v424
        %488 = vmatprep.subr.bf16.mxu0 0
        %489 = vmatpush2.bf16.msra.mxu0 %v439
        %490 = vmatprep.subr.bf16.mxu0 0
        %491 = vmatpush2.bf16.msra.mxu0 %v438
        %492 = vmatprep.subr.bf16.mxu0 0
        %493 = vmatpush2.bf16.msra.mxu0 %v437
        %494 = vmatprep.subr.bf16.mxu0 0
        %495 = vmatpush2.bf16.msra.mxu0 %v436
        %496 = vmatprep.subr.bf16.mxu0 0
        %497 = vmatpush2.bf16.msra.mxu0 %v435
        %498 = vmatprep.subr.bf16.mxu0 0
        %499 = vmatpush2.bf16.msra.mxu0 %v434
        %500 = vmatprep.subr.bf16.mxu0 0
        %501 = vmatpush2.bf16.msra.mxu0 %v433
        %502 = vmatprep.subr.bf16.mxu0 0
        %503 = vmatpush2.bf16.msra.mxu0 %v432
        %504 = vmatprep.mubr.bf16.mxu0 %v323
        %505 = vmatmul.mubr.bf16.gmra.mxu0 %v322
        %v506 = vpop.f32.mrf.mxu0
        %v507 = vadd.f32 %v310, %v506
        %v508 = vpop.f32.mrf.mxu0
        %v509 = vpop.f32.mrf.mxu0
        %v510 = vadd.f32 %v310, %v509
        %v511 = vpop.f32.mrf.mxu0
        %512 = vdwg.mxu0
        %513 = vmatprep.subr.bf16.mxu0 0
        %514 = vmatpush1.bf16.msra.mxu0 %v447
        %515 = vmatprep.subr.bf16.mxu0 0
        %516 = vmatpush1.bf16.msra.mxu0 %v446
        %517 = vmatprep.subr.bf16.mxu0 0
        %518 = vmatpush1.bf16.msra.mxu0 %v445
        %519 = vmatprep.subr.bf16.mxu0 0
        %520 = vmatpush1.bf16.msra.mxu0 %v444
        %521 = vmatprep.subr.bf16.mxu0 0
        %522 = vmatpush1.bf16.msra.mxu0 %v443
        %523 = vmatprep.subr.bf16.mxu0 0
        %524 = vmatpush1.bf16.msra.mxu0 %v442
        %525 = vmatprep.subr.bf16.mxu0 0
        %526 = vmatpush1.bf16.msra.mxu0 %v441
        %527 = vmatprep.subr.bf16.mxu0 0
        %528 = vmatpush1.bf16.msra.mxu0 %v440
        %529 = vmatprep.subr.bf16.mxu0 0
        %530 = vmatpush2.bf16.msra.mxu0 0
        %531 = vmatprep.subr.bf16.mxu0 0
        %532 = vmatpush2.bf16.msra.mxu0 0
        %533 = vmatprep.subr.bf16.mxu0 0
        %534 = vmatpush2.bf16.msra.mxu0 0
        %535 = vmatprep.subr.bf16.mxu0 0
        %536 = vmatpush2.bf16.msra.mxu0 0
        %537 = vmatprep.subr.bf16.mxu0 0
        %538 = vmatpush2.bf16.msra.mxu0 0
        %539 = vmatprep.subr.bf16.mxu0 0
        %540 = vmatpush2.bf16.msra.mxu0 0
        %541 = vmatprep.subr.bf16.mxu0 0
        %542 = vmatpush2.bf16.msra.mxu0 0
        %543 = vmatprep.subr.bf16.mxu0 0
        %544 = vmatpush2.bf16.msra.mxu0 0
        %545 = vmatprep.mubr.bf16.mxu0 0
        %546 = vmatmul.mubr.bf16.gmra.mxu0 %v324
        %v547 = vpop.f32.mrf.mxu0
        %v548 = vadd.f32 %v507, %v547
        %v549 = vpop.f32.mrf.mxu0
        %v550 = vpop.f32.mrf.mxu0
        %v551 = vadd.f32 %v510, %v550
        %v552 = vpop.f32.mrf.mxu0
        %553 = vdwg.mxu0
        %v554 = vmax.f32 %v548, 0.0
        %v555 = vmax.f32 %v551, 0.0
        %v556 = vpack.c.bf16 %v555, %v554
        %v558 = vunpack.c.l.b16 %v556
        %v559 = vunpack.c.h.b16 %v556
        %v560 = vpack.c.b16 %v558, %v558
        %v561 = vpack.c.b16 %v559, %v559
        %564 = vst [vmem:[%s250] sm:$0xf] %v560
        %565 = vst [vmem:[%s250 + $0x4] sm:$0xf] %v561
        %v566 = vlaneseq
        %v567 = vshrl.u32 %v566, 7
        %v568 = vadd.s32 %v567, 8
        %s569 = smul.u32 %s23, 16
        %v570 = vstv %s569
        %v571 = vadd.s32 %v567, %v570
        %v572 = vadd.s32 %v568, %v570
        %vm573 = vcmp.lt.s32.totalorder %v571, 16
        %vm574 = vcmp.lt.s32.totalorder %v572, 16
        %v575 = vsel %vm573, %v554, 0.0
        %v576 = vsel %vm574, %v555, 0.0
        %v577 = vadd.f32 %v575, %v576
        %v578 = vrot.slane %v577, 4
        %v579 = vadd.f32 %v577, %v578
        %v580 = vrot.slane %v579, 2
        %v581 = vadd.f32 %v579, %v580
        %v582 = vrot.slane %v581, 1
        %v583 = vadd.f32 %v581, %v582
        %584 = vst [vmem:[%s230] sm:$0x1] %v583
        %s585 = smul.u32 2, %s23
        %p586 = scmp.lt.s32.totalorder %s24, 1
        %s587 = scalar_select %p586, %s24, 1
        %p588 = scmp.lt.s32.totalorder %s585, 1
        %s589 = scalar_select %p588, %s585, 1
        %s590 = smul.addr %s587, 2
        %s591 = sadd.s32 %s589, %s590
        %s592 = smul.addr %s591, 4
        %s593 = scalar_lea.vmem %s3, %s592
        %s594 = sand.u32 %s139, 1
        %s595 = scalar_lea.sflag [#allocation3], %s594
        %s596 = sand.u32 %s139, 1
        %s597 = scalar_lea.vmem [#allocation2], %s596
        // Predicated region
        $region33: #{forward.7} parent=31 // pred_check
          %p598 = pneg %p121
        $region34: #{forward.7} parent=31 // pred_check_branch
          %600 = sbr.rel (%p598) target = $region36
        $region35: #{forward.7} parent=31 // pred_region
          %s601 = smul.u32 2, %s23
        $region36: #{forward.7} parent=31 // pred_fallthru
          _
        // Predicated region
        $region37: #{forward.7} parent=31 // pred_check
          %p602 = pneg %p149
        $region38: #{forward.7} parent=31 // pred_check_branch
          %604 = sbr.rel (%p602) target = $region40
        $region39: #{forward.7} parent=31 // pred_region
          %s606 = ssub.s32 16, 16
          %607 = vsyncadd %s595, %s606
          %s608 = smul.addr %s23, 2
          %s609 = sadd.s32 %s24, %s608
          %s610 = smul.addr %s609, 16
          %s611 = scalar_lea.hbm %s4, %s610
          %s613 = sshll.u32 %s597, 4
          %s614 = int_to_ptr.vmem [resolvable:$true] %s613
          %616 = dma.vmem_to_hbm [thread:$0]  %s614, 16, %s611, %s595
        $region40: #{forward.7} parent=31 // pred_fallthru
          _
      $region32: #{forward.7} parent=5 // pred_fallthru
        _
      %p617 = scmp.le.s32.totalorder 2, %s14
      // Predicated region
      $region41: #{forward.7} parent=5 // pred_check
        %p618 = pneg %p617
      $region42: #{forward.7} parent=5 // pred_check_branch
        %620 = sbr.rel (%p618) target = $region44
      $region43: #{forward.7} parent=5 // pred_region
        %s621 = ssub.s32 %s14, 2
        // Predicated region
        $region45: #{forward.7} parent=43 // pred_check
          %p622 = pneg %p127
        $region46: #{forward.7} parent=43 // pred_check_branch
          %624 = sbr.rel (%p622) target = $region48
        $region47: #{forward.7} parent=43 // pred_region
          %s625 = smul.u32 2, %s25
          %p626 = scmp.lt.s32.totalorder %s26, 1
          %s627 = scalar_select %p626, %s26, 1
          %p628 = scmp.lt.s32.totalorder %s625, 1
          %s629 = scalar_select %p628, %s625, 1
          %s630 = smul.addr %s627, 2
          %s631 = sadd.s32 %s629, %s630
          %s632 = smul.addr %s631, 4
          %s633 = scalar_lea.vmem %s3, %s632
        $region48: #{forward.7} parent=43 // pred_fallthru
          _
        // Predicated region
        $region49: #{forward.7} parent=43 // pred_check
          %p634 = pneg %p155
        $region50: #{forward.7} parent=43 // pred_check_branch
          %636 = sbr.rel (%p634) target = $region52
        $region51: #{forward.7} parent=43 // pred_region
          %s637 = sand.u32 %s140, 1
          %s638 = scalar_lea.sflag [#allocation3], %s637
          %s639 = sand.u32 %s140, 1
          %s640 = scalar_lea.vmem [#allocation2], %s639
          %641 = dma.done %s638, 16
        $region52: #{forward.7} parent=43 // pred_fallthru
          _
      $region44: #{forward.7} parent=5 // pred_fallthru
        _
    $region6: #{forward.7} parent=1 // loop_footer
      %s18 = sadd.s32 1, %s14
    $region7: #{forward.7} parent=1 // loop_footer_branch
      %13 = sbr.rel target = $region3
    $region8: #{forward.7} parent=1 // loop_exit
      _
    %642 = vsyncpa [#allocation3], 1
    %s643 = scalar_lea.sflag [#allocation3], 1
    %644 = vsyncpa %s643, 1

// kernel: forward.9
$region0: #{forward.9}
  #allocation0 [shape = 'u32[]', space=smem, size = 0x4, offset = 0x4, fixed_abs, tag = 'smem constant byte address 0x4 - core index']
  #allocation1 [shape = 'u32[144,128]{1,0:T(1,128)}', space=vmem, size = 0x12000, scoped, tag = 'internal scratch']
  %s0 = inlined_call_operand.vmem [shape: f32[8,128], index: 0, kind: input, shape index: {}]
  %s1 = inlined_call_operand.vmem [shape: f32[128,128], index: 1, kind: input, shape index: {}]
  %s2 = inlined_call_operand.vmem [shape: f32[1,128], index: 2, kind: input, shape index: {}]
  %s3 = inlined_call_operand.vmem [shape: f32[8,128], index: 3, kind: output, shape index: {}]
  %s4 = sld [smem:[#allocation0]]
  $region22: #{forward.9} parent=0
    _
  %s6 = ssub.s32 1, %s4
  %s7 = scalar_select 0, %s6, %s4
  // Predicated region
  $region2: #{forward.9} parent=0 // pred_check
    _
  $region3: #{forward.9} parent=0 // pred_check_branch
    %9 = sbr.rel (0) target = $region5
  $region4: #{forward.9} parent=0 // pred_region
    _
  $region5: #{forward.9} parent=0 // pred_fallthru
    _
  // Predicated region
  $region6: #{forward.9} parent=0 // pred_check
    _
  $region7: #{forward.9} parent=0 // pred_check_branch
    %11 = sbr.rel (0) target = $region9
  $region8: #{forward.9} parent=0 // pred_region
    _
  $region9: #{forward.9} parent=0 // pred_fallthru
    _
  // Predicated region
  $region10: #{forward.9} parent=0 // pred_check
    _
  $region11: #{forward.9} parent=0 // pred_check_branch
    %13 = sbr.rel (0) target = $region13
  $region12: #{forward.9} parent=0 // pred_region
    _
  $region13: #{forward.9} parent=0 // pred_fallthru
    _
  %v14 = vld [vmem:[%s0] sm:$0xff]
  %v15 = vld [vmem:[%s1] sm:$0xff]
  %v16 = vld [vmem:[%s1 + $0x8] sm:$0xff]
  %v17 = vld [vmem:[%s1 + $0x10] sm:$0xff]
  %v18 = vld [vmem:[%s1 + $0x18] sm:$0xff]
  %v19 = vld [vmem:[%s1 + $0x20] sm:$0xff]
  %v20 = vld [vmem:[%s1 + $0x28] sm:$0xff]
  %v21 = vld [vmem:[%s1 + $0x30] sm:$0xff]
  %v22 = vld [vmem:[%s1 + $0x38] sm:$0xff]
  %v23 = vld [vmem:[%s1 + $0x40] sm:$0xff]
  %v24 = vld [vmem:[%s1 + $0x48] sm:$0xff]
  %v25 = vld [vmem:[%s1 + $0x50] sm:$0xff]
  %v26 = vld [vmem:[%s1 + $0x58] sm:$0xff]
  %v27 = vld [vmem:[%s1 + $0x60] sm:$0xff]
  %v28 = vld [vmem:[%s1 + $0x68] sm:$0xff]
  %v29 = vld [vmem:[%s1 + $0x70] sm:$0xff]
  %v30 = vld [vmem:[%s1 + $0x78] sm:$0xff]
  %v31 = vld [vmem:[%s2] sm:$0x1]
  %v33 = vlaneseq
  %v34 = vshrl.u32 %v33, 7
  %v35 = vsub.s32 0, %v34
  %v36 = vrot.slane %v31, %v35
  %38 = vmatprep.subr.mxu0 0.0
  %39 = vmatpush1.msra.mxu0 %v30
  %40 = vmatprep.subr.mxu0 0.0
  %41 = vmatpush1.msra.mxu0 %v29
  %42 = vmatprep.subr.mxu0 0.0
  %43 = vmatpush1.msra.mxu0 %v28
  %44 = vmatprep.subr.mxu0 0.0
  %45 = vmatpush1.msra.mxu0 %v27
  %46 = vmatprep.subr.mxu0 0.0
  %47 = vmatpush1.msra.mxu0 %v26
  %48 = vmatprep.subr.mxu0 0.0
  %49 = vmatpush1.msra.mxu0 %v25
  %50 = vmatprep.subr.mxu0 0.0
  %51 = vmatpush1.msra.mxu0 %v24
  %52 = vmatprep.subr.mxu0 0.0
  %53 = vmatpush1.msra.mxu0 %v23
  %54 = vmatprep.subr.mxu0 0.0
  %55 = vmatpush1.msra.mxu0 %v22
  %56 = vmatprep.subr.mxu0 0.0
  %57 = vmatpush1.msra.mxu0 %v21
  %58 = vmatprep.subr.mxu0 0.0
  %59 = vmatpush1.msra.mxu0 %v20
  %60 = vmatprep.subr.mxu0 0.0
  %61 = vmatpush1.msra.mxu0 %v19
  %62 = vmatprep.subr.mxu0 0.0
  %63 = vmatpush1.msra.mxu0 %v18
  %64 = vmatprep.subr.mxu0 0.0
  %65 = vmatpush1.msra.mxu0 %v17
  %66 = vmatprep.subr.mxu0 0.0
  %67 = vmatpush1.msra.mxu0 %v16
  %68 = vmatprep.subr.mxu0 0.0
  %69 = vmatpush1.msra.mxu0 %v15
  %70 = vmatprep.subr.mxu0 0.0
  %71 = vmatpush2.msra.mxu0 0.0
  %72 = vmatprep.subr.mxu0 0.0
  %73 = vmatpush2.msra.mxu0 0.0
  %74 = vmatprep.subr.mxu0 0.0
  %75 = vmatpush2.msra.mxu0 0.0
  %76 = vmatprep.subr.mxu0 0.0
  %77 = vmatpush2.msra.mxu0 0.0
  %78 = vmatprep.subr.mxu0 0.0
  %79 = vmatpush2.msra.mxu0 0.0
  %80 = vmatprep.subr.mxu0 0.0
  %81 = vmatpush2.msra.mxu0 0.0
  %82 = vmatprep.subr.mxu0 0.0
  %83 = vmatpush2.msra.mxu0 0.0
  %84 = vmatprep.subr.mxu0 0.0
  %85 = vmatpush2.msra.mxu0 0.0
  %86 = vmatprep.subr.mxu0 0.0
  %87 = vmatpush2.msra.mxu0 0.0
  %88 = vmatprep.subr.mxu0 0.0
  %89 = vmatpush2.msra.mxu0 0.0
  %90 = vmatprep.subr.mxu0 0.0
  %91 = vmatpush2.msra.mxu0 0.0
  %92 = vmatprep.subr.mxu0 0.0
  %93 = vmatpush2.msra.mxu0 0.0
  %94 = vmatprep.subr.mxu0 0.0
  %95 = vmatpush2.msra.mxu0 0.0
  %96 = vmatprep.subr.mxu0 0.0
  %97 = vmatpush2.msra.mxu0 0.0
  %98 = vmatprep.subr.mxu0 0.0
  %99 = vmatpush2.msra.mxu0 0.0
  %100 = vmatprep.subr.mxu0 0.0
  %101 = vmatpush2.msra.mxu0 0.0
  %102 = vmatprep.mubr.f32.mxu0 0.0
  %103 = vmatmul.mubr.f32.gmra.mxu0 %v14
  %v104 = vpop.f32.mrf.mxu0
  %v105 = vadd.f32 %v36, %v104
  %v106 = vpop.f32.mrf.mxu0
  %107 = vdwg.mxu0
  %108 = vst [vmem:[%s3] sm:$0xff] %v105
  // Predicated region
  $region14: #{forward.9} parent=0 // pred_check
    _
  $region15: #{forward.9} parent=0 // pred_check_branch
    %110 = sbr.rel (0) target = $region17
  $region16: #{forward.9} parent=0 // pred_region
    _
  $region17: #{forward.9} parent=0 // pred_fallthru
    _
  // Predicated region
  $region18: #{forward.9} parent=0 // pred_check
    _
  $region19: #{forward.9} parent=0 // pred_check_branch
    %112 = sbr.rel (0) target = $region21
  $region20: #{forward.9} parent=0 // pred_region
    _
  $region21: #{forward.9} parent=0 // pred_fallthru
    _

// kernel: forward.8
$region0: #{forward.8}
  #allocation0 [shape = 'u32[]', space=smem, size = 0x4, offset = 0x4, fixed_abs, tag = 'smem constant byte address 0x4 - core index']
  #allocation1 [shape = 'u32[144,128]{1,0:T(1,128)}', space=vmem, size = 0x12000, scoped, tag = 'internal scratch']
  %s0 = inlined_call_operand.vmem [shape: bf16[2,8,640], index: 0, kind: input, shape index: {}]
  %s1 = inlined_call_operand.vmem [shape: bf16[640,128], index: 1, kind: input, shape index: {}]
  %s2 = inlined_call_operand.vmem [shape: f32[1,128], index: 2, kind: input, shape index: {}]
  %s3 = inlined_call_operand.vmem [shape: bf16[2,8,128], index: 3, kind: output, shape index: {0}]
  %s4 = inlined_call_operand.vmem [shape: f32[1,2,1,128], index: 4, kind: output, shape index: {1}]
  %5 = xla_tuple %s3, %s4
  %s6 = sld [smem:[#allocation0]]
  $region53: #{forward.8} parent=0
    _
  %s8 = ssub.s32 1, %s6
  %s9 = scalar_select 0, %s8, %s6
  loop: start=0, step=1, limit=4
  $region2: #{forward.8} parent=0 // loop_pre_header
    _
  $region3: #{forward.8} parent=0 // loop_header
    %s11 = sphi 0, %s15
    %p12 = scmp.ge.s32.totalorder %s11, 4
    %s18 = sphi 0, %s30
    %s19 = sphi 0, %s26
    %s20 = sphi 0, %s18
    %s21 = sphi 0, %s19
    %s22 = sphi 0, %s20
    %s23 = sphi 0, %s21
    %s35 = sphi 0, %s37
    %s38 = sphi 0, %s35
    %s39 = sphi 0, %s38
    %s55 = sphi 0, %s39
    %s59 = sphi 0, %s59
    %s61 = sphi 0, %s59
    %s62 = sphi 0, %s61
    %s76 = sphi 0, %s62
    %s80 = sphi 0, %s80
    %s82 = sphi 0, %s80
    %s83 = sphi 0, %s82
    %s97 = sphi 0, %s83
    %s105 = sphi 0, %s107
    %s108 = sphi 0, %s105
    %s109 = sphi 0, %s108
    %s125 = sphi 0, %s109
    %s133 = sphi 0, %s135
    %s136 = sphi 0, %s133
    %s137 = sphi 0, %s136
    %s153 = sphi 0, %s137
  $region4: #{forward.8} parent=0 // loop_header_branch
    %14 = sbr.rel (%p12) target = $region8
  $region5: #{forward.8} parent=0 // loop_body
    %s16 = ssub.s32 %s11, 1
    %s17 = ssub.s32 %s11, 2
    %s24 = sadd.s32 1, %s19
    %p25 = scmp.ge.s32.totalorder %s24, 2
    %s26 = scalar_select %p25, 0, %s24
    %s27 = sadd.s32 1, %s18
    %s28 = scalar_select %p25, %s27, %s18
    %p29 = scmp.ge.s32.totalorder %s28, 1
    %s30 = scalar_select %p29, 0, %s28
    %s31 = ssub.s32 %s19, %s26
    %s32 = ssub.s32 %s18, %s30
    %s33 = sor.u32 %s31, %s32
    %p34 = scmp.eq.s32.totalorder %s33, 0
    %s36 = sadd.s32 %s35, 1
    %s37 = scalar_select %p34, %s35, %s36
    %p40 = pneg %p34
    %p41 = scmp.eq.s32.totalorder %s11, 1
    %p42 = por %p40, %p41
    %p43 = scmp.ne.s32.totalorder %s35, %s38
    %p44 = scmp.eq.s32.totalorder %s11, 0
    %p45 = por %p43, %p44
    %p46 = scmp.ne.s32.totalorder %s35, %s38
    %p47 = scmp.eq.s32.totalorder %s16, 1
    %p48 = por %p46, %p47
    %p49 = scmp.ne.s32.totalorder %s38, %s39
    %p50 = scmp.eq.s32.totalorder %s16, 0
    %p51 = por %p49, %p50
    %p52 = scmp.ne.s32.totalorder %s38, %s39
    %p53 = scmp.eq.s32.totalorder %s17, 1
    %p54 = por %p52, %p53
    %p56 = scmp.ne.s32.totalorder %s39, %s55
    %p57 = scmp.eq.s32.totalorder %s17, 0
    %p58 = por %p56, %p57
    %s60 = sadd.s32 %s59, 1
    %p63 = scmp.eq.s32.totalorder %s11, 1
    %p64 = scmp.ne.s32.totalorder %s59, %s61
    %p65 = scmp.eq.s32.totalorder %s11, 0
    %p66 = por %p64, %p65
    %p67 = scmp.ne.s32.totalorder %s59, %s61
    %p68 = scmp.eq.s32.totalorder %s16, 1
    %p69 = por %p67, %p68
    %p70 = scmp.ne.s32.totalorder %s61, %s62
    %p71 = scmp.eq.s32.totalorder %s16, 0
    %p72 = por %p70, %p71
    %p73 = scmp.ne.s32.totalorder %s61, %s62
    %p74 = scmp.eq.s32.totalorder %s17, 1
    %p75 = por %p73, %p74
    %p77 = scmp.ne.s32.totalorder %s62, %s76
    %p78 = scmp.eq.s32.totalorder %s17, 0
    %p79 = por %p77, %p78
    %s81 = sadd.s32 %s80, 1
    %p84 = scmp.eq.s32.totalorder %s11, 1
    %p85 = scmp.ne.s32.totalorder %s80, %s82
    %p86 = scmp.eq.s32.totalorder %s11, 0
    %p87 = por %p85, %p86
    %p88 = scmp.ne.s32.totalorder %s80, %s82
    %p89 = scmp.eq.s32.totalorder %s16, 1
    %p90 = por %p88, %p89
    %p91 = scmp.ne.s32.totalorder %s82, %s83
    %p92 = scmp.eq.s32.totalorder %s16, 0
    %p93 = por %p91, %p92
    %p94 = scmp.ne.s32.totalorder %s82, %s83
    %p95 = scmp.eq.s32.totalorder %s17, 1
    %p96 = por %p94, %p95
    %p98 = scmp.ne.s32.totalorder %s83, %s97
    %p99 = scmp.eq.s32.totalorder %s17, 0
    %p100 = por %p98, %p99
    %s101 = ssub.s32 %s19, %s26
    %s102 = ssub.s32 %s18, %s30
    %s103 = sor.u32 %s101, %s102
    %p104 = scmp.eq.s32.totalorder %s103, 0
    %s106 = sadd.s32 %s105, 1
    %s107 = scalar_select %p104, %s105, %s106
    %p110 = pneg %p104
    %p111 = scmp.eq.s32.totalorder %s11, 1
    %p112 = por %p110, %p111
    %p113 = scmp.ne.s32.totalorder %s105, %s108
    %p114 = scmp.eq.s32.totalorder %s11, 0
    %p115 = por %p113, %p114
    %p116 = scmp.ne.s32.totalorder %s105, %s108
    %p117 = scmp.eq.s32.totalorder %s16, 1
    %p118 = por %p116, %p117
    %p119 = scmp.ne.s32.totalorder %s108, %s109
    %p120 = scmp.eq.s32.totalorder %s16, 0
    %p121 = por %p119, %p120
    %p122 = scmp.ne.s32.totalorder %s108, %s109
    %p123 = scmp.eq.s32.totalorder %s17, 1
    %p124 = por %p122, %p123
    %p126 = scmp.ne.s32.totalorder %s109, %s125
    %p127 = scmp.eq.s32.totalorder %s17, 0
    %p128 = por %p126, %p127
    %s129 = ssub.s32 %s18, %s30
    %s130 = ssub.s32 %s19, %s26
    %s131 = sor.u32 %s129, %s130
    %p132 = scmp.eq.s32.totalorder %s131, 0
    %s134 = sadd.s32 %s133, 1
    %s135 = scalar_select %p132, %s133, %s134
    %p138 = pneg %p132
    %p139 = scmp.eq.s32.totalorder %s11, 1
    %p140 = por %p138, %p139
    %p141 = scmp.ne.s32.totalorder %s133, %s136
    %p142 = scmp.eq.s32.totalorder %s11, 0
    %p143 = por %p141, %p142
    %p144 = scmp.ne.s32.totalorder %s133, %s136
    %p145 = scmp.eq.s32.totalorder %s16, 1
    %p146 = por %p144, %p145
    %p147 = scmp.ne.s32.totalorder %s136, %s137
    %p148 = scmp.eq.s32.totalorder %s16, 0
    %p149 = por %p147, %p148
    %p150 = scmp.ne.s32.totalorder %s136, %s137
    %p151 = scmp.eq.s32.totalorder %s17, 1
    %p152 = por %p150, %p151
    %p154 = scmp.ne.s32.totalorder %s137, %s153
    %p155 = scmp.eq.s32.totalorder %s17, 0
    %p156 = por %p154, %p155
    %p157 = scmp.le.s32.totalorder 1, %s11
    %p158 = scmp.lt.s32.totalorder %s11, 3
    %p159 = pnand %p157, %p158
    %p160 = pneg %p159
    // Predicated region
    $region9: #{forward.8} parent=5 // pred_check
      _
    $region10: #{forward.8} parent=5 // pred_check_branch
      %162 = sbr.rel (%p159) target = $region12
    $region11: #{forward.8} parent=5 // pred_region
      %s163 = ssub.s32 %s11, 1
      // Predicated region
      $region13: #{forward.8} parent=11 // pred_check
        %p164 = pneg %p72
      $region14: #{forward.8} parent=11 // pred_check_branch
        %166 = sbr.rel (%p164) target = $region16
      $region15: #{forward.8} parent=11 // pred_region
        _
      $region16: #{forward.8} parent=11 // pred_fallthru
        _
      // Predicated region
      $region17: #{forward.8} parent=11 // pred_check
        %p167 = pneg %p93
      $region18: #{forward.8} parent=11 // pred_check_branch
        %169 = sbr.rel (%p167) target = $region20
      $region19: #{forward.8} parent=11 // pred_region
        _
      $region20: #{forward.8} parent=11 // pred_fallthru
        _
    $region12: #{forward.8} parent=5 // pred_fallthru
      _
    %p170 = scmp.lt.s32.totalorder %s11, 2
    // Predicated region
    $region21: #{forward.8} parent=5 // pred_check
      %p171 = pneg %p170
    $region22: #{forward.8} parent=5 // pred_check_branch
      %173 = sbr.rel (%p171) target = $region24
    $region23: #{forward.8} parent=5 // pred_region
      // Predicated region
      $region25: #{forward.8} parent=23 // pred_check
        %p174 = pneg %p45
      $region26: #{forward.8} parent=23 // pred_check_branch
        %176 = sbr.rel (%p174) target = $region28
      $region27: #{forward.8} parent=23 // pred_region
        %p177 = scmp.lt.s32.totalorder %s19, 1
        %s178 = scalar_select %p177, %s19, 1
        %p179 = scmp.lt.s32.totalorder %s18, 0
        %s180 = scalar_select %p179, %s18, 0
        %s181 = smul.addr %s180, 5
        %s182 = smul.addr %s178, 5
        %s183 = sadd.s32 %s181, %s182
        %s184 = smul.addr %s183, 4
        %s185 = scalar_lea.vmem %s0, %s184
      $region28: #{forward.8} parent=23 // pred_fallthru
        _
    $region24: #{forward.8} parent=5 // pred_fallthru
      _
    %p186 = scmp.le.s32.totalorder 1, %s11
    %p187 = scmp.lt.s32.totalorder %s11, 3
    %p188 = pnand %p186, %p187
    %p189 = pneg %p188
    // Predicated region
    $region29: #{forward.8} parent=5 // pred_check
      _
    $region30: #{forward.8} parent=5 // pred_check_branch
      %191 = sbr.rel (%p188) target = $region32
    $region31: #{forward.8} parent=5 // pred_region
      %s192 = ssub.s32 %s11, 1
      %p193 = scmp.lt.s32.totalorder %s21, 1
      %s194 = scalar_select %p193, %s21, 1
      %p195 = scmp.lt.s32.totalorder %s20, 0
      %s196 = scalar_select %p195, %s20, 0
      %s197 = smul.addr %s196, 5
      %s198 = smul.addr %s194, 5
      %s199 = sadd.s32 %s197, %s198
      %s200 = smul.addr %s199, 4
      %s201 = scalar_lea.vmem %s0, %s200
      %p202 = pneg %p51
      %p203 = pneg %p48
      %p204 = pneg %p72
      %p205 = pneg %p69
      %p206 = pneg %p93
      %p207 = pneg %p90
      %p208 = pneg %p121
      %p209 = pneg %p118
      %p210 = scmp.lt.s32.totalorder %s21, 1
      %s211 = scalar_select %p210, %s21, 1
      %p212 = scmp.lt.s32.totalorder %s20, 0
      %s213 = scalar_select %p212, %s20, 0
      %s214 = sadd.s32 %s213, %s211
      %s215 = smul.addr %s214, 4
      %s216 = scalar_lea.vmem %s3, %s215
      %p217 = pneg %p149
      %p218 = pneg %p146
      %p219 = scmp.lt.s32.totalorder %s20, 0
      %s220 = scalar_select %p219, %s20, 0
      %p221 = scmp.lt.s32.totalorder %s21, 1
      %s222 = scalar_select %p221, %s21, 1
      %s223 = smul.addr %s220, 2
      %s224 = sadd.s32 %s222, %s223
      %s225 = scalar_lea.vmem %s4, %s224
      %p226 = scmp.lt.s32.totalorder %s21, 1
      %s227 = scalar_select %p226, %s21, 1
      %p228 = scmp.lt.s32.totalorder %s20, 0
      %s229 = scalar_select %p228, %s20, 0
      %s230 = smul.addr %s229, 5
      %s231 = smul.addr %s227, 5
      %s232 = sadd.s32 %s230, %s231
      %s233 = smul.addr %s232, 4
      %s234 = scalar_lea.vmem %s0, %s233
      %p235 = scmp.lt.s32.totalorder %s21, 1
      %s236 = scalar_select %p235, %s21, 1
      %p237 = scmp.lt.s32.totalorder %s20, 0
      %s238 = scalar_select %p237, %s20, 0
      %s239 = sadd.s32 %s238, %s236
      %s240 = smul.addr %s239, 4
      %s241 = scalar_lea.vmem %s3, %s240
      %p242 = scmp.lt.s32.totalorder %s20, 0
      %s243 = scalar_select %p242, %s20, 0
      %p244 = scmp.lt.s32.totalorder %s21, 1
      %s245 = scalar_select %p244, %s21, 1
      %s246 = smul.addr %s243, 2
      %s247 = sadd.s32 %s245, %s246
      %s248 = scalar_lea.vmem %s4, %s247
      %v250 = vld [vmem:[%s234] sm:$0xff]
      %v251 = vld [vmem:[%s234 + $0x8] sm:$0xff]
      %v252 = vld [vmem:[%s234 + $0x10] sm:$0xf]
      %v253 = vld [vmem:[%s1] sm:$0xf]
      %v254 = vld [vmem:[%s1 + $0x4] sm:$0xf]
      %v255 = vld [vmem:[%s1 + $0x8] sm:$0xf]
      %v256 = vld [vmem:[%s1 + $0xc] sm:$0xf]
      %v257 = vld [vmem:[%s1 + $0x10] sm:$0xf]
      %v258 = vld [vmem:[%s1 + $0x14] sm:$0xf]
      %v259 = vld [vmem:[%s1 + $0x18] sm:$0xf]
      %v260 = vld [vmem:[%s1 + $0x1c] sm:$0xf]
      %v261 = vld [vmem:[%s1 + $0x20] sm:$0xf]
      %v262 = vld [vmem:[%s1 + $0x24] sm:$0xf]
      %v263 = vld [vmem:[%s1 + $0x28] sm:$0xf]
      %v264 = vld [vmem:[%s1 + $0x2c] sm:$0xf]
      %v265 = vld [vmem:[%s1 + $0x30] sm:$0xf]
      %v266 = vld [vmem:[%s1 + $0x34] sm:$0xf]
      %v267 = vld [vmem:[%s1 + $0x38] sm:$0xf]
      %v268 = vld [vmem:[%s1 + $0x3c] sm:$0xf]
      %v269 = vld [vmem:[%s1 + $0x40] sm:$0xf]
      %v270 = vld [vmem:[%s1 + $0x44] sm:$0xf]
      %v271 = vld [vmem:[%s1 + $0x48] sm:$0xf]
      %v272 = vld [vmem:[%s1 + $0x4c] sm:$0xf]
      %v273 = vld [vmem:[%s1 + $0x50] sm:$0xf]
      %v274 = vld [vmem:[%s1 + $0x54] sm:$0xf]
      %v275 = vld [vmem:[%s1 + $0x58] sm:$0xf]
      %v276 = vld [vmem:[%s1 + $0x5c] sm:$0xf]
      %v277 = vld [vmem:[%s1 + $0x60] sm:$0xf]
      %v278 = vld [vmem:[%s1 + $0x64] sm:$0xf]
      %v279 = vld [vmem:[%s1 + $0x68] sm:$0xf]
      %v280 = vld [vmem:[%s1 + $0x6c] sm:$0xf]
      %v281 = vld [vmem:[%s1 + $0x70] sm:$0xf]
      %v282 = vld [vmem:[%s1 + $0x74] sm:$0xf]
      %v283 = vld [vmem:[%s1 + $0x78] sm:$0xf]
      %v284 = vld [vmem:[%s1 + $0x7c] sm:$0xf]
      %v285 = vld [vmem:[%s1 + $0x80] sm:$0xf]
      %v286 = vld [vmem:[%s1 + $0x84] sm:$0xf]
      %v287 = vld [vmem:[%s1 + $0x88] sm:$0xf]
      %v288 = vld [vmem:[%s1 + $0x8c] sm:$0xf]
      %v289 = vld [vmem:[%s1 + $0x90] sm:$0xf]
      %v290 = vld [vmem:[%s1 + $0x94] sm:$0xf]
      %v291 = vld [vmem:[%s1 + $0x98] sm:$0xf]
      %v292 = vld [vmem:[%s1 + $0x9c] sm:$0xf]
      %v293 = vld [vmem:[%s1 + $0xa0] sm:$0xf]
      %v294 = vld [vmem:[%s1 + $0xa4] sm:$0xf]
      %v295 = vld [vmem:[%s1 + $0xa8] sm:$0xf]
      %v296 = vld [vmem:[%s1 + $0xac] sm:$0xf]
      %v297 = vld [vmem:[%s1 + $0xb0] sm:$0xf]
      %v298 = vld [vmem:[%s1 + $0xb4] sm:$0xf]
      %v299 = vld [vmem:[%s1 + $0xb8] sm:$0xf]
      %v300 = vld [vmem:[%s1 + $0xbc] sm:$0xf]
      %v301 = vld [vmem:[%s1 + $0xc0] sm:$0xf]
      %v302 = vld [vmem:[%s1 + $0xc4] sm:$0xf]
      %v303 = vld [vmem:[%s1 + $0xc8] sm:$0xf]
      %v304 = vld [vmem:[%s1 + $0xcc] sm:$0xf]
      %v305 = vld [vmem:[%s1 + $0xd0] sm:$0xf]
      %v306 = vld [vmem:[%s1 + $0xd4] sm:$0xf]
      %v307 = vld [vmem:[%s1 + $0xd8] sm:$0xf]
      %v308 = vld [vmem:[%s1 + $0xdc] sm:$0xf]
      %v309 = vld [vmem:[%s1 + $0xe0] sm:$0xf]
      %v310 = vld [vmem:[%s1 + $0xe4] sm:$0xf]
      %v311 = vld [vmem:[%s1 + $0xe8] sm:$0xf]
      %v312 = vld [vmem:[%s1 + $0xec] sm:$0xf]
      %v313 = vld [vmem:[%s1 + $0xf0] sm:$0xf]
      %v314 = vld [vmem:[%s1 + $0xf4] sm:$0xf]
      %v315 = vld [vmem:[%s1 + $0xf8] sm:$0xf]
      %v316 = vld [vmem:[%s1 + $0xfc] sm:$0xf]
      %v317 = vld [vmem:[%s1 + $0x100] sm:$0xf]
      %v318 = vld [vmem:[%s1 + $0x104] sm:$0xf]
      %v319 = vld [vmem:[%s1 + $0x108] sm:$0xf]
      %v320 = vld [vmem:[%s1 + $0x10c] sm:$0xf]
      %v321 = vld [vmem:[%s1 + $0x110] sm:$0xf]
      %v322 = vld [vmem:[%s1 + $0x114] sm:$0xf]
      %v323 = vld [vmem:[%s1 + $0x118] sm:$0xf]
      %v324 = vld [vmem:[%s1 + $0x11c] sm:$0xf]
      %v325 = vld [vmem:[%s1 + $0x120] sm:$0xf]
      %v326 = vld [vmem:[%s1 + $0x124] sm:$0xf]
      %v327 = vld [vmem:[%s1 + $0x128] sm:$0xf]
      %v328 = vld [vmem:[%s1 + $0x12c] sm:$0xf]
      %v329 = vld [vmem:[%s1 + $0x130] sm:$0xf]
      %v330 = vld [vmem:[%s1 + $0x134] sm:$0xf]
      %v331 = vld [vmem:[%s1 + $0x138] sm:$0xf]
      %v332 = vld [vmem:[%s1 + $0x13c] sm:$0xf]
      %v333 = vld [vmem:[%s2] sm:$0x1]
      %v335 = vlaneseq
      %v336 = vshrl.u32 %v335, 7
      %v337 = vsub.s32 0, %v336
      %v338 = vrot.slane %v333, %v337
      %v343 = vunpack.c.l.b16 %v250
      %v344 = vunpack.c.h.b16 %v250
      %v345 = vunpack.c.l.b16 %v251
      %v346 = vunpack.c.h.b16 %v251
      %v347 = vunpack.c.l.b16 %v252
      %v348 = vpack.c.b16 %v343, %v343
      %v349 = vpack.c.b16 %v344, %v344
      %v350 = vpack.c.b16 %v345, %v345
      %v351 = vpack.c.b16 %v346, %v346
      %v352 = vpack.c.b16 %v347, %v347
      %v438 = vunpack.c.l.b16 %v253
      %v439 = vunpack.c.l.b16 %v254
      %v440 = vunpack.c.l.b16 %v255
      %v441 = vunpack.c.l.b16 %v256
      %v442 = vunpack.c.l.b16 %v257
      %v443 = vunpack.c.l.b16 %v258
      %v444 = vunpack.c.l.b16 %v259
      %v445 = vunpack.c.l.b16 %v260
      %v446 = vunpack.c.l.b16 %v261
      %v447 = vunpack.c.l.b16 %v262
      %v448 = vunpack.c.l.b16 %v263
      %v449 = vunpack.c.l.b16 %v264
      %v450 = vunpack.c.l.b16 %v265
      %v451 = vunpack.c.l.b16 %v266
      %v452 = vunpack.c.l.b16 %v267
      %v453 = vunpack.c.l.b16 %v268
      %v454 = vunpack.c.l.b16 %v269
      %v455 = vunpack.c.l.b16 %v270
      %v456 = vunpack.c.l.b16 %v271
      %v457 = vunpack.c.l.b16 %v272
      %v458 = vunpack.c.l.b16 %v273
      %v459 = vunpack.c.l.b16 %v274
      %v460 = vunpack.c.l.b16 %v275
      %v461 = vunpack.c.l.b16 %v276
      %v462 = vunpack.c.l.b16 %v277
      %v463 = vunpack.c.l.b16 %v278
      %v464 = vunpack.c.l.b16 %v279
      %v465 = vunpack.c.l.b16 %v280
      %v466 = vunpack.c.l.b16 %v281
      %v467 = vunpack.c.l.b16 %v282
      %v468 = vunpack.c.l.b16 %v283
      %v469 = vunpack.c.l.b16 %v284
      %v470 = vunpack.c.l.b16 %v285
      %v471 = vunpack.c.l.b16 %v286
      %v472 = vunpack.c.l.b16 %v287
      %v473 = vunpack.c.l.b16 %v288
      %v474 = vunpack.c.l.b16 %v289
      %v475 = vunpack.c.l.b16 %v290
      %v476 = vunpack.c.l.b16 %v291
      %v477 = vunpack.c.l.b16 %v292
      %v478 = vunpack.c.l.b16 %v293
      %v479 = vunpack.c.l.b16 %v294
      %v480 = vunpack.c.l.b16 %v295
      %v481 = vunpack.c.l.b16 %v296
      %v482 = vunpack.c.l.b16 %v297
      %v483 = vunpack.c.l.b16 %v298
      %v484 = vunpack.c.l.b16 %v299
      %v485 = vunpack.c.l.b16 %v300
      %v486 = vunpack.c.l.b16 %v301
      %v487 = vunpack.c.l.b16 %v302
      %v488 = vunpack.c.l.b16 %v303
      %v489 = vunpack.c.l.b16 %v304
      %v490 = vunpack.c.l.b16 %v305
      %v491 = vunpack.c.l.b16 %v306
      %v492 = vunpack.c.l.b16 %v307
      %v493 = vunpack.c.l.b16 %v308
      %v494 = vunpack.c.l.b16 %v309
      %v495 = vunpack.c.l.b16 %v310
      %v496 = vunpack.c.l.b16 %v311
      %v497 = vunpack.c.l.b16 %v312
      %v498 = vunpack.c.l.b16 %v313
      %v499 = vunpack.c.l.b16 %v314
      %v500 = vunpack.c.l.b16 %v315
      %v501 = vunpack.c.l.b16 %v316
      %v502 = vunpack.c.l.b16 %v317
      %v503 = vunpack.c.l.b16 %v318
      %v504 = vunpack.c.l.b16 %v319
      %v505 = vunpack.c.l.b16 %v320
      %v506 = vunpack.c.l.b16 %v321
      %v507 = vunpack.c.l.b16 %v322
      %v508 = vunpack.c.l.b16 %v323
      %v509 = vunpack.c.l.b16 %v324
      %v510 = vunpack.c.l.b16 %v325
      %v511 = vunpack.c.l.b16 %v326
      %v512 = vunpack.c.l.b16 %v327
      %v513 = vunpack.c.l.b16 %v328
      %v514 = vunpack.c.l.b16 %v329
      %v515 = vunpack.c.l.b16 %v330
      %v516 = vunpack.c.l.b16 %v331
      %v517 = vunpack.c.l.b16 %v332
      %v518 = vpack.c.b16 %v439, %v438
      %v519 = vpack.c.b16 %v441, %v440
      %v520 = vpack.c.b16 %v443, %v442
      %v521 = vpack.c.b16 %v445, %v444
      %v522 = vpack.c.b16 %v447, %v446
      %v523 = vpack.c.b16 %v449, %v448
      %v524 = vpack.c.b16 %v451, %v450
      %v525 = vpack.c.b16 %v453, %v452
      %v526 = vpack.c.b16 %v455, %v454
      %v527 = vpack.c.b16 %v457, %v456
      %v528 = vpack.c.b16 %v459, %v458
      %v529 = vpack.c.b16 %v461, %v460
      %v530 = vpack.c.b16 %v463, %v462
      %v531 = vpack.c.b16 %v465, %v464
      %v532 = vpack.c.b16 %v467, %v466
      %v533 = vpack.c.b16 %v469, %v468
      %v534 = vpack.c.b16 %v471, %v470
      %v535 = vpack.c.b16 %v473, %v472
      %v536 = vpack.c.b16 %v475, %v474
      %v537 = vpack.c.b16 %v477, %v476
      %v538 = vpack.c.b16 %v479, %v478
      %v539 = vpack.c.b16 %v481, %v480
      %v540 = vpack.c.b16 %v483, %v482
      %v541 = vpack.c.b16 %v485, %v484
      %v542 = vpack.c.b16 %v487, %v486
      %v543 = vpack.c.b16 %v489, %v488
      %v544 = vpack.c.b16 %v491, %v490
      %v545 = vpack.c.b16 %v493, %v492
      %v546 = vpack.c.b16 %v495, %v494
      %v547 = vpack.c.b16 %v497, %v496
      %v548 = vpack.c.b16 %v499, %v498
      %v549 = vpack.c.b16 %v501, %v500
      %v550 = vpack.c.b16 %v503, %v502
      %v551 = vpack.c.b16 %v505, %v504
      %v552 = vpack.c.b16 %v507, %v506
      %v553 = vpack.c.b16 %v509, %v508
      %v554 = vpack.c.b16 %v511, %v510
      %v555 = vpack.c.b16 %v513, %v512
      %v556 = vpack.c.b16 %v515, %v514
      %v557 = vpack.c.b16 %v517, %v516
      %598 = vmatprep.subr.bf16.mxu0 0
      %599 = vmatpush1.bf16.msra.mxu0 %v525
      %600 = vmatprep.subr.bf16.mxu0 0
      %601 = vmatpush1.bf16.msra.mxu0 %v524
      %602 = vmatprep.subr.bf16.mxu0 0
      %603 = vmatpush1.bf16.msra.mxu0 %v523
      %604 = vmatprep.subr.bf16.mxu0 0
      %605 = vmatpush1.bf16.msra.mxu0 %v522
      %606 = vmatprep.subr.bf16.mxu0 0
      %607 = vmatpush1.bf16.msra.mxu0 %v521
      %608 = vmatprep.subr.bf16.mxu0 0
      %609 = vmatpush1.bf16.msra.mxu0 %v520
      %610 = vmatprep.subr.bf16.mxu0 0
      %611 = vmatpush1.bf16.msra.mxu0 %v519
      %612 = vmatprep.subr.bf16.mxu0 0
      %613 = vmatpush1.bf16.msra.mxu0 %v518
      %614 = vmatprep.subr.bf16.mxu0 0
      %615 = vmatpush2.bf16.msra.mxu0 %v533
      %616 = vmatprep.subr.bf16.mxu0 0
      %617 = vmatpush2.bf16.msra.mxu0 %v532
      %618 = vmatprep.subr.bf16.mxu0 0
      %619 = vmatpush2.bf16.msra.mxu0 %v531
      %620 = vmatprep.subr.bf16.mxu0 0
      %621 = vmatpush2.bf16.msra.mxu0 %v530
      %622 = vmatprep.subr.bf16.mxu0 0
      %623 = vmatpush2.bf16.msra.mxu0 %v529
      %624 = vmatprep.subr.bf16.mxu0 0
      %625 = vmatpush2.bf16.msra.mxu0 %v528
      %626 = vmatprep.subr.bf16.mxu0 0
      %627 = vmatpush2.bf16.msra.mxu0 %v527
      %628 = vmatprep.subr.bf16.mxu0 0
      %629 = vmatpush2.bf16.msra.mxu0 %v526
      %630 = vmatprep.mubr.bf16.mxu0 %v349
      %631 = vmatmul.mubr.bf16.gmra.mxu0 %v348
      %v632 = vpop.f32.mrf.mxu0
      %v633 = vadd.f32 %v338, %v632
      %v634 = vpop.f32.mrf.mxu0
      %v635 = vpop.f32.mrf.mxu0
      %v636 = vpop.f32.mrf.mxu0
      %637 = vdwg.mxu0
      %638 = vmatprep.subr.bf16.mxu0 0
      %639 = vmatpush1.bf16.msra.mxu0 %v541
      %640 = vmatprep.subr.bf16.mxu0 0
      %641 = vmatpush1.bf16.msra.mxu0 %v540
      %642 = vmatprep.subr.bf16.mxu0 0
      %643 = vmatpush1.bf16.msra.mxu0 %v539
      %644 = vmatprep.subr.bf16.mxu0 0
      %645 = vmatpush1.bf16.msra.mxu0 %v538
      %646 = vmatprep.subr.bf16.mxu0 0
      %647 = vmatpush1.bf16.msra.mxu0 %v537
      %648 = vmatprep.subr.bf16.mxu0 0
      %649 = vmatpush1.bf16.msra.mxu0 %v536
      %650 = vmatprep.subr.bf16.mxu0 0
      %651 = vmatpush1.bf16.msra.mxu0 %v535
      %652 = vmatprep.subr.bf16.mxu0 0
      %653 = vmatpush1.bf16.msra.mxu0 %v534
      %654 = vmatprep.subr.bf16.mxu0 0
      %655 = vmatpush2.bf16.msra.mxu0 %v549
      %656 = vmatprep.subr.bf16.mxu0 0
      %657 = vmatpush2.bf16.msra.mxu0 %v548
      %658 = vmatprep.subr.bf16.mxu0 0
      %659 = vmatpush2.bf16.msra.mxu0 %v547
      %660 = vmatprep.subr.bf16.mxu0 0
      %661 = vmatpush2.bf16.msra.mxu0 %v546
      %662 = vmatprep.subr.bf16.mxu0 0
      %663 = vmatpush2.bf16.msra.mxu0 %v545
      %664 = vmatprep.subr.bf16.mxu0 0
      %665 = vmatpush2.bf16.msra.mxu0 %v544
      %666 = vmatprep.subr.bf16.mxu0 0
      %667 = vmatpush2.bf16.msra.mxu0 %v543
      %668 = vmatprep.subr.bf16.mxu0 0
      %669 = vmatpush2.bf16.msra.mxu0 %v542
      %670 = vmatprep.mubr.bf16.mxu0 %v351
      %671 = vmatmul.mubr.bf16.gmra.mxu0 %v350
      %v672 = vpop.f32.mrf.mxu0
      %v673 = vadd.f32 %v633, %v672
      %v674 = vpop.f32.mrf.mxu0
      %v675 = vpop.f32.mrf.mxu0
      %v676 = vpop.f32.mrf.mxu0
      %677 = vdwg.mxu0
      %678 = vmatprep.subr.bf16.mxu0 0
      %679 = vmatpush1.bf16.msra.mxu0 %v557
      %680 = vmatprep.subr.bf16.mxu0 0
      %681 = vmatpush1.bf16.msra.mxu0 %v556
      %682 = vmatprep.subr.bf16.mxu0 0
      %683 = vmatpush1.bf16.msra.mxu0 %v555
      %684 = vmatprep.subr.bf16.mxu0 0
      %685 = vmatpush1.bf16.msra.mxu0 %v554
      %686 = vmatprep.subr.bf16.mxu0 0
      %687 = vmatpush1.bf16.msra.mxu0 %v553
      %688 = vmatprep.subr.bf16.mxu0 0
      %689 = vmatpush1.bf16.msra.mxu0 %v552
      %690 = vmatprep.subr.bf16.mxu0 0
      %691 = vmatpush1.bf16.msra.mxu0 %v551
      %692 = vmatprep.subr.bf16.mxu0 0
      %693 = vmatpush1.bf16.msra.mxu0 %v550
      %694 = vmatprep.subr.bf16.mxu0 0
      %695 = vmatpush2.bf16.msra.mxu0 0
      %696 = vmatprep.subr.bf16.mxu0 0
      %697 = vmatpush2.bf16.msra.mxu0 0
      %698 = vmatprep.subr.bf16.mxu0 0
      %699 = vmatpush2.bf16.msra.mxu0 0
      %700 = vmatprep.subr.bf16.mxu0 0
      %701 = vmatpush2.bf16.msra.mxu0 0
      %702 = vmatprep.subr.bf16.mxu0 0
      %703 = vmatpush2.bf16.msra.mxu0 0
      %704 = vmatprep.subr.bf16.mxu0 0
      %705 = vmatpush2.bf16.msra.mxu0 0
      %706 = vmatprep.subr.bf16.mxu0 0
      %707 = vmatpush2.bf16.msra.mxu0 0
      %708 = vmatprep.subr.bf16.mxu0 0
      %709 = vmatpush2.bf16.msra.mxu0 0
      %710 = vmatprep.mubr.bf16.mxu0 0
      %711 = vmatmul.mubr.bf16.gmra.mxu0 %v352
      %v712 = vpop.f32.mrf.mxu0
      %v713 = vadd.f32 %v673, %v712
      %v714 = vpop.f32.mrf.mxu0
      %v715 = vpop.f32.mrf.mxu0
      %v716 = vpop.f32.mrf.mxu0
      %717 = vdwg.mxu0
      %v718 = vmax.f32 %v713, 0.0
      %v719 = vpack.c.bf16 %v718, %v718
      %720 = vst [vmem:[%s241] sm:$0xf] %v719
      %v721 = vlaneseq
      %v722 = vshrl.u32 %v721, 7
      %s723 = smul.u32 %s20, 8
      %v724 = vstv %s723
      %v725 = vadd.s32 %v722, %v724
      %vm726 = vcmp.lt.s32.totalorder %v725, 4
      %v727 = vsel %vm726, %v718, 0.0
      %v728 = vrot.slane %v727, 4
      %v729 = vadd.f32 %v727, %v728
      %v730 = vrot.slane %v729, 2
      %v731 = vadd.f32 %v729, %v730
      %v732 = vrot.slane %v731, 1
      %v733 = vadd.f32 %v731, %v732
      %734 = vst [vmem:[%s248] sm:$0x1] %v733
      %p735 = scmp.lt.s32.totalorder %s21, 1
      %s736 = scalar_select %p735, %s21, 1
      %p737 = scmp.lt.s32.totalorder %s20, 0
      %s738 = scalar_select %p737, %s20, 0
      %s739 = sadd.s32 %s738, %s736
      %s740 = smul.addr %s739, 4
      %s741 = scalar_lea.vmem %s3, %s740
      %p742 = scmp.lt.s32.totalorder %s20, 0
      %s743 = scalar_select %p742, %s20, 0
      %p744 = scmp.lt.s32.totalorder %s21, 1
      %s745 = scalar_select %p744, %s21, 1
      %s746 = smul.addr %s743, 2
      %s747 = sadd.s32 %s745, %s746
      %s748 = scalar_lea.vmem %s4, %s747
      // Predicated region
      $region33: #{forward.8} parent=31 // pred_check
        %p749 = pneg %p118
      $region34: #{forward.8} parent=31 // pred_check_branch
        %751 = sbr.rel (%p749) target = $region36
      $region35: #{forward.8} parent=31 // pred_region
        _
      $region36: #{forward.8} parent=31 // pred_fallthru
        _
      // Predicated region
      $region37: #{forward.8} parent=31 // pred_check
        %p752 = pneg %p146
      $region38: #{forward.8} parent=31 // pred_check_branch
        %754 = sbr.rel (%p752) target = $region40
      $region39: #{forward.8} parent=31 // pred_region
        _
      $region40: #{forward.8} parent=31 // pred_fallthru
        _
    $region32: #{forward.8} parent=5 // pred_fallthru
      _
    %p755 = scmp.le.s32.totalorder 2, %s11
    // Predicated region
    $region41: #{forward.8} parent=5 // pred_check
      %p756 = pneg %p755
    $region42: #{forward.8} parent=5 // pred_check_branch
      %758 = sbr.rel (%p756) target = $region44
    $region43: #{forward.8} parent=5 // pred_region
      %s759 = ssub.s32 %s11, 2
      // Predicated region
      $region45: #{forward.8} parent=43 // pred_check
        %p760 = pneg %p124
      $region46: #{forward.8} parent=43 // pred_check_branch
        %762 = sbr.rel (%p760) target = $region48
      $region47: #{forward.8} parent=43 // pred_region
        %p763 = scmp.lt.s32.totalorder %s23, 1
        %s764 = scalar_select %p763, %s23, 1
        %p765 = scmp.lt.s32.totalorder %s22, 0
        %s766 = scalar_select %p765, %s22, 0
        %s767 = sadd.s32 %s766, %s764
        %s768 = smul.addr %s767, 4
        %s769 = scalar_lea.vmem %s3, %s768
      $region48: #{forward.8} parent=43 // pred_fallthru
        _
      // Predicated region
      $region49: #{forward.8} parent=43 // pred_check
        %p770 = pneg %p152
      $region50: #{forward.8} parent=43 // pred_check_branch
        %772 = sbr.rel (%p770) target = $region52
      $region51: #{forward.8} parent=43 // pred_region
        %p773 = scmp.lt.s32.totalorder %s22, 0
        %s774 = scalar_select %p773, %s22, 0
        %p775 = scmp.lt.s32.totalorder %s23, 1
        %s776 = scalar_select %p775, %s23, 1
        %s777 = smul.addr %s774, 2
        %s778 = sadd.s32 %s776, %s777
        %s779 = scalar_lea.vmem %s4, %s778
      $region52: #{forward.8} parent=43 // pred_fallthru
        _
    $region44: #{forward.8} parent=5 // pred_fallthru
      _
  $region6: #{forward.8} parent=0 // loop_footer
    %s15 = sadd.s32 1, %s11
  $region7: #{forward.8} parent=0 // loop_footer_branch
    %10 = sbr.rel target = $region3
  $region8: #{forward.8} parent=0 // loop_exit
    _

</llo_original>
